<compile_context>
chip_gen: v5e
topology: v5e:2x2
jax: 0.10.0
libtpu: 0.0.40
codegen_flags: <defaults>
</compile_context>

<pallas_src>
import jax
import jax.numpy as jnp
from jax.experimental import pallas as pl
from jax.experimental.pallas import tpu as pltpu

VOCAB = 37179 + 4          # pretrained vectors + 4 extra zero rows (as in __init__)
EMBED = 300
FEAT = 4 * EMBED           # 1200
FEAT_PAD = 1280            # next multiple of 128 (lane-aligned K for layer 1)
FC_DIM = 512
N_CLASSES = 3
N_CLASSES_PAD = 128        # lane-dense output width (unmasked vst)

MAX_TB = 512               # max batch-tile rows (fits v5e's 16 MiB scoped default)


def _round_up(x, m):
    return (x + m - 1) // m * m


def _cdiv(a, b):
    return -(-a // b)


def _choose_batch_tiling(B):
    """Pick (TB, Bp): tile rows and padded batch.

    - TB is a multiple of 16 (bf16 native sublane tile is (16,128)).
    - Grid has >= 2 steps when B > 64 so v7x can split across its 2 TensorCores.
    - Padding waste is minimized (tile divides the padded batch exactly).
    """
    b16 = _round_up(max(B, 1), 16)
    if b16 <= 64:
        return b16, b16                      # single small step
    n_steps = max(2, _cdiv(b16, MAX_TB))
    tb = _round_up(_cdiv(b16, n_steps), 16)
    bp = _round_up(b16, tb)
    return tb, bp


def _mlp_kernel(feat_ref, w1_ref, b1_ref, w2_ref, b2_ref, w3_ref, b3_ref, out_ref):
    # Fused 3-layer classifier MLP on one batch tile. bf16 inputs, f32 accumulation.
    h1 = jnp.tanh(jnp.dot(feat_ref[...], w1_ref[...],
                          preferred_element_type=jnp.float32) + b1_ref[...])
    h2 = jnp.tanh(jnp.dot(h1.astype(jnp.bfloat16), w2_ref[...],
                          preferred_element_type=jnp.float32) + b2_ref[...])
    out_ref[...] = (jnp.dot(h2.astype(jnp.bfloat16), w3_ref[...],
                            preferred_element_type=jnp.float32) + b3_ref[...])


def prepare_params(params):
    """One-time parameter packing (outside the hot path): cast the embedding
    table to bf16 and pre-pad / pre-cast the classifier weights."""
    emb_bf16 = params["embedding"].astype(jnp.bfloat16)                 # [VOCAB,300]
    w1 = jnp.pad(params["w1"], ((0, FEAT_PAD - FEAT), (0, 0))).astype(jnp.bfloat16)
    b1 = params["b1"].reshape(1, FC_DIM).astype(jnp.float32)
    w2 = params["w2"].astype(jnp.bfloat16)
    b2 = params["b2"].reshape(1, FC_DIM).astype(jnp.float32)
    w3 = jnp.pad(params["w3"],
                 ((0, 0), (0, N_CLASSES_PAD - N_CLASSES))).astype(jnp.bfloat16)
    b3 = jnp.pad(params["b3"],
                 (0, N_CLASSES_PAD - N_CLASSES)).reshape(1, N_CLASSES_PAD).astype(jnp.float32)
    return {"emb_bf16": emb_bf16, "w1": w1, "b1": b1,
            "w2": w2, "b2": b2, "w3": w3, "b3": b3}


def nlinet_forward(s1_tokens, s2_tokens, prepped):
    """s1_tokens, s2_tokens: int32 [B, L] token ids. Returns logits [B, 3] (f32)."""
    emb = prepped["emb_bf16"]                                    # bf16 table
    # AWE encoder: bf16 gather, f32 accumulation of the mean (fuses with the
    # gather under jit, no f32 [B,L,300] slab).
    u = jnp.mean(jnp.take(emb, s1_tokens, axis=0), axis=1, dtype=jnp.float32)
    v = jnp.mean(jnp.take(emb, s2_tokens, axis=0), axis=1, dtype=jnp.float32)
    # Feature slab is built directly in bf16 (diff/product computed in f32 first
    # to avoid bf16 cancellation, then cast).
    feats = jnp.concatenate(
        [u.astype(jnp.bfloat16),
         v.astype(jnp.bfloat16),
         jnp.abs(u - v).astype(jnp.bfloat16),
         (u * v).astype(jnp.bfloat16)], axis=1)                  # [B, 1200] bf16

    B = feats.shape[0]
    TB, Bp = _choose_batch_tiling(B)
    n_steps = Bp // TB

    # Zero-pad: batch -> Bp, feature dim 1200 -> 1280. Pads are zeros (w1 rows /
    # w3-b3 cols are zero-padded too) so results are identical after slicing.
    feats_p = jnp.pad(feats, ((0, Bp - B), (0, FEAT_PAD - FEAT)))

    # feats tile spec; 3-deep buffering only when the grid is long enough.
    if n_steps >= 3:
        feats_spec = pl.BlockSpec((TB, FEAT_PAD), lambda i: (i, 0),
                                  pipeline_mode=pl.Buffered(3))
    else:
        feats_spec = pl.BlockSpec((TB, FEAT_PAD), lambda i: (i, 0))

    flops = 2 * Bp * (FEAT_PAD * FC_DIM + FC_DIM * FC_DIM + FC_DIM * N_CLASSES_PAD)
    bytes_accessed = (Bp * FEAT_PAD * 2                      # feats in (bf16)
                      + (FEAT_PAD * FC_DIM + FC_DIM * FC_DIM
                         + FC_DIM * N_CLASSES_PAD) * 2       # weights (bf16)
                      + (2 * FC_DIM + N_CLASSES_PAD) * 4     # biases (f32)
                      + Bp * N_CLASSES_PAD * 4)              # logits out (f32)

    out = pl.pallas_call(
        _mlp_kernel,
        out_shape=jax.ShapeDtypeStruct((Bp, N_CLASSES_PAD), jnp.float32),
        grid_spec=pltpu.PrefetchScalarGridSpec(
            num_scalar_prefetch=0,
            grid=(n_steps,),
            in_specs=[
                feats_spec,                                            # batch-tiled
                pl.BlockSpec((FEAT_PAD, FC_DIM), lambda i: (0, 0)),    # weights stay
                pl.BlockSpec((1, FC_DIM), lambda i: (0, 0)),           # VMEM-resident
                pl.BlockSpec((FC_DIM, FC_DIM), lambda i: (0, 0)),
                pl.BlockSpec((1, FC_DIM), lambda i: (0, 0)),
                pl.BlockSpec((FC_DIM, N_CLASSES_PAD), lambda i: (0, 0)),
                pl.BlockSpec((1, N_CLASSES_PAD), lambda i: (0, 0)),
            ],
            out_specs=pl.BlockSpec((TB, N_CLASSES_PAD), lambda i: (i, 0)),
        ),
        compiler_params=pltpu.CompilerParams(
            dimension_semantics=("parallel",),
            vmem_limit_bytes=32 * 1024 * 1024,   # headroom over v5e's 16 MiB default;
        ),                                       # <= every generation's physical VMEM
        cost_estimate=pl.CostEstimate(
            flops=flops,
            transcendentals=2 * Bp * FC_DIM,
            bytes_accessed=bytes_accessed,
        ),
    )(feats_p, prepped["w1"], prepped["b1"], prepped["w2"], prepped["b2"],
      prepped["w3"], prepped["b3"])

    return out[:B, :N_CLASSES]


def init_params(key):
    """Deterministic synthetic parameters matching the module's shapes (f32)."""
    ks = jax.random.split(key, 7)

    def lin(kw, kb, fan_in, fan_out):
        bound = 1.0 / jnp.sqrt(fan_in)
        w = jax.random.uniform(kw, (fan_in, fan_out), jnp.float32, -bound, bound)
        b = jax.random.uniform(kb, (fan_out,), jnp.float32, -bound, bound)
        return w, b

    emb = jax.random.normal(ks[0], (VOCAB, EMBED), jnp.float32) * 0.1
    w1, b1 = lin(ks[1], ks[2], FEAT, FC_DIM)
    w2, b2 = lin(ks[3], ks[4], FC_DIM, FC_DIM)
    w3, b3 = lin(ks[5], ks[6], FC_DIM, N_CLASSES)
    return {"embedding": emb, "w1": w1, "b1": b1,
            "w2": w2, "b2": b2, "w3": w3, "b3": b3}


def nlinet_reference(s1_tokens, s2_tokens, params):
    """Pure-JAX f32 reference mirroring the PyTorch forward (eval mode)."""
    emb = params["embedding"]
    u = jnp.mean(jnp.take(emb, s1_tokens, axis=0), axis=1)
    v = jnp.mean(jnp.take(emb, s2_tokens, axis=0), axis=1)
    feats = jnp.concatenate([u, v, jnp.abs(u - v), u * v], axis=1)
    h1 = jnp.tanh(feats @ params["w1"] + params["b1"])
    h2 = jnp.tanh(h1 @ params["w2"] + params["b2"])
    return h2 @ params["w3"] + params["b3"]


if __name__ == "__main__":
    key = jax.random.PRNGKey(0)
    kp, k1, k2 = jax.random.split(key, 3)

    B, L = 8, 8                                   # small batch / seq length
    params = init_params(kp)
    s1 = jax.random.randint(k1, (B, L), 0, VOCAB, dtype=jnp.int32)
    s2 = jax.random.randint(k2, (B, L), 0, VOCAB, dtype=jnp.int32)

    prepped = prepare_params(params)              # one-time cast/pad, off hot path
    prepped = jax.block_until_ready(prepped)

    out = jax.jit(nlinet_forward)(s1, s2, prepped)
    out = jax.block_until_ready(out)

    ref = nlinet_reference(s1, s2, params)
    assert out.shape == (B, N_CLASSES)
    # bf16 gather/matmul path vs f32 reference: tolerance loosened accordingly.
    assert jnp.allclose(out, ref, atol=2e-2, rtol=2e-2), (
        f"mismatch vs reference, max abs err={float(jnp.max(jnp.abs(out - ref)))}")

    print("KERNEL_OK")
</pallas_src>

<mosaic_0001>
module attributes {stable_mosaic.version = 11 : i64} {
  func.func @_mlp_kernel(%arg0: i32, %arg1: memref<16x1280xbf16, #tpu.memory_space<vmem>>, %arg2: memref<1280x512xbf16, #tpu.memory_space<vmem>>, %arg3: memref<1x512xf32, #tpu.memory_space<vmem>>, %arg4: memref<512x512xbf16, #tpu.memory_space<vmem>>, %arg5: memref<1x512xf32, #tpu.memory_space<vmem>>, %arg6: memref<512x128xbf16, #tpu.memory_space<vmem>>, %arg7: memref<1x128xf32, #tpu.memory_space<vmem>>, %arg8: memref<16x128xf32, #tpu.memory_space<vmem>>) attributes {dimension_semantics = [#tpu.dimension_semantics<parallel>], iteration_bounds = array<i64: 1>, scalar_prefetch = 0 : i64, scratch_operands = 0 : i64, tpu.core_type = #tpu.core_type<tc>, window_params = [{transform_indices = @transform_0, window_bounds = array<i64: 16, 1280>}, {pipeline_mode = #tpu.pipeline_mode<synchronous>, transform_indices = @transform_1, window_bounds = array<i64: 1280, 512>}, {pipeline_mode = #tpu.pipeline_mode<synchronous>, transform_indices = @transform_2, window_bounds = array<i64: 1, 512>}, {pipeline_mode = #tpu.pipeline_mode<synchronous>, transform_indices = @transform_3, window_bounds = array<i64: 512, 512>}, {pipeline_mode = #tpu.pipeline_mode<synchronous>, transform_indices = @transform_4, window_bounds = array<i64: 1, 512>}, {pipeline_mode = #tpu.pipeline_mode<synchronous>, transform_indices = @transform_5, window_bounds = array<i64: 512, 128>}, {pipeline_mode = #tpu.pipeline_mode<synchronous>, transform_indices = @transform_6, window_bounds = array<i64: 1, 128>}, {transform_indices = @transform_7, window_bounds = array<i64: 16, 128>}]} {
    %c0 = arith.constant 0 : index
    %c0_0 = arith.constant 0 : index
    %0 = vector.load %arg1[%c0, %c0_0] : memref<16x1280xbf16, #tpu.memory_space<vmem>>, vector<16x1280xbf16>
    %c0_1 = arith.constant 0 : index
    %c0_2 = arith.constant 0 : index
    %1 = vector.load %arg2[%c0_1, %c0_2] : memref<1280x512xbf16, #tpu.memory_space<vmem>>, vector<1280x512xbf16>
    %cst = arith.constant dense<0.000000e+00> : vector<16x512xf32>
    %2 = tpu.matmul %0, %1, %cst {dimension_numbers = #tpu.dot_dimension_numbers<[1], [0], [0], [1], [0, 0, 1, 1], [], []>} : vector<16x1280xbf16>, vector<1280x512xbf16>, vector<16x512xf32> -> vector<16x512xf32>
    %c0_3 = arith.constant 0 : index
    %c0_4 = arith.constant 0 : index
    %3 = vector.load %arg3[%c0_3, %c0_4] : memref<1x512xf32, #tpu.memory_space<vmem>>, vector<1x512xf32>
    %4 = vector.broadcast %3 : vector<1x512xf32> to vector<16x512xf32>
    %5 = arith.addf %2, %4 : vector<16x512xf32>
    %6 = math.tanh %5 : vector<16x512xf32>
    %7 = arith.truncf %6 : vector<16x512xf32> to vector<16x512xbf16>
    %c0_5 = arith.constant 0 : index
    %c0_6 = arith.constant 0 : index
    %8 = vector.load %arg4[%c0_5, %c0_6] : memref<512x512xbf16, #tpu.memory_space<vmem>>, vector<512x512xbf16>
    %cst_7 = arith.constant dense<0.000000e+00> : vector<16x512xf32>
    %9 = tpu.matmul %7, %8, %cst_7 {dimension_numbers = #tpu.dot_dimension_numbers<[1], [0], [0], [1], [0, 0, 1, 1], [], []>} : vector<16x512xbf16>, vector<512x512xbf16>, vector<16x512xf32> -> vector<16x512xf32>
    %c0_8 = arith.constant 0 : index
    %c0_9 = arith.constant 0 : index
    %10 = vector.load %arg5[%c0_8, %c0_9] : memref<1x512xf32, #tpu.memory_space<vmem>>, vector<1x512xf32>
    %11 = vector.broadcast %10 : vector<1x512xf32> to vector<16x512xf32>
    %12 = arith.addf %9, %11 : vector<16x512xf32>
    %13 = math.tanh %12 : vector<16x512xf32>
    %14 = arith.truncf %13 : vector<16x512xf32> to vector<16x512xbf16>
    %c0_10 = arith.constant 0 : index
    %c0_11 = arith.constant 0 : index
    %15 = vector.load %arg6[%c0_10, %c0_11] : memref<512x128xbf16, #tpu.memory_space<vmem>>, vector<512x128xbf16>
    %cst_12 = arith.constant dense<0.000000e+00> : vector<16x128xf32>
    %16 = tpu.matmul %14, %15, %cst_12 {dimension_numbers = #tpu.dot_dimension_numbers<[1], [0], [0], [1], [0, 0, 1, 1], [], []>} : vector<16x512xbf16>, vector<512x128xbf16>, vector<16x128xf32> -> vector<16x128xf32>
    %c0_13 = arith.constant 0 : index
    %c0_14 = arith.constant 0 : index
    %17 = vector.load %arg7[%c0_13, %c0_14] : memref<1x128xf32, #tpu.memory_space<vmem>>, vector<1x128xf32>
    %18 = vector.broadcast %17 : vector<1x128xf32> to vector<16x128xf32>
    %19 = arith.addf %16, %18 : vector<16x128xf32>
    %c0_15 = arith.constant 0 : index
    %c0_16 = arith.constant 0 : index
    %20 = vector.load %arg8[%c0_15, %c0_16] : memref<16x128xf32, #tpu.memory_space<vmem>>, vector<16x128xf32>
    tpu.vector_store %arg8[%c0_15, %c0_16], %19 {strides = array<i32>} : memref<16x128xf32, #tpu.memory_space<vmem>>, vector<16x128xf32>,
    return
  }
  func.func @transform_0(%arg0: i32) -> (i32, i32) {
    %c0_i32 = arith.constant 0 : i32
    %c0_i32_0 = arith.constant 0 : i32
    return %arg0, %c0_i32 : i32, i32
  }
  func.func @transform_1(%arg0: i32) -> (i32, i32) {
    %c0_i32 = arith.constant 0 : i32
    %c0_i32_0 = arith.constant 0 : i32
    %c0_i32_1 = arith.constant 0 : i32
    return %c0_i32, %c0_i32_0 : i32, i32
  }
  func.func @transform_2(%arg0: i32) -> (i32, i32) {
    %c0_i32 = arith.constant 0 : i32
    %c0_i32_0 = arith.constant 0 : i32
    %c0_i32_1 = arith.constant 0 : i32
    return %c0_i32, %c0_i32_0 : i32, i32
  }
  func.func @transform_3(%arg0: i32) -> (i32, i32) {
    %c0_i32 = arith.constant 0 : i32
    %c0_i32_0 = arith.constant 0 : i32
    %c0_i32_1 = arith.constant 0 : i32
    return %c0_i32, %c0_i32_0 : i32, i32
  }
  func.func @transform_4(%arg0: i32) -> (i32, i32) {
    %c0_i32 = arith.constant 0 : i32
    %c0_i32_0 = arith.constant 0 : i32
    %c0_i32_1 = arith.constant 0 : i32
    return %c0_i32, %c0_i32_0 : i32, i32
  }
  func.func @transform_5(%arg0: i32) -> (i32, i32) {
    %c0_i32 = arith.constant 0 : i32
    %c0_i32_0 = arith.constant 0 : i32
    %c0_i32_1 = arith.constant 0 : i32
    return %c0_i32, %c0_i32_0 : i32, i32
  }
  func.func @transform_6(%arg0: i32) -> (i32, i32) {
    %c0_i32 = arith.constant 0 : i32
    %c0_i32_0 = arith.constant 0 : i32
    %c0_i32_1 = arith.constant 0 : i32
    return %c0_i32, %c0_i32_0 : i32, i32
  }
  func.func @transform_7(%arg0: i32) -> (i32, i32) {
    %c0_i32 = arith.constant 0 : i32
    %c0_i32_0 = arith.constant 0 : i32
    return %arg0, %c0_i32 : i32, i32
  }
}

</mosaic_0001>

<llo_original>
// kernel: nlinet_forward.1
$region0: #{nlinet_forward.1}
  #allocation0 [shape = 'u32[]', space=smem, size = 0x4, offset = 0x4, fixed_abs, tag = 'smem constant byte address 0x4 - core index']
  #allocation1 [shape = 'u32[72,128]{1,0:T(1,128)}', space=vmem, size = 0x9000, scoped, tag = 'internal scratch']
  %s0 = inlined_call_operand.vmem [shape: bf16[16,1280], index: 0, kind: input, shape index: {}]
  %s1 = inlined_call_operand.vmem [shape: bf16[1280,512], index: 1, kind: input, shape index: {}]
  %s2 = inlined_call_operand.vmem [shape: f32[1,512], index: 2, kind: input, shape index: {}]
  %s3 = inlined_call_operand.vmem [shape: bf16[512,512], index: 3, kind: input, shape index: {}]
  %s4 = inlined_call_operand.vmem [shape: f32[1,512], index: 4, kind: input, shape index: {}]
  %s5 = inlined_call_operand.vmem [shape: bf16[512,128], index: 5, kind: input, shape index: {}]
  %s6 = inlined_call_operand.vmem [shape: f32[1,128], index: 6, kind: input, shape index: {}]
  %s7 = inlined_call_operand.vmem [shape: f32[16,128], index: 7, kind: output, shape index: {}]
  %s8 = sld [smem:[#allocation0]]
  $region38: #{nlinet_forward.1} parent=0
    _
  %s10 = ssub.s32 1, %s8
  %s11 = scalar_select 0, %s10, %s8
  // Predicated region
  $region2: #{nlinet_forward.1} parent=0 // pred_check
    _
  $region3: #{nlinet_forward.1} parent=0 // pred_check_branch
    %13 = sbr.rel (0) target = $region5
  $region4: #{nlinet_forward.1} parent=0 // pred_region
    _
  $region5: #{nlinet_forward.1} parent=0 // pred_fallthru
    _
  // Predicated region
  $region6: #{nlinet_forward.1} parent=0 // pred_check
    _
  $region7: #{nlinet_forward.1} parent=0 // pred_check_branch
    %15 = sbr.rel (0) target = $region9
  $region8: #{nlinet_forward.1} parent=0 // pred_region
    _
  $region9: #{nlinet_forward.1} parent=0 // pred_fallthru
    _
  // Predicated region
  $region10: #{nlinet_forward.1} parent=0 // pred_check
    _
  $region11: #{nlinet_forward.1} parent=0 // pred_check_branch
    %17 = sbr.rel (0) target = $region13
  $region12: #{nlinet_forward.1} parent=0 // pred_region
    _
  $region13: #{nlinet_forward.1} parent=0 // pred_fallthru
    _
  // Predicated region
  $region14: #{nlinet_forward.1} parent=0 // pred_check
    _
  $region15: #{nlinet_forward.1} parent=0 // pred_check_branch
    %19 = sbr.rel (0) target = $region17
  $region16: #{nlinet_forward.1} parent=0 // pred_region
    _
  $region17: #{nlinet_forward.1} parent=0 // pred_fallthru
    _
  // Predicated region
  $region18: #{nlinet_forward.1} parent=0 // pred_check
    _
  $region19: #{nlinet_forward.1} parent=0 // pred_check_branch
    %21 = sbr.rel (0) target = $region21
  $region20: #{nlinet_forward.1} parent=0 // pred_region
    _
  $region21: #{nlinet_forward.1} parent=0 // pred_fallthru
    _
  // Predicated region
  $region22: #{nlinet_forward.1} parent=0 // pred_check
    _
  $region23: #{nlinet_forward.1} parent=0 // pred_check_branch
    %23 = sbr.rel (0) target = $region25
  $region24: #{nlinet_forward.1} parent=0 // pred_region
    _
  $region25: #{nlinet_forward.1} parent=0 // pred_fallthru
    _
  // Predicated region
  $region26: #{nlinet_forward.1} parent=0 // pred_check
    _
  $region27: #{nlinet_forward.1} parent=0 // pred_check_branch
    %25 = sbr.rel (0) target = $region29
  $region28: #{nlinet_forward.1} parent=0 // pred_region
    _
  $region29: #{nlinet_forward.1} parent=0 // pred_fallthru
    _
  %v26 = vld [vmem:[%s0] sm:$0xff]
  %v27 = vld [vmem:[%s0 + $0x8] sm:$0xff]
  %v28 = vld [vmem:[%s0 + $0x10] sm:$0xff]
  %v29 = vld [vmem:[%s0 + $0x18] sm:$0xff]
  %v30 = vld [vmem:[%s0 + $0x20] sm:$0xff]
  %v31 = vld [vmem:[%s0 + $0x28] sm:$0xff]
  %v32 = vld [vmem:[%s0 + $0x30] sm:$0xff]
  %v33 = vld [vmem:[%s0 + $0x38] sm:$0xff]
  %v34 = vld [vmem:[%s0 + $0x40] sm:$0xff]
  %v35 = vld [vmem:[%s0 + $0x48] sm:$0xff]
  %v36 = vld [vmem:[%s1] sm:$0xff]
  %v37 = vld [vmem:[%s1 + $0x8] sm:$0xff]
  %v38 = vld [vmem:[%s1 + $0x10] sm:$0xff]
  %v39 = vld [vmem:[%s1 + $0x18] sm:$0xff]
  %v40 = vld [vmem:[%s1 + $0x20] sm:$0xff]
  %v41 = vld [vmem:[%s1 + $0x28] sm:$0xff]
  %v42 = vld [vmem:[%s1 + $0x30] sm:$0xff]
  %v43 = vld [vmem:[%s1 + $0x38] sm:$0xff]
  %v44 = vld [vmem:[%s1 + $0x40] sm:$0xff]
  %v45 = vld [vmem:[%s1 + $0x48] sm:$0xff]
  %v46 = vld [vmem:[%s1 + $0x50] sm:$0xff]
  %v47 = vld [vmem:[%s1 + $0x58] sm:$0xff]
  %v48 = vld [vmem:[%s1 + $0x60] sm:$0xff]
  %v49 = vld [vmem:[%s1 + $0x68] sm:$0xff]
  %v50 = vld [vmem:[%s1 + $0x70] sm:$0xff]
  %v51 = vld [vmem:[%s1 + $0x78] sm:$0xff]
  %v52 = vld [vmem:[%s1 + $0x80] sm:$0xff]
  %v53 = vld [vmem:[%s1 + $0x88] sm:$0xff]
  %v54 = vld [vmem:[%s1 + $0x90] sm:$0xff]
  %v55 = vld [vmem:[%s1 + $0x98] sm:$0xff]
  %v56 = vld [vmem:[%s1 + $0xa0] sm:$0xff]
  %v57 = vld [vmem:[%s1 + $0xa8] sm:$0xff]
  %v58 = vld [vmem:[%s1 + $0xb0] sm:$0xff]
  %v59 = vld [vmem:[%s1 + $0xb8] sm:$0xff]
  %v60 = vld [vmem:[%s1 + $0xc0] sm:$0xff]
  %v61 = vld [vmem:[%s1 + $0xc8] sm:$0xff]
  %v62 = vld [vmem:[%s1 + $0xd0] sm:$0xff]
  %v63 = vld [vmem:[%s1 + $0xd8] sm:$0xff]
  %v64 = vld [vmem:[%s1 + $0xe0] sm:$0xff]
  %v65 = vld [vmem:[%s1 + $0xe8] sm:$0xff]
  %v66 = vld [vmem:[%s1 + $0xf0] sm:$0xff]
  %v67 = vld [vmem:[%s1 + $0xf8] sm:$0xff]
  %v68 = vld [vmem:[%s1 + $0x100] sm:$0xff]
  %v69 = vld [vmem:[%s1 + $0x108] sm:$0xff]
  %v70 = vld [vmem:[%s1 + $0x110] sm:$0xff]
  %v71 = vld [vmem:[%s1 + $0x118] sm:$0xff]
  %v72 = vld [vmem:[%s1 + $0x120] sm:$0xff]
  %v73 = vld [vmem:[%s1 + $0x128] sm:$0xff]
  %v74 = vld [vmem:[%s1 + $0x130] sm:$0xff]
  %v75 = vld [vmem:[%s1 + $0x138] sm:$0xff]
  %v76 = vld [vmem:[%s1 + $0x140] sm:$0xff]
  %v77 = vld [vmem:[%s1 + $0x148] sm:$0xff]
  %v78 = vld [vmem:[%s1 + $0x150] sm:$0xff]
  %v79 = vld [vmem:[%s1 + $0x158] sm:$0xff]
  %v80 = vld [vmem:[%s1 + $0x160] sm:$0xff]
  %v81 = vld [vmem:[%s1 + $0x168] sm:$0xff]
  %v82 = vld [vmem:[%s1 + $0x170] sm:$0xff]
  %v83 = vld [vmem:[%s1 + $0x178] sm:$0xff]
  %v84 = vld [vmem:[%s1 + $0x180] sm:$0xff]
  %v85 = vld [vmem:[%s1 + $0x188] sm:$0xff]
  %v86 = vld [vmem:[%s1 + $0x190] sm:$0xff]
  %v87 = vld [vmem:[%s1 + $0x198] sm:$0xff]
  %v88 = vld [vmem:[%s1 + $0x1a0] sm:$0xff]
  %v89 = vld [vmem:[%s1 + $0x1a8] sm:$0xff]
  %v90 = vld [vmem:[%s1 + $0x1b0] sm:$0xff]
  %v91 = vld [vmem:[%s1 + $0x1b8] sm:$0xff]
  %v92 = vld [vmem:[%s1 + $0x1c0] sm:$0xff]
  %v93 = vld [vmem:[%s1 + $0x1c8] sm:$0xff]
  %v94 = vld [vmem:[%s1 + $0x1d0] sm:$0xff]
  %v95 = vld [vmem:[%s1 + $0x1d8] sm:$0xff]
  %v96 = vld [vmem:[%s1 + $0x1e0] sm:$0xff]
  %v97 = vld [vmem:[%s1 + $0x1e8] sm:$0xff]
  %v98 = vld [vmem:[%s1 + $0x1f0] sm:$0xff]
  %v99 = vld [vmem:[%s1 + $0x1f8] sm:$0xff]
  %v100 = vld [vmem:[%s1 + $0x200] sm:$0xff]
  %v101 = vld [vmem:[%s1 + $0x208] sm:$0xff]
  %v102 = vld [vmem:[%s1 + $0x210] sm:$0xff]
  %v103 = vld [vmem:[%s1 + $0x218] sm:$0xff]
  %v104 = vld [vmem:[%s1 + $0x220] sm:$0xff]
  %v105 = vld [vmem:[%s1 + $0x228] sm:$0xff]
  %v106 = vld [vmem:[%s1 + $0x230] sm:$0xff]
  %v107 = vld [vmem:[%s1 + $0x238] sm:$0xff]
  %v108 = vld [vmem:[%s1 + $0x240] sm:$0xff]
  %v109 = vld [vmem:[%s1 + $0x248] sm:$0xff]
  %v110 = vld [vmem:[%s1 + $0x250] sm:$0xff]
  %v111 = vld [vmem:[%s1 + $0x258] sm:$0xff]
  %v112 = vld [vmem:[%s1 + $0x260] sm:$0xff]
  %v113 = vld [vmem:[%s1 + $0x268] sm:$0xff]
  %v114 = vld [vmem:[%s1 + $0x270] sm:$0xff]
  %v115 = vld [vmem:[%s1 + $0x278] sm:$0xff]
  %v116 = vld [vmem:[%s1 + $0x280] sm:$0xff]
  %v117 = vld [vmem:[%s1 + $0x288] sm:$0xff]
  %v118 = vld [vmem:[%s1 + $0x290] sm:$0xff]
  %v119 = vld [vmem:[%s1 + $0x298] sm:$0xff]
  %v120 = vld [vmem:[%s1 + $0x2a0] sm:$0xff]
  %v121 = vld [vmem:[%s1 + $0x2a8] sm:$0xff]
  %v122 = vld [vmem:[%s1 + $0x2b0] sm:$0xff]
  %v123 = vld [vmem:[%s1 + $0x2b8] sm:$0xff]
  %v124 = vld [vmem:[%s1 + $0x2c0] sm:$0xff]
  %v125 = vld [vmem:[%s1 + $0x2c8] sm:$0xff]
  %v126 = vld [vmem:[%s1 + $0x2d0] sm:$0xff]
  %v127 = vld [vmem:[%s1 + $0x2d8] sm:$0xff]
  %v128 = vld [vmem:[%s1 + $0x2e0] sm:$0xff]
  %v129 = vld [vmem:[%s1 + $0x2e8] sm:$0xff]
  %v130 = vld [vmem:[%s1 + $0x2f0] sm:$0xff]
  %v131 = vld [vmem:[%s1 + $0x2f8] sm:$0xff]
  %v132 = vld [vmem:[%s1 + $0x300] sm:$0xff]
  %v133 = vld [vmem:[%s1 + $0x308] sm:$0xff]
  %v134 = vld [vmem:[%s1 + $0x310] sm:$0xff]
  %v135 = vld [vmem:[%s1 + $0x318] sm:$0xff]
  %v136 = vld [vmem:[%s1 + $0x320] sm:$0xff]
  %v137 = vld [vmem:[%s1 + $0x328] sm:$0xff]
  %v138 = vld [vmem:[%s1 + $0x330] sm:$0xff]
  %v139 = vld [vmem:[%s1 + $0x338] sm:$0xff]
  %v140 = vld [vmem:[%s1 + $0x340] sm:$0xff]
  %v141 = vld [vmem:[%s1 + $0x348] sm:$0xff]
  %v142 = vld [vmem:[%s1 + $0x350] sm:$0xff]
  %v143 = vld [vmem:[%s1 + $0x358] sm:$0xff]
  %v144 = vld [vmem:[%s1 + $0x360] sm:$0xff]
  %v145 = vld [vmem:[%s1 + $0x368] sm:$0xff]
  %v146 = vld [vmem:[%s1 + $0x370] sm:$0xff]
  %v147 = vld [vmem:[%s1 + $0x378] sm:$0xff]
  %v148 = vld [vmem:[%s1 + $0x380] sm:$0xff]
  %v149 = vld [vmem:[%s1 + $0x388] sm:$0xff]
  %v150 = vld [vmem:[%s1 + $0x390] sm:$0xff]
  %v151 = vld [vmem:[%s1 + $0x398] sm:$0xff]
  %v152 = vld [vmem:[%s1 + $0x3a0] sm:$0xff]
  %v153 = vld [vmem:[%s1 + $0x3a8] sm:$0xff]
  %v154 = vld [vmem:[%s1 + $0x3b0] sm:$0xff]
  %v155 = vld [vmem:[%s1 + $0x3b8] sm:$0xff]
  %v156 = vld [vmem:[%s1 + $0x3c0] sm:$0xff]
  %v157 = vld [vmem:[%s1 + $0x3c8] sm:$0xff]
  %v158 = vld [vmem:[%s1 + $0x3d0] sm:$0xff]
  %v159 = vld [vmem:[%s1 + $0x3d8] sm:$0xff]
  %v160 = vld [vmem:[%s1 + $0x3e0] sm:$0xff]
  %v161 = vld [vmem:[%s1 + $0x3e8] sm:$0xff]
  %v162 = vld [vmem:[%s1 + $0x3f0] sm:$0xff]
  %v163 = vld [vmem:[%s1 + $0x3f8] sm:$0xff]
  %v164 = vld [vmem:[%s1 + $0x400] sm:$0xff]
  %v165 = vld [vmem:[%s1 + $0x408] sm:$0xff]
  %v166 = vld [vmem:[%s1 + $0x410] sm:$0xff]
  %v167 = vld [vmem:[%s1 + $0x418] sm:$0xff]
  %v168 = vld [vmem:[%s1 + $0x420] sm:$0xff]
  %v169 = vld [vmem:[%s1 + $0x428] sm:$0xff]
  %v170 = vld [vmem:[%s1 + $0x430] sm:$0xff]
  %v171 = vld [vmem:[%s1 + $0x438] sm:$0xff]
  %v172 = vld [vmem:[%s1 + $0x440] sm:$0xff]
  %v173 = vld [vmem:[%s1 + $0x448] sm:$0xff]
  %v174 = vld [vmem:[%s1 + $0x450] sm:$0xff]
  %v175 = vld [vmem:[%s1 + $0x458] sm:$0xff]
  %v176 = vld [vmem:[%s1 + $0x460] sm:$0xff]
  %v177 = vld [vmem:[%s1 + $0x468] sm:$0xff]
  %v178 = vld [vmem:[%s1 + $0x470] sm:$0xff]
  %v179 = vld [vmem:[%s1 + $0x478] sm:$0xff]
  %v180 = vld [vmem:[%s1 + $0x480] sm:$0xff]
  %v181 = vld [vmem:[%s1 + $0x488] sm:$0xff]
  %v182 = vld [vmem:[%s1 + $0x490] sm:$0xff]
  %v183 = vld [vmem:[%s1 + $0x498] sm:$0xff]
  %v184 = vld [vmem:[%s1 + $0x4a0] sm:$0xff]
  %v185 = vld [vmem:[%s1 + $0x4a8] sm:$0xff]
  %v186 = vld [vmem:[%s1 + $0x4b0] sm:$0xff]
  %v187 = vld [vmem:[%s1 + $0x4b8] sm:$0xff]
  %v188 = vld [vmem:[%s1 + $0x4c0] sm:$0xff]
  %v189 = vld [vmem:[%s1 + $0x4c8] sm:$0xff]
  %v190 = vld [vmem:[%s1 + $0x4d0] sm:$0xff]
  %v191 = vld [vmem:[%s1 + $0x4d8] sm:$0xff]
  %v192 = vld [vmem:[%s1 + $0x4e0] sm:$0xff]
  %v193 = vld [vmem:[%s1 + $0x4e8] sm:$0xff]
  %v194 = vld [vmem:[%s1 + $0x4f0] sm:$0xff]
  %v195 = vld [vmem:[%s1 + $0x4f8] sm:$0xff]
  %v196 = vld [vmem:[%s1 + $0x500] sm:$0xff]
  %v197 = vld [vmem:[%s1 + $0x508] sm:$0xff]
  %v198 = vld [vmem:[%s1 + $0x510] sm:$0xff]
  %v199 = vld [vmem:[%s1 + $0x518] sm:$0xff]
  %v200 = vld [vmem:[%s1 + $0x520] sm:$0xff]
  %v201 = vld [vmem:[%s1 + $0x528] sm:$0xff]
  %v202 = vld [vmem:[%s1 + $0x530] sm:$0xff]
  %v203 = vld [vmem:[%s1 + $0x538] sm:$0xff]
  %v204 = vld [vmem:[%s1 + $0x540] sm:$0xff]
  %v205 = vld [vmem:[%s1 + $0x548] sm:$0xff]
  %v206 = vld [vmem:[%s1 + $0x550] sm:$0xff]
  %v207 = vld [vmem:[%s1 + $0x558] sm:$0xff]
  %v208 = vld [vmem:[%s1 + $0x560] sm:$0xff]
  %v209 = vld [vmem:[%s1 + $0x568] sm:$0xff]
  %v210 = vld [vmem:[%s1 + $0x570] sm:$0xff]
  %v211 = vld [vmem:[%s1 + $0x578] sm:$0xff]
  %v212 = vld [vmem:[%s1 + $0x580] sm:$0xff]
  %v213 = vld [vmem:[%s1 + $0x588] sm:$0xff]
  %v214 = vld [vmem:[%s1 + $0x590] sm:$0xff]
  %v215 = vld [vmem:[%s1 + $0x598] sm:$0xff]
  %v216 = vld [vmem:[%s1 + $0x5a0] sm:$0xff]
  %v217 = vld [vmem:[%s1 + $0x5a8] sm:$0xff]
  %v218 = vld [vmem:[%s1 + $0x5b0] sm:$0xff]
  %v219 = vld [vmem:[%s1 + $0x5b8] sm:$0xff]
  %v220 = vld [vmem:[%s1 + $0x5c0] sm:$0xff]
  %v221 = vld [vmem:[%s1 + $0x5c8] sm:$0xff]
  %v222 = vld [vmem:[%s1 + $0x5d0] sm:$0xff]
  %v223 = vld [vmem:[%s1 + $0x5d8] sm:$0xff]
  %v224 = vld [vmem:[%s1 + $0x5e0] sm:$0xff]
  %v225 = vld [vmem:[%s1 + $0x5e8] sm:$0xff]
  %v226 = vld [vmem:[%s1 + $0x5f0] sm:$0xff]
  %v227 = vld [vmem:[%s1 + $0x5f8] sm:$0xff]
  %v228 = vld [vmem:[%s1 + $0x600] sm:$0xff]
  %v229 = vld [vmem:[%s1 + $0x608] sm:$0xff]
  %v230 = vld [vmem:[%s1 + $0x610] sm:$0xff]
  %v231 = vld [vmem:[%s1 + $0x618] sm:$0xff]
  %v232 = vld [vmem:[%s1 + $0x620] sm:$0xff]
  %v233 = vld [vmem:[%s1 + $0x628] sm:$0xff]
  %v234 = vld [vmem:[%s1 + $0x630] sm:$0xff]
  %v235 = vld [vmem:[%s1 + $0x638] sm:$0xff]
  %v236 = vld [vmem:[%s1 + $0x640] sm:$0xff]
  %v237 = vld [vmem:[%s1 + $0x648] sm:$0xff]
  %v238 = vld [vmem:[%s1 + $0x650] sm:$0xff]
  %v239 = vld [vmem:[%s1 + $0x658] sm:$0xff]
  %v240 = vld [vmem:[%s1 + $0x660] sm:$0xff]
  %v241 = vld [vmem:[%s1 + $0x668] sm:$0xff]
  %v242 = vld [vmem:[%s1 + $0x670] sm:$0xff]
  %v243 = vld [vmem:[%s1 + $0x678] sm:$0xff]
  %v244 = vld [vmem:[%s1 + $0x680] sm:$0xff]
  %v245 = vld [vmem:[%s1 + $0x688] sm:$0xff]
  %v246 = vld [vmem:[%s1 + $0x690] sm:$0xff]
  %v247 = vld [vmem:[%s1 + $0x698] sm:$0xff]
  %v248 = vld [vmem:[%s1 + $0x6a0] sm:$0xff]
  %v249 = vld [vmem:[%s1 + $0x6a8] sm:$0xff]
  %v250 = vld [vmem:[%s1 + $0x6b0] sm:$0xff]
  %v251 = vld [vmem:[%s1 + $0x6b8] sm:$0xff]
  %v252 = vld [vmem:[%s1 + $0x6c0] sm:$0xff]
  %v253 = vld [vmem:[%s1 + $0x6c8] sm:$0xff]
  %v254 = vld [vmem:[%s1 + $0x6d0] sm:$0xff]
  %v255 = vld [vmem:[%s1 + $0x6d8] sm:$0xff]
  %v256 = vld [vmem:[%s1 + $0x6e0] sm:$0xff]
  %v257 = vld [vmem:[%s1 + $0x6e8] sm:$0xff]
  %v258 = vld [vmem:[%s1 + $0x6f0] sm:$0xff]
  %v259 = vld [vmem:[%s1 + $0x6f8] sm:$0xff]
  %v260 = vld [vmem:[%s1 + $0x700] sm:$0xff]
  %v261 = vld [vmem:[%s1 + $0x708] sm:$0xff]
  %v262 = vld [vmem:[%s1 + $0x710] sm:$0xff]
  %v263 = vld [vmem:[%s1 + $0x718] sm:$0xff]
  %v264 = vld [vmem:[%s1 + $0x720] sm:$0xff]
  %v265 = vld [vmem:[%s1 + $0x728] sm:$0xff]
  %v266 = vld [vmem:[%s1 + $0x730] sm:$0xff]
  %v267 = vld [vmem:[%s1 + $0x738] sm:$0xff]
  %v268 = vld [vmem:[%s1 + $0x740] sm:$0xff]
  %v269 = vld [vmem:[%s1 + $0x748] sm:$0xff]
  %v270 = vld [vmem:[%s1 + $0x750] sm:$0xff]
  %v271 = vld [vmem:[%s1 + $0x758] sm:$0xff]
  %v272 = vld [vmem:[%s1 + $0x760] sm:$0xff]
  %v273 = vld [vmem:[%s1 + $0x768] sm:$0xff]
  %v274 = vld [vmem:[%s1 + $0x770] sm:$0xff]
  %v275 = vld [vmem:[%s1 + $0x778] sm:$0xff]
  %v276 = vld [vmem:[%s1 + $0x780] sm:$0xff]
  %v277 = vld [vmem:[%s1 + $0x788] sm:$0xff]
  %v278 = vld [vmem:[%s1 + $0x790] sm:$0xff]
  %v279 = vld [vmem:[%s1 + $0x798] sm:$0xff]
  %v280 = vld [vmem:[%s1 + $0x7a0] sm:$0xff]
  %v281 = vld [vmem:[%s1 + $0x7a8] sm:$0xff]
  %v282 = vld [vmem:[%s1 + $0x7b0] sm:$0xff]
  %v283 = vld [vmem:[%s1 + $0x7b8] sm:$0xff]
  %v284 = vld [vmem:[%s1 + $0x7c0] sm:$0xff]
  %v285 = vld [vmem:[%s1 + $0x7c8] sm:$0xff]
  %v286 = vld [vmem:[%s1 + $0x7d0] sm:$0xff]
  %v287 = vld [vmem:[%s1 + $0x7d8] sm:$0xff]
  %v288 = vld [vmem:[%s1 + $0x7e0] sm:$0xff]
  %v289 = vld [vmem:[%s1 + $0x7e8] sm:$0xff]
  %v290 = vld [vmem:[%s1 + $0x7f0] sm:$0xff]
  %v291 = vld [vmem:[%s1 + $0x7f8] sm:$0xff]
  %v292 = vld [vmem:[%s1 + $0x800] sm:$0xff]
  %v293 = vld [vmem:[%s1 + $0x808] sm:$0xff]
  %v294 = vld [vmem:[%s1 + $0x810] sm:$0xff]
  %v295 = vld [vmem:[%s1 + $0x818] sm:$0xff]
  %v296 = vld [vmem:[%s1 + $0x820] sm:$0xff]
  %v297 = vld [vmem:[%s1 + $0x828] sm:$0xff]
  %v298 = vld [vmem:[%s1 + $0x830] sm:$0xff]
  %v299 = vld [vmem:[%s1 + $0x838] sm:$0xff]
  %v300 = vld [vmem:[%s1 + $0x840] sm:$0xff]
  %v301 = vld [vmem:[%s1 + $0x848] sm:$0xff]
  %v302 = vld [vmem:[%s1 + $0x850] sm:$0xff]
  %v303 = vld [vmem:[%s1 + $0x858] sm:$0xff]
  %v304 = vld [vmem:[%s1 + $0x860] sm:$0xff]
  %v305 = vld [vmem:[%s1 + $0x868] sm:$0xff]
  %v306 = vld [vmem:[%s1 + $0x870] sm:$0xff]
  %v307 = vld [vmem:[%s1 + $0x878] sm:$0xff]
  %v308 = vld [vmem:[%s1 + $0x880] sm:$0xff]
  %v309 = vld [vmem:[%s1 + $0x888] sm:$0xff]
  %v310 = vld [vmem:[%s1 + $0x890] sm:$0xff]
  %v311 = vld [vmem:[%s1 + $0x898] sm:$0xff]
  %v312 = vld [vmem:[%s1 + $0x8a0] sm:$0xff]
  %v313 = vld [vmem:[%s1 + $0x8a8] sm:$0xff]
  %v314 = vld [vmem:[%s1 + $0x8b0] sm:$0xff]
  %v315 = vld [vmem:[%s1 + $0x8b8] sm:$0xff]
  %v316 = vld [vmem:[%s1 + $0x8c0] sm:$0xff]
  %v317 = vld [vmem:[%s1 + $0x8c8] sm:$0xff]
  %v318 = vld [vmem:[%s1 + $0x8d0] sm:$0xff]
  %v319 = vld [vmem:[%s1 + $0x8d8] sm:$0xff]
  %v320 = vld [vmem:[%s1 + $0x8e0] sm:$0xff]
  %v321 = vld [vmem:[%s1 + $0x8e8] sm:$0xff]
  %v322 = vld [vmem:[%s1 + $0x8f0] sm:$0xff]
  %v323 = vld [vmem:[%s1 + $0x8f8] sm:$0xff]
  %v324 = vld [vmem:[%s1 + $0x900] sm:$0xff]
  %v325 = vld [vmem:[%s1 + $0x908] sm:$0xff]
  %v326 = vld [vmem:[%s1 + $0x910] sm:$0xff]
  %v327 = vld [vmem:[%s1 + $0x918] sm:$0xff]
  %v328 = vld [vmem:[%s1 + $0x920] sm:$0xff]
  %v329 = vld [vmem:[%s1 + $0x928] sm:$0xff]
  %v330 = vld [vmem:[%s1 + $0x930] sm:$0xff]
  %v331 = vld [vmem:[%s1 + $0x938] sm:$0xff]
  %v332 = vld [vmem:[%s1 + $0x940] sm:$0xff]
  %v333 = vld [vmem:[%s1 + $0x948] sm:$0xff]
  %v334 = vld [vmem:[%s1 + $0x950] sm:$0xff]
  %v335 = vld [vmem:[%s1 + $0x958] sm:$0xff]
  %v336 = vld [vmem:[%s1 + $0x960] sm:$0xff]
  %v337 = vld [vmem:[%s1 + $0x968] sm:$0xff]
  %v338 = vld [vmem:[%s1 + $0x970] sm:$0xff]
  %v339 = vld [vmem:[%s1 + $0x978] sm:$0xff]
  %v340 = vld [vmem:[%s1 + $0x980] sm:$0xff]
  %v341 = vld [vmem:[%s1 + $0x988] sm:$0xff]
  %v342 = vld [vmem:[%s1 + $0x990] sm:$0xff]
  %v343 = vld [vmem:[%s1 + $0x998] sm:$0xff]
  %v344 = vld [vmem:[%s1 + $0x9a0] sm:$0xff]
  %v345 = vld [vmem:[%s1 + $0x9a8] sm:$0xff]
  %v346 = vld [vmem:[%s1 + $0x9b0] sm:$0xff]
  %v347 = vld [vmem:[%s1 + $0x9b8] sm:$0xff]
  %v348 = vld [vmem:[%s1 + $0x9c0] sm:$0xff]
  %v349 = vld [vmem:[%s1 + $0x9c8] sm:$0xff]
  %v350 = vld [vmem:[%s1 + $0x9d0] sm:$0xff]
  %v351 = vld [vmem:[%s1 + $0x9d8] sm:$0xff]
  %v352 = vld [vmem:[%s1 + $0x9e0] sm:$0xff]
  %v353 = vld [vmem:[%s1 + $0x9e8] sm:$0xff]
  %v354 = vld [vmem:[%s1 + $0x9f0] sm:$0xff]
  %v355 = vld [vmem:[%s1 + $0x9f8] sm:$0xff]
  %v356 = vld [vmem:[%s2] sm:$0xf]
  %v358 = vperm.slane %v356, 0
  %v359 = vperm.slane %v356, 1
  %v360 = vperm.slane %v356, 2
  %v361 = vperm.slane %v356, 3
  %v376 = vunpack.c.l.b16 %v26
  %v377 = vunpack.c.h.b16 %v26
  %v378 = vunpack.c.l.b16 %v27
  %v379 = vunpack.c.h.b16 %v27
  %v380 = vunpack.c.l.b16 %v28
  %v381 = vunpack.c.h.b16 %v28
  %v382 = vunpack.c.l.b16 %v29
  %v383 = vunpack.c.h.b16 %v29
  %v384 = vunpack.c.l.b16 %v30
  %v385 = vunpack.c.h.b16 %v30
  %v386 = vunpack.c.l.b16 %v31
  %v387 = vunpack.c.h.b16 %v31
  %v388 = vunpack.c.l.b16 %v32
  %v389 = vunpack.c.h.b16 %v32
  %v390 = vunpack.c.l.b16 %v33
  %v391 = vunpack.c.h.b16 %v33
  %v392 = vunpack.c.l.b16 %v34
  %v393 = vunpack.c.h.b16 %v34
  %v394 = vunpack.c.l.b16 %v35
  %v395 = vunpack.c.h.b16 %v35
  %v396 = vpack.c.b16 %v386, %v376
  %v397 = vpack.c.b16 %v387, %v377
  %v398 = vpack.c.b16 %v388, %v378
  %v399 = vpack.c.b16 %v389, %v379
  %v400 = vpack.c.b16 %v390, %v380
  %v401 = vpack.c.b16 %v391, %v381
  %v402 = vpack.c.b16 %v392, %v382
  %v403 = vpack.c.b16 %v393, %v383
  %v404 = vpack.c.b16 %v394, %v384
  %v405 = vpack.c.b16 %v395, %v385
  %v736 = vunpack.c.l.b16 %v36
  %v737 = vunpack.c.h.b16 %v36
  %v738 = vunpack.c.l.b16 %v37
  %v739 = vunpack.c.h.b16 %v37
  %v740 = vunpack.c.l.b16 %v38
  %v741 = vunpack.c.h.b16 %v38
  %v742 = vunpack.c.l.b16 %v39
  %v743 = vunpack.c.h.b16 %v39
  %v744 = vunpack.c.l.b16 %v40
  %v745 = vunpack.c.h.b16 %v40
  %v746 = vunpack.c.l.b16 %v41
  %v747 = vunpack.c.h.b16 %v41
  %v748 = vunpack.c.l.b16 %v42
  %v749 = vunpack.c.h.b16 %v42
  %v750 = vunpack.c.l.b16 %v43
  %v751 = vunpack.c.h.b16 %v43
  %v752 = vunpack.c.l.b16 %v44
  %v753 = vunpack.c.h.b16 %v44
  %v754 = vunpack.c.l.b16 %v45
  %v755 = vunpack.c.h.b16 %v45
  %v756 = vunpack.c.l.b16 %v46
  %v757 = vunpack.c.h.b16 %v46
  %v758 = vunpack.c.l.b16 %v47
  %v759 = vunpack.c.h.b16 %v47
  %v760 = vunpack.c.l.b16 %v48
  %v761 = vunpack.c.h.b16 %v48
  %v762 = vunpack.c.l.b16 %v49
  %v763 = vunpack.c.h.b16 %v49
  %v764 = vunpack.c.l.b16 %v50
  %v765 = vunpack.c.h.b16 %v50
  %v766 = vunpack.c.l.b16 %v51
  %v767 = vunpack.c.h.b16 %v51
  %v768 = vunpack.c.l.b16 %v52
  %v769 = vunpack.c.h.b16 %v52
  %v770 = vunpack.c.l.b16 %v53
  %v771 = vunpack.c.h.b16 %v53
  %v772 = vunpack.c.l.b16 %v54
  %v773 = vunpack.c.h.b16 %v54
  %v774 = vunpack.c.l.b16 %v55
  %v775 = vunpack.c.h.b16 %v55
  %v776 = vunpack.c.l.b16 %v56
  %v777 = vunpack.c.h.b16 %v56
  %v778 = vunpack.c.l.b16 %v57
  %v779 = vunpack.c.h.b16 %v57
  %v780 = vunpack.c.l.b16 %v58
  %v781 = vunpack.c.h.b16 %v58
  %v782 = vunpack.c.l.b16 %v59
  %v783 = vunpack.c.h.b16 %v59
  %v784 = vunpack.c.l.b16 %v60
  %v785 = vunpack.c.h.b16 %v60
  %v786 = vunpack.c.l.b16 %v61
  %v787 = vunpack.c.h.b16 %v61
  %v788 = vunpack.c.l.b16 %v62
  %v789 = vunpack.c.h.b16 %v62
  %v790 = vunpack.c.l.b16 %v63
  %v791 = vunpack.c.h.b16 %v63
  %v792 = vunpack.c.l.b16 %v64
  %v793 = vunpack.c.h.b16 %v64
  %v794 = vunpack.c.l.b16 %v65
  %v795 = vunpack.c.h.b16 %v65
  %v796 = vunpack.c.l.b16 %v66
  %v797 = vunpack.c.h.b16 %v66
  %v798 = vunpack.c.l.b16 %v67
  %v799 = vunpack.c.h.b16 %v67
  %v800 = vunpack.c.l.b16 %v68
  %v801 = vunpack.c.h.b16 %v68
  %v802 = vunpack.c.l.b16 %v69
  %v803 = vunpack.c.h.b16 %v69
  %v804 = vunpack.c.l.b16 %v70
  %v805 = vunpack.c.h.b16 %v70
  %v806 = vunpack.c.l.b16 %v71
  %v807 = vunpack.c.h.b16 %v71
  %v808 = vunpack.c.l.b16 %v72
  %v809 = vunpack.c.h.b16 %v72
  %v810 = vunpack.c.l.b16 %v73
  %v811 = vunpack.c.h.b16 %v73
  %v812 = vunpack.c.l.b16 %v74
  %v813 = vunpack.c.h.b16 %v74
  %v814 = vunpack.c.l.b16 %v75
  %v815 = vunpack.c.h.b16 %v75
  %v816 = vunpack.c.l.b16 %v76
  %v817 = vunpack.c.h.b16 %v76
  %v818 = vunpack.c.l.b16 %v77
  %v819 = vunpack.c.h.b16 %v77
  %v820 = vunpack.c.l.b16 %v78
  %v821 = vunpack.c.h.b16 %v78
  %v822 = vunpack.c.l.b16 %v79
  %v823 = vunpack.c.h.b16 %v79
  %v824 = vunpack.c.l.b16 %v80
  %v825 = vunpack.c.h.b16 %v80
  %v826 = vunpack.c.l.b16 %v81
  %v827 = vunpack.c.h.b16 %v81
  %v828 = vunpack.c.l.b16 %v82
  %v829 = vunpack.c.h.b16 %v82
  %v830 = vunpack.c.l.b16 %v83
  %v831 = vunpack.c.h.b16 %v83
  %v832 = vunpack.c.l.b16 %v84
  %v833 = vunpack.c.h.b16 %v84
  %v834 = vunpack.c.l.b16 %v85
  %v835 = vunpack.c.h.b16 %v85
  %v836 = vunpack.c.l.b16 %v86
  %v837 = vunpack.c.h.b16 %v86
  %v838 = vunpack.c.l.b16 %v87
  %v839 = vunpack.c.h.b16 %v87
  %v840 = vunpack.c.l.b16 %v88
  %v841 = vunpack.c.h.b16 %v88
  %v842 = vunpack.c.l.b16 %v89
  %v843 = vunpack.c.h.b16 %v89
  %v844 = vunpack.c.l.b16 %v90
  %v845 = vunpack.c.h.b16 %v90
  %v846 = vunpack.c.l.b16 %v91
  %v847 = vunpack.c.h.b16 %v91
  %v848 = vunpack.c.l.b16 %v92
  %v849 = vunpack.c.h.b16 %v92
  %v850 = vunpack.c.l.b16 %v93
  %v851 = vunpack.c.h.b16 %v93
  %v852 = vunpack.c.l.b16 %v94
  %v853 = vunpack.c.h.b16 %v94
  %v854 = vunpack.c.l.b16 %v95
  %v855 = vunpack.c.h.b16 %v95
  %v856 = vunpack.c.l.b16 %v96
  %v857 = vunpack.c.h.b16 %v96
  %v858 = vunpack.c.l.b16 %v97
  %v859 = vunpack.c.h.b16 %v97
  %v860 = vunpack.c.l.b16 %v98
  %v861 = vunpack.c.h.b16 %v98
  %v862 = vunpack.c.l.b16 %v99
  %v863 = vunpack.c.h.b16 %v99
  %v864 = vunpack.c.l.b16 %v100
  %v865 = vunpack.c.h.b16 %v100
  %v866 = vunpack.c.l.b16 %v101
  %v867 = vunpack.c.h.b16 %v101
  %v868 = vunpack.c.l.b16 %v102
  %v869 = vunpack.c.h.b16 %v102
  %v870 = vunpack.c.l.b16 %v103
  %v871 = vunpack.c.h.b16 %v103
  %v872 = vunpack.c.l.b16 %v104
  %v873 = vunpack.c.h.b16 %v104
  %v874 = vunpack.c.l.b16 %v105
  %v875 = vunpack.c.h.b16 %v105
  %v876 = vunpack.c.l.b16 %v106
  %v877 = vunpack.c.h.b16 %v106
  %v878 = vunpack.c.l.b16 %v107
  %v879 = vunpack.c.h.b16 %v107
  %v880 = vunpack.c.l.b16 %v108
  %v881 = vunpack.c.h.b16 %v108
  %v882 = vunpack.c.l.b16 %v109
  %v883 = vunpack.c.h.b16 %v109
  %v884 = vunpack.c.l.b16 %v110
  %v885 = vunpack.c.h.b16 %v110
  %v886 = vunpack.c.l.b16 %v111
  %v887 = vunpack.c.h.b16 %v111
  %v888 = vunpack.c.l.b16 %v112
  %v889 = vunpack.c.h.b16 %v112
  %v890 = vunpack.c.l.b16 %v113
  %v891 = vunpack.c.h.b16 %v113
  %v892 = vunpack.c.l.b16 %v114
  %v893 = vunpack.c.h.b16 %v114
  %v894 = vunpack.c.l.b16 %v115
  %v895 = vunpack.c.h.b16 %v115
  %v896 = vunpack.c.l.b16 %v116
  %v897 = vunpack.c.h.b16 %v116
  %v898 = vunpack.c.l.b16 %v117
  %v899 = vunpack.c.h.b16 %v117
  %v900 = vunpack.c.l.b16 %v118
  %v901 = vunpack.c.h.b16 %v118
  %v902 = vunpack.c.l.b16 %v119
  %v903 = vunpack.c.h.b16 %v119
  %v904 = vunpack.c.l.b16 %v120
  %v905 = vunpack.c.h.b16 %v120
  %v906 = vunpack.c.l.b16 %v121
  %v907 = vunpack.c.h.b16 %v121
  %v908 = vunpack.c.l.b16 %v122
  %v909 = vunpack.c.h.b16 %v122
  %v910 = vunpack.c.l.b16 %v123
  %v911 = vunpack.c.h.b16 %v123
  %v912 = vunpack.c.l.b16 %v124
  %v913 = vunpack.c.h.b16 %v124
  %v914 = vunpack.c.l.b16 %v125
  %v915 = vunpack.c.h.b16 %v125
  %v916 = vunpack.c.l.b16 %v126
  %v917 = vunpack.c.h.b16 %v126
  %v918 = vunpack.c.l.b16 %v127
  %v919 = vunpack.c.h.b16 %v127
  %v920 = vunpack.c.l.b16 %v128
  %v921 = vunpack.c.h.b16 %v128
  %v922 = vunpack.c.l.b16 %v129
  %v923 = vunpack.c.h.b16 %v129
  %v924 = vunpack.c.l.b16 %v130
  %v925 = vunpack.c.h.b16 %v130
  %v926 = vunpack.c.l.b16 %v131
  %v927 = vunpack.c.h.b16 %v131
  %v928 = vunpack.c.l.b16 %v132
  %v929 = vunpack.c.h.b16 %v132
  %v930 = vunpack.c.l.b16 %v133
  %v931 = vunpack.c.h.b16 %v133
  %v932 = vunpack.c.l.b16 %v134
  %v933 = vunpack.c.h.b16 %v134
  %v934 = vunpack.c.l.b16 %v135
  %v935 = vunpack.c.h.b16 %v135
  %v936 = vunpack.c.l.b16 %v136
  %v937 = vunpack.c.h.b16 %v136
  %v938 = vunpack.c.l.b16 %v137
  %v939 = vunpack.c.h.b16 %v137
  %v940 = vunpack.c.l.b16 %v138
  %v941 = vunpack.c.h.b16 %v138
  %v942 = vunpack.c.l.b16 %v139
  %v943 = vunpack.c.h.b16 %v139
  %v944 = vunpack.c.l.b16 %v140
  %v945 = vunpack.c.h.b16 %v140
  %v946 = vunpack.c.l.b16 %v141
  %v947 = vunpack.c.h.b16 %v141
  %v948 = vunpack.c.l.b16 %v142
  %v949 = vunpack.c.h.b16 %v142
  %v950 = vunpack.c.l.b16 %v143
  %v951 = vunpack.c.h.b16 %v143
  %v952 = vunpack.c.l.b16 %v144
  %v953 = vunpack.c.h.b16 %v144
  %v954 = vunpack.c.l.b16 %v145
  %v955 = vunpack.c.h.b16 %v145
  %v956 = vunpack.c.l.b16 %v146
  %v957 = vunpack.c.h.b16 %v146
  %v958 = vunpack.c.l.b16 %v147
  %v959 = vunpack.c.h.b16 %v147
  %v960 = vunpack.c.l.b16 %v148
  %v961 = vunpack.c.h.b16 %v148
  %v962 = vunpack.c.l.b16 %v149
  %v963 = vunpack.c.h.b16 %v149
  %v964 = vunpack.c.l.b16 %v150
  %v965 = vunpack.c.h.b16 %v150
  %v966 = vunpack.c.l.b16 %v151
  %v967 = vunpack.c.h.b16 %v151
  %v968 = vunpack.c.l.b16 %v152
  %v969 = vunpack.c.h.b16 %v152
  %v970 = vunpack.c.l.b16 %v153
  %v971 = vunpack.c.h.b16 %v153
  %v972 = vunpack.c.l.b16 %v154
  %v973 = vunpack.c.h.b16 %v154
  %v974 = vunpack.c.l.b16 %v155
  %v975 = vunpack.c.h.b16 %v155
  %v976 = vunpack.c.l.b16 %v156
  %v977 = vunpack.c.h.b16 %v156
  %v978 = vunpack.c.l.b16 %v157
  %v979 = vunpack.c.h.b16 %v157
  %v980 = vunpack.c.l.b16 %v158
  %v981 = vunpack.c.h.b16 %v158
  %v982 = vunpack.c.l.b16 %v159
  %v983 = vunpack.c.h.b16 %v159
  %v984 = vunpack.c.l.b16 %v160
  %v985 = vunpack.c.h.b16 %v160
  %v986 = vunpack.c.l.b16 %v161
  %v987 = vunpack.c.h.b16 %v161
  %v988 = vunpack.c.l.b16 %v162
  %v989 = vunpack.c.h.b16 %v162
  %v990 = vunpack.c.l.b16 %v163
  %v991 = vunpack.c.h.b16 %v163
  %v992 = vunpack.c.l.b16 %v164
  %v993 = vunpack.c.h.b16 %v164
  %v994 = vunpack.c.l.b16 %v165
  %v995 = vunpack.c.h.b16 %v165
  %v996 = vunpack.c.l.b16 %v166
  %v997 = vunpack.c.h.b16 %v166
  %v998 = vunpack.c.l.b16 %v167
  %v999 = vunpack.c.h.b16 %v167
  %v1000 = vunpack.c.l.b16 %v168
  %v1001 = vunpack.c.h.b16 %v168
  %v1002 = vunpack.c.l.b16 %v169
  %v1003 = vunpack.c.h.b16 %v169
  %v1004 = vunpack.c.l.b16 %v170
  %v1005 = vunpack.c.h.b16 %v170
  %v1006 = vunpack.c.l.b16 %v171
  %v1007 = vunpack.c.h.b16 %v171
  %v1008 = vunpack.c.l.b16 %v172
  %v1009 = vunpack.c.h.b16 %v172
  %v1010 = vunpack.c.l.b16 %v173
  %v1011 = vunpack.c.h.b16 %v173
  %v1012 = vunpack.c.l.b16 %v174
  %v1013 = vunpack.c.h.b16 %v174
  %v1014 = vunpack.c.l.b16 %v175
  %v1015 = vunpack.c.h.b16 %v175
  %v1016 = vunpack.c.l.b16 %v176
  %v1017 = vunpack.c.h.b16 %v176
  %v1018 = vunpack.c.l.b16 %v177
  %v1019 = vunpack.c.h.b16 %v177
  %v1020 = vunpack.c.l.b16 %v178
  %v1021 = vunpack.c.h.b16 %v178
  %v1022 = vunpack.c.l.b16 %v179
  %v1023 = vunpack.c.h.b16 %v179
  %v1024 = vunpack.c.l.b16 %v180
  %v1025 = vunpack.c.h.b16 %v180
  %v1026 = vunpack.c.l.b16 %v181
  %v1027 = vunpack.c.h.b16 %v181
  %v1028 = vunpack.c.l.b16 %v182
  %v1029 = vunpack.c.h.b16 %v182
  %v1030 = vunpack.c.l.b16 %v183
  %v1031 = vunpack.c.h.b16 %v183
  %v1032 = vunpack.c.l.b16 %v184
  %v1033 = vunpack.c.h.b16 %v184
  %v1034 = vunpack.c.l.b16 %v185
  %v1035 = vunpack.c.h.b16 %v185
  %v1036 = vunpack.c.l.b16 %v186
  %v1037 = vunpack.c.h.b16 %v186
  %v1038 = vunpack.c.l.b16 %v187
  %v1039 = vunpack.c.h.b16 %v187
  %v1040 = vunpack.c.l.b16 %v188
  %v1041 = vunpack.c.h.b16 %v188
  %v1042 = vunpack.c.l.b16 %v189
  %v1043 = vunpack.c.h.b16 %v189
  %v1044 = vunpack.c.l.b16 %v190
  %v1045 = vunpack.c.h.b16 %v190
  %v1046 = vunpack.c.l.b16 %v191
  %v1047 = vunpack.c.h.b16 %v191
  %v1048 = vunpack.c.l.b16 %v192
  %v1049 = vunpack.c.h.b16 %v192
  %v1050 = vunpack.c.l.b16 %v193
  %v1051 = vunpack.c.h.b16 %v193
  %v1052 = vunpack.c.l.b16 %v194
  %v1053 = vunpack.c.h.b16 %v194
  %v1054 = vunpack.c.l.b16 %v195
  %v1055 = vunpack.c.h.b16 %v195
  %v1056 = vunpack.c.l.b16 %v196
  %v1057 = vunpack.c.h.b16 %v196
  %v1058 = vunpack.c.l.b16 %v197
  %v1059 = vunpack.c.h.b16 %v197
  %v1060 = vunpack.c.l.b16 %v198
  %v1061 = vunpack.c.h.b16 %v198
  %v1062 = vunpack.c.l.b16 %v199
  %v1063 = vunpack.c.h.b16 %v199
  %v1064 = vunpack.c.l.b16 %v200
  %v1065 = vunpack.c.h.b16 %v200
  %v1066 = vunpack.c.l.b16 %v201
  %v1067 = vunpack.c.h.b16 %v201
  %v1068 = vunpack.c.l.b16 %v202
  %v1069 = vunpack.c.h.b16 %v202
  %v1070 = vunpack.c.l.b16 %v203
  %v1071 = vunpack.c.h.b16 %v203
  %v1072 = vunpack.c.l.b16 %v204
  %v1073 = vunpack.c.h.b16 %v204
  %v1074 = vunpack.c.l.b16 %v205
  %v1075 = vunpack.c.h.b16 %v205
  %v1076 = vunpack.c.l.b16 %v206
  %v1077 = vunpack.c.h.b16 %v206
  %v1078 = vunpack.c.l.b16 %v207
  %v1079 = vunpack.c.h.b16 %v207
  %v1080 = vunpack.c.l.b16 %v208
  %v1081 = vunpack.c.h.b16 %v208
  %v1082 = vunpack.c.l.b16 %v209
  %v1083 = vunpack.c.h.b16 %v209
  %v1084 = vunpack.c.l.b16 %v210
  %v1085 = vunpack.c.h.b16 %v210
  %v1086 = vunpack.c.l.b16 %v211
  %v1087 = vunpack.c.h.b16 %v211
  %v1088 = vunpack.c.l.b16 %v212
  %v1089 = vunpack.c.h.b16 %v212
  %v1090 = vunpack.c.l.b16 %v213
  %v1091 = vunpack.c.h.b16 %v213
  %v1092 = vunpack.c.l.b16 %v214
  %v1093 = vunpack.c.h.b16 %v214
  %v1094 = vunpack.c.l.b16 %v215
  %v1095 = vunpack.c.h.b16 %v215
  %v1096 = vunpack.c.l.b16 %v216
  %v1097 = vunpack.c.h.b16 %v216
  %v1098 = vunpack.c.l.b16 %v217
  %v1099 = vunpack.c.h.b16 %v217
  %v1100 = vunpack.c.l.b16 %v218
  %v1101 = vunpack.c.h.b16 %v218
  %v1102 = vunpack.c.l.b16 %v219
  %v1103 = vunpack.c.h.b16 %v219
  %v1104 = vunpack.c.l.b16 %v220
  %v1105 = vunpack.c.h.b16 %v220
  %v1106 = vunpack.c.l.b16 %v221
  %v1107 = vunpack.c.h.b16 %v221
  %v1108 = vunpack.c.l.b16 %v222
  %v1109 = vunpack.c.h.b16 %v222
  %v1110 = vunpack.c.l.b16 %v223
  %v1111 = vunpack.c.h.b16 %v223
  %v1112 = vunpack.c.l.b16 %v224
  %v1113 = vunpack.c.h.b16 %v224
  %v1114 = vunpack.c.l.b16 %v225
  %v1115 = vunpack.c.h.b16 %v225
  %v1116 = vunpack.c.l.b16 %v226
  %v1117 = vunpack.c.h.b16 %v226
  %v1118 = vunpack.c.l.b16 %v227
  %v1119 = vunpack.c.h.b16 %v227
  %v1120 = vunpack.c.l.b16 %v228
  %v1121 = vunpack.c.h.b16 %v228
  %v1122 = vunpack.c.l.b16 %v229
  %v1123 = vunpack.c.h.b16 %v229
  %v1124 = vunpack.c.l.b16 %v230
  %v1125 = vunpack.c.h.b16 %v230
  %v1126 = vunpack.c.l.b16 %v231
  %v1127 = vunpack.c.h.b16 %v231
  %v1128 = vunpack.c.l.b16 %v232
  %v1129 = vunpack.c.h.b16 %v232
  %v1130 = vunpack.c.l.b16 %v233
  %v1131 = vunpack.c.h.b16 %v233
  %v1132 = vunpack.c.l.b16 %v234
  %v1133 = vunpack.c.h.b16 %v234
  %v1134 = vunpack.c.l.b16 %v235
  %v1135 = vunpack.c.h.b16 %v235
  %v1136 = vunpack.c.l.b16 %v236
  %v1137 = vunpack.c.h.b16 %v236
  %v1138 = vunpack.c.l.b16 %v237
  %v1139 = vunpack.c.h.b16 %v237
  %v1140 = vunpack.c.l.b16 %v238
  %v1141 = vunpack.c.h.b16 %v238
  %v1142 = vunpack.c.l.b16 %v239
  %v1143 = vunpack.c.h.b16 %v239
  %v1144 = vunpack.c.l.b16 %v240
  %v1145 = vunpack.c.h.b16 %v240
  %v1146 = vunpack.c.l.b16 %v241
  %v1147 = vunpack.c.h.b16 %v241
  %v1148 = vunpack.c.l.b16 %v242
  %v1149 = vunpack.c.h.b16 %v242
  %v1150 = vunpack.c.l.b16 %v243
  %v1151 = vunpack.c.h.b16 %v243
  %v1152 = vunpack.c.l.b16 %v244
  %v1153 = vunpack.c.h.b16 %v244
  %v1154 = vunpack.c.l.b16 %v245
  %v1155 = vunpack.c.h.b16 %v245
  %v1156 = vunpack.c.l.b16 %v246
  %v1157 = vunpack.c.h.b16 %v246
  %v1158 = vunpack.c.l.b16 %v247
  %v1159 = vunpack.c.h.b16 %v247
  %v1160 = vunpack.c.l.b16 %v248
  %v1161 = vunpack.c.h.b16 %v248
  %v1162 = vunpack.c.l.b16 %v249
  %v1163 = vunpack.c.h.b16 %v249
  %v1164 = vunpack.c.l.b16 %v250
  %v1165 = vunpack.c.h.b16 %v250
  %v1166 = vunpack.c.l.b16 %v251
  %v1167 = vunpack.c.h.b16 %v251
  %v1168 = vunpack.c.l.b16 %v252
  %v1169 = vunpack.c.h.b16 %v252
  %v1170 = vunpack.c.l.b16 %v253
  %v1171 = vunpack.c.h.b16 %v253
  %v1172 = vunpack.c.l.b16 %v254
  %v1173 = vunpack.c.h.b16 %v254
  %v1174 = vunpack.c.l.b16 %v255
  %v1175 = vunpack.c.h.b16 %v255
  %v1176 = vunpack.c.l.b16 %v256
  %v1177 = vunpack.c.h.b16 %v256
  %v1178 = vunpack.c.l.b16 %v257
  %v1179 = vunpack.c.h.b16 %v257
  %v1180 = vunpack.c.l.b16 %v258
  %v1181 = vunpack.c.h.b16 %v258
  %v1182 = vunpack.c.l.b16 %v259
  %v1183 = vunpack.c.h.b16 %v259
  %v1184 = vunpack.c.l.b16 %v260
  %v1185 = vunpack.c.h.b16 %v260
  %v1186 = vunpack.c.l.b16 %v261
  %v1187 = vunpack.c.h.b16 %v261
  %v1188 = vunpack.c.l.b16 %v262
  %v1189 = vunpack.c.h.b16 %v262
  %v1190 = vunpack.c.l.b16 %v263
  %v1191 = vunpack.c.h.b16 %v263
  %v1192 = vunpack.c.l.b16 %v264
  %v1193 = vunpack.c.h.b16 %v264
  %v1194 = vunpack.c.l.b16 %v265
  %v1195 = vunpack.c.h.b16 %v265
  %v1196 = vunpack.c.l.b16 %v266
  %v1197 = vunpack.c.h.b16 %v266
  %v1198 = vunpack.c.l.b16 %v267
  %v1199 = vunpack.c.h.b16 %v267
  %v1200 = vunpack.c.l.b16 %v268
  %v1201 = vunpack.c.h.b16 %v268
  %v1202 = vunpack.c.l.b16 %v269
  %v1203 = vunpack.c.h.b16 %v269
  %v1204 = vunpack.c.l.b16 %v270
  %v1205 = vunpack.c.h.b16 %v270
  %v1206 = vunpack.c.l.b16 %v271
  %v1207 = vunpack.c.h.b16 %v271
  %v1208 = vunpack.c.l.b16 %v272
  %v1209 = vunpack.c.h.b16 %v272
  %v1210 = vunpack.c.l.b16 %v273
  %v1211 = vunpack.c.h.b16 %v273
  %v1212 = vunpack.c.l.b16 %v274
  %v1213 = vunpack.c.h.b16 %v274
  %v1214 = vunpack.c.l.b16 %v275
  %v1215 = vunpack.c.h.b16 %v275
  %v1216 = vunpack.c.l.b16 %v276
  %v1217 = vunpack.c.h.b16 %v276
  %v1218 = vunpack.c.l.b16 %v277
  %v1219 = vunpack.c.h.b16 %v277
  %v1220 = vunpack.c.l.b16 %v278
  %v1221 = vunpack.c.h.b16 %v278
  %v1222 = vunpack.c.l.b16 %v279
  %v1223 = vunpack.c.h.b16 %v279
  %v1224 = vunpack.c.l.b16 %v280
  %v1225 = vunpack.c.h.b16 %v280
  %v1226 = vunpack.c.l.b16 %v281
  %v1227 = vunpack.c.h.b16 %v281
  %v1228 = vunpack.c.l.b16 %v282
  %v1229 = vunpack.c.h.b16 %v282
  %v1230 = vunpack.c.l.b16 %v283
  %v1231 = vunpack.c.h.b16 %v283
  %v1232 = vunpack.c.l.b16 %v284
  %v1233 = vunpack.c.h.b16 %v284
  %v1234 = vunpack.c.l.b16 %v285
  %v1235 = vunpack.c.h.b16 %v285
  %v1236 = vunpack.c.l.b16 %v286
  %v1237 = vunpack.c.h.b16 %v286
  %v1238 = vunpack.c.l.b16 %v287
  %v1239 = vunpack.c.h.b16 %v287
  %v1240 = vunpack.c.l.b16 %v288
  %v1241 = vunpack.c.h.b16 %v288
  %v1242 = vunpack.c.l.b16 %v289
  %v1243 = vunpack.c.h.b16 %v289
  %v1244 = vunpack.c.l.b16 %v290
  %v1245 = vunpack.c.h.b16 %v290
  %v1246 = vunpack.c.l.b16 %v291
  %v1247 = vunpack.c.h.b16 %v291
  %v1248 = vunpack.c.l.b16 %v292
  %v1249 = vunpack.c.h.b16 %v292
  %v1250 = vunpack.c.l.b16 %v293
  %v1251 = vunpack.c.h.b16 %v293
  %v1252 = vunpack.c.l.b16 %v294
  %v1253 = vunpack.c.h.b16 %v294
  %v1254 = vunpack.c.l.b16 %v295
  %v1255 = vunpack.c.h.b16 %v295
  %v1256 = vunpack.c.l.b16 %v296
  %v1257 = vunpack.c.h.b16 %v296
  %v1258 = vunpack.c.l.b16 %v297
  %v1259 = vunpack.c.h.b16 %v297
  %v1260 = vunpack.c.l.b16 %v298
  %v1261 = vunpack.c.h.b16 %v298
  %v1262 = vunpack.c.l.b16 %v299
  %v1263 = vunpack.c.h.b16 %v299
  %v1264 = vunpack.c.l.b16 %v300
  %v1265 = vunpack.c.h.b16 %v300
  %v1266 = vunpack.c.l.b16 %v301
  %v1267 = vunpack.c.h.b16 %v301
  %v1268 = vunpack.c.l.b16 %v302
  %v1269 = vunpack.c.h.b16 %v302
  %v1270 = vunpack.c.l.b16 %v303
  %v1271 = vunpack.c.h.b16 %v303
  %v1272 = vunpack.c.l.b16 %v304
  %v1273 = vunpack.c.h.b16 %v304
  %v1274 = vunpack.c.l.b16 %v305
  %v1275 = vunpack.c.h.b16 %v305
  %v1276 = vunpack.c.l.b16 %v306
  %v1277 = vunpack.c.h.b16 %v306
  %v1278 = vunpack.c.l.b16 %v307
  %v1279 = vunpack.c.h.b16 %v307
  %v1280 = vunpack.c.l.b16 %v308
  %v1281 = vunpack.c.h.b16 %v308
  %v1282 = vunpack.c.l.b16 %v309
  %v1283 = vunpack.c.h.b16 %v309
  %v1284 = vunpack.c.l.b16 %v310
  %v1285 = vunpack.c.h.b16 %v310
  %v1286 = vunpack.c.l.b16 %v311
  %v1287 = vunpack.c.h.b16 %v311
  %v1288 = vunpack.c.l.b16 %v312
  %v1289 = vunpack.c.h.b16 %v312
  %v1290 = vunpack.c.l.b16 %v313
  %v1291 = vunpack.c.h.b16 %v313
  %v1292 = vunpack.c.l.b16 %v314
  %v1293 = vunpack.c.h.b16 %v314
  %v1294 = vunpack.c.l.b16 %v315
  %v1295 = vunpack.c.h.b16 %v315
  %v1296 = vunpack.c.l.b16 %v316
  %v1297 = vunpack.c.h.b16 %v316
  %v1298 = vunpack.c.l.b16 %v317
  %v1299 = vunpack.c.h.b16 %v317
  %v1300 = vunpack.c.l.b16 %v318
  %v1301 = vunpack.c.h.b16 %v318
  %v1302 = vunpack.c.l.b16 %v319
  %v1303 = vunpack.c.h.b16 %v319
  %v1304 = vunpack.c.l.b16 %v320
  %v1305 = vunpack.c.h.b16 %v320
  %v1306 = vunpack.c.l.b16 %v321
  %v1307 = vunpack.c.h.b16 %v321
  %v1308 = vunpack.c.l.b16 %v322
  %v1309 = vunpack.c.h.b16 %v322
  %v1310 = vunpack.c.l.b16 %v323
  %v1311 = vunpack.c.h.b16 %v323
  %v1312 = vunpack.c.l.b16 %v324
  %v1313 = vunpack.c.h.b16 %v324
  %v1314 = vunpack.c.l.b16 %v325
  %v1315 = vunpack.c.h.b16 %v325
  %v1316 = vunpack.c.l.b16 %v326
  %v1317 = vunpack.c.h.b16 %v326
  %v1318 = vunpack.c.l.b16 %v327
  %v1319 = vunpack.c.h.b16 %v327
  %v1320 = vunpack.c.l.b16 %v328
  %v1321 = vunpack.c.h.b16 %v328
  %v1322 = vunpack.c.l.b16 %v329
  %v1323 = vunpack.c.h.b16 %v329
  %v1324 = vunpack.c.l.b16 %v330
  %v1325 = vunpack.c.h.b16 %v330
  %v1326 = vunpack.c.l.b16 %v331
  %v1327 = vunpack.c.h.b16 %v331
  %v1328 = vunpack.c.l.b16 %v332
  %v1329 = vunpack.c.h.b16 %v332
  %v1330 = vunpack.c.l.b16 %v333
  %v1331 = vunpack.c.h.b16 %v333
  %v1332 = vunpack.c.l.b16 %v334
  %v1333 = vunpack.c.h.b16 %v334
  %v1334 = vunpack.c.l.b16 %v335
  %v1335 = vunpack.c.h.b16 %v335
  %v1336 = vunpack.c.l.b16 %v336
  %v1337 = vunpack.c.h.b16 %v336
  %v1338 = vunpack.c.l.b16 %v337
  %v1339 = vunpack.c.h.b16 %v337
  %v1340 = vunpack.c.l.b16 %v338
  %v1341 = vunpack.c.h.b16 %v338
  %v1342 = vunpack.c.l.b16 %v339
  %v1343 = vunpack.c.h.b16 %v339
  %v1344 = vunpack.c.l.b16 %v340
  %v1345 = vunpack.c.h.b16 %v340
  %v1346 = vunpack.c.l.b16 %v341
  %v1347 = vunpack.c.h.b16 %v341
  %v1348 = vunpack.c.l.b16 %v342
  %v1349 = vunpack.c.h.b16 %v342
  %v1350 = vunpack.c.l.b16 %v343
  %v1351 = vunpack.c.h.b16 %v343
  %v1352 = vunpack.c.l.b16 %v344
  %v1353 = vunpack.c.h.b16 %v344
  %v1354 = vunpack.c.l.b16 %v345
  %v1355 = vunpack.c.h.b16 %v345
  %v1356 = vunpack.c.l.b16 %v346
  %v1357 = vunpack.c.h.b16 %v346
  %v1358 = vunpack.c.l.b16 %v347
  %v1359 = vunpack.c.h.b16 %v347
  %v1360 = vunpack.c.l.b16 %v348
  %v1361 = vunpack.c.h.b16 %v348
  %v1362 = vunpack.c.l.b16 %v349
  %v1363 = vunpack.c.h.b16 %v349
  %v1364 = vunpack.c.l.b16 %v350
  %v1365 = vunpack.c.h.b16 %v350
  %v1366 = vunpack.c.l.b16 %v351
  %v1367 = vunpack.c.h.b16 %v351
  %v1368 = vunpack.c.l.b16 %v352
  %v1369 = vunpack.c.h.b16 %v352
  %v1370 = vunpack.c.l.b16 %v353
  %v1371 = vunpack.c.h.b16 %v353
  %v1372 = vunpack.c.l.b16 %v354
  %v1373 = vunpack.c.h.b16 %v354
  %v1374 = vunpack.c.l.b16 %v355
  %v1375 = vunpack.c.h.b16 %v355
  %v1376 = vpack.c.b16 %v740, %v736
  %v1377 = vpack.c.b16 %v741, %v737
  %v1378 = vpack.c.b16 %v742, %v738
  %v1379 = vpack.c.b16 %v743, %v739
  %v1380 = vpack.c.b16 %v748, %v744
  %v1381 = vpack.c.b16 %v749, %v745
  %v1382 = vpack.c.b16 %v750, %v746
  %v1383 = vpack.c.b16 %v751, %v747
  %v1384 = vpack.c.b16 %v756, %v752
  %v1385 = vpack.c.b16 %v757, %v753
  %v1386 = vpack.c.b16 %v758, %v754
  %v1387 = vpack.c.b16 %v759, %v755
  %v1388 = vpack.c.b16 %v764, %v760
  %v1389 = vpack.c.b16 %v765, %v761
  %v1390 = vpack.c.b16 %v766, %v762
  %v1391 = vpack.c.b16 %v767, %v763
  %v1392 = vpack.c.b16 %v772, %v768
  %v1393 = vpack.c.b16 %v773, %v769
  %v1394 = vpack.c.b16 %v774, %v770
  %v1395 = vpack.c.b16 %v775, %v771
  %v1396 = vpack.c.b16 %v780, %v776
  %v1397 = vpack.c.b16 %v781, %v777
  %v1398 = vpack.c.b16 %v782, %v778
  %v1399 = vpack.c.b16 %v783, %v779
  %v1400 = vpack.c.b16 %v788, %v784
  %v1401 = vpack.c.b16 %v789, %v785
  %v1402 = vpack.c.b16 %v790, %v786
  %v1403 = vpack.c.b16 %v791, %v787
  %v1404 = vpack.c.b16 %v796, %v792
  %v1405 = vpack.c.b16 %v797, %v793
  %v1406 = vpack.c.b16 %v798, %v794
  %v1407 = vpack.c.b16 %v799, %v795
  %v1408 = vpack.c.b16 %v804, %v800
  %v1409 = vpack.c.b16 %v805, %v801
  %v1410 = vpack.c.b16 %v806, %v802
  %v1411 = vpack.c.b16 %v807, %v803
  %v1412 = vpack.c.b16 %v812, %v808
  %v1413 = vpack.c.b16 %v813, %v809
  %v1414 = vpack.c.b16 %v814, %v810
  %v1415 = vpack.c.b16 %v815, %v811
  %v1416 = vpack.c.b16 %v820, %v816
  %v1417 = vpack.c.b16 %v821, %v817
  %v1418 = vpack.c.b16 %v822, %v818
  %v1419 = vpack.c.b16 %v823, %v819
  %v1420 = vpack.c.b16 %v828, %v824
  %v1421 = vpack.c.b16 %v829, %v825
  %v1422 = vpack.c.b16 %v830, %v826
  %v1423 = vpack.c.b16 %v831, %v827
  %v1424 = vpack.c.b16 %v836, %v832
  %v1425 = vpack.c.b16 %v837, %v833
  %v1426 = vpack.c.b16 %v838, %v834
  %v1427 = vpack.c.b16 %v839, %v835
  %v1428 = vpack.c.b16 %v844, %v840
  %v1429 = vpack.c.b16 %v845, %v841
  %v1430 = vpack.c.b16 %v846, %v842
  %v1431 = vpack.c.b16 %v847, %v843
  %v1432 = vpack.c.b16 %v852, %v848
  %v1433 = vpack.c.b16 %v853, %v849
  %v1434 = vpack.c.b16 %v854, %v850
  %v1435 = vpack.c.b16 %v855, %v851
  %v1436 = vpack.c.b16 %v860, %v856
  %v1437 = vpack.c.b16 %v861, %v857
  %v1438 = vpack.c.b16 %v862, %v858
  %v1439 = vpack.c.b16 %v863, %v859
  %v1440 = vpack.c.b16 %v868, %v864
  %v1441 = vpack.c.b16 %v869, %v865
  %v1442 = vpack.c.b16 %v870, %v866
  %v1443 = vpack.c.b16 %v871, %v867
  %v1444 = vpack.c.b16 %v876, %v872
  %v1445 = vpack.c.b16 %v877, %v873
  %v1446 = vpack.c.b16 %v878, %v874
  %v1447 = vpack.c.b16 %v879, %v875
  %v1448 = vpack.c.b16 %v884, %v880
  %v1449 = vpack.c.b16 %v885, %v881
  %v1450 = vpack.c.b16 %v886, %v882
  %v1451 = vpack.c.b16 %v887, %v883
  %v1452 = vpack.c.b16 %v892, %v888
  %v1453 = vpack.c.b16 %v893, %v889
  %v1454 = vpack.c.b16 %v894, %v890
  %v1455 = vpack.c.b16 %v895, %v891
  %v1456 = vpack.c.b16 %v900, %v896
  %v1457 = vpack.c.b16 %v901, %v897
  %v1458 = vpack.c.b16 %v902, %v898
  %v1459 = vpack.c.b16 %v903, %v899
  %v1460 = vpack.c.b16 %v908, %v904
  %v1461 = vpack.c.b16 %v909, %v905
  %v1462 = vpack.c.b16 %v910, %v906
  %v1463 = vpack.c.b16 %v911, %v907
  %v1464 = vpack.c.b16 %v916, %v912
  %v1465 = vpack.c.b16 %v917, %v913
  %v1466 = vpack.c.b16 %v918, %v914
  %v1467 = vpack.c.b16 %v919, %v915
  %v1468 = vpack.c.b16 %v924, %v920
  %v1469 = vpack.c.b16 %v925, %v921
  %v1470 = vpack.c.b16 %v926, %v922
  %v1471 = vpack.c.b16 %v927, %v923
  %v1472 = vpack.c.b16 %v932, %v928
  %v1473 = vpack.c.b16 %v933, %v929
  %v1474 = vpack.c.b16 %v934, %v930
  %v1475 = vpack.c.b16 %v935, %v931
  %v1476 = vpack.c.b16 %v940, %v936
  %v1477 = vpack.c.b16 %v941, %v937
  %v1478 = vpack.c.b16 %v942, %v938
  %v1479 = vpack.c.b16 %v943, %v939
  %v1480 = vpack.c.b16 %v948, %v944
  %v1481 = vpack.c.b16 %v949, %v945
  %v1482 = vpack.c.b16 %v950, %v946
  %v1483 = vpack.c.b16 %v951, %v947
  %v1484 = vpack.c.b16 %v956, %v952
  %v1485 = vpack.c.b16 %v957, %v953
  %v1486 = vpack.c.b16 %v958, %v954
  %v1487 = vpack.c.b16 %v959, %v955
  %v1488 = vpack.c.b16 %v964, %v960
  %v1489 = vpack.c.b16 %v965, %v961
  %v1490 = vpack.c.b16 %v966, %v962
  %v1491 = vpack.c.b16 %v967, %v963
  %v1492 = vpack.c.b16 %v972, %v968
  %v1493 = vpack.c.b16 %v973, %v969
  %v1494 = vpack.c.b16 %v974, %v970
  %v1495 = vpack.c.b16 %v975, %v971
  %v1496 = vpack.c.b16 %v980, %v976
  %v1497 = vpack.c.b16 %v981, %v977
  %v1498 = vpack.c.b16 %v982, %v978
  %v1499 = vpack.c.b16 %v983, %v979
  %v1500 = vpack.c.b16 %v988, %v984
  %v1501 = vpack.c.b16 %v989, %v985
  %v1502 = vpack.c.b16 %v990, %v986
  %v1503 = vpack.c.b16 %v991, %v987
  %v1504 = vpack.c.b16 %v996, %v992
  %v1505 = vpack.c.b16 %v997, %v993
  %v1506 = vpack.c.b16 %v998, %v994
  %v1507 = vpack.c.b16 %v999, %v995
  %v1508 = vpack.c.b16 %v1004, %v1000
  %v1509 = vpack.c.b16 %v1005, %v1001
  %v1510 = vpack.c.b16 %v1006, %v1002
  %v1511 = vpack.c.b16 %v1007, %v1003
  %v1512 = vpack.c.b16 %v1012, %v1008
  %v1513 = vpack.c.b16 %v1013, %v1009
  %v1514 = vpack.c.b16 %v1014, %v1010
  %v1515 = vpack.c.b16 %v1015, %v1011
  %v1516 = vpack.c.b16 %v1020, %v1016
  %v1517 = vpack.c.b16 %v1021, %v1017
  %v1518 = vpack.c.b16 %v1022, %v1018
  %v1519 = vpack.c.b16 %v1023, %v1019
  %v1520 = vpack.c.b16 %v1028, %v1024
  %v1521 = vpack.c.b16 %v1029, %v1025
  %v1522 = vpack.c.b16 %v1030, %v1026
  %v1523 = vpack.c.b16 %v1031, %v1027
  %v1524 = vpack.c.b16 %v1036, %v1032
  %v1525 = vpack.c.b16 %v1037, %v1033
  %v1526 = vpack.c.b16 %v1038, %v1034
  %v1527 = vpack.c.b16 %v1039, %v1035
  %v1528 = vpack.c.b16 %v1044, %v1040
  %v1529 = vpack.c.b16 %v1045, %v1041
  %v1530 = vpack.c.b16 %v1046, %v1042
  %v1531 = vpack.c.b16 %v1047, %v1043
  %v1532 = vpack.c.b16 %v1052, %v1048
  %v1533 = vpack.c.b16 %v1053, %v1049
  %v1534 = vpack.c.b16 %v1054, %v1050
  %v1535 = vpack.c.b16 %v1055, %v1051
  %v1536 = vpack.c.b16 %v1060, %v1056
  %v1537 = vpack.c.b16 %v1061, %v1057
  %v1538 = vpack.c.b16 %v1062, %v1058
  %v1539 = vpack.c.b16 %v1063, %v1059
  %v1540 = vpack.c.b16 %v1068, %v1064
  %v1541 = vpack.c.b16 %v1069, %v1065
  %v1542 = vpack.c.b16 %v1070, %v1066
  %v1543 = vpack.c.b16 %v1071, %v1067
  %v1544 = vpack.c.b16 %v1076, %v1072
  %v1545 = vpack.c.b16 %v1077, %v1073
  %v1546 = vpack.c.b16 %v1078, %v1074
  %v1547 = vpack.c.b16 %v1079, %v1075
  %v1548 = vpack.c.b16 %v1084, %v1080
  %v1549 = vpack.c.b16 %v1085, %v1081
  %v1550 = vpack.c.b16 %v1086, %v1082
  %v1551 = vpack.c.b16 %v1087, %v1083
  %v1552 = vpack.c.b16 %v1092, %v1088
  %v1553 = vpack.c.b16 %v1093, %v1089
  %v1554 = vpack.c.b16 %v1094, %v1090
  %v1555 = vpack.c.b16 %v1095, %v1091
  %v1556 = vpack.c.b16 %v1100, %v1096
  %v1557 = vpack.c.b16 %v1101, %v1097
  %v1558 = vpack.c.b16 %v1102, %v1098
  %v1559 = vpack.c.b16 %v1103, %v1099
  %v1560 = vpack.c.b16 %v1108, %v1104
  %v1561 = vpack.c.b16 %v1109, %v1105
  %v1562 = vpack.c.b16 %v1110, %v1106
  %v1563 = vpack.c.b16 %v1111, %v1107
  %v1564 = vpack.c.b16 %v1116, %v1112
  %v1565 = vpack.c.b16 %v1117, %v1113
  %v1566 = vpack.c.b16 %v1118, %v1114
  %v1567 = vpack.c.b16 %v1119, %v1115
  %v1568 = vpack.c.b16 %v1124, %v1120
  %v1569 = vpack.c.b16 %v1125, %v1121
  %v1570 = vpack.c.b16 %v1126, %v1122
  %v1571 = vpack.c.b16 %v1127, %v1123
  %v1572 = vpack.c.b16 %v1132, %v1128
  %v1573 = vpack.c.b16 %v1133, %v1129
  %v1574 = vpack.c.b16 %v1134, %v1130
  %v1575 = vpack.c.b16 %v1135, %v1131
  %v1576 = vpack.c.b16 %v1140, %v1136
  %v1577 = vpack.c.b16 %v1141, %v1137
  %v1578 = vpack.c.b16 %v1142, %v1138
  %v1579 = vpack.c.b16 %v1143, %v1139
  %v1580 = vpack.c.b16 %v1148, %v1144
  %v1581 = vpack.c.b16 %v1149, %v1145
  %v1582 = vpack.c.b16 %v1150, %v1146
  %v1583 = vpack.c.b16 %v1151, %v1147
  %v1584 = vpack.c.b16 %v1156, %v1152
  %v1585 = vpack.c.b16 %v1157, %v1153
  %v1586 = vpack.c.b16 %v1158, %v1154
  %v1587 = vpack.c.b16 %v1159, %v1155
  %v1588 = vpack.c.b16 %v1164, %v1160
  %v1589 = vpack.c.b16 %v1165, %v1161
  %v1590 = vpack.c.b16 %v1166, %v1162
  %v1591 = vpack.c.b16 %v1167, %v1163
  %v1592 = vpack.c.b16 %v1172, %v1168
  %v1593 = vpack.c.b16 %v1173, %v1169
  %v1594 = vpack.c.b16 %v1174, %v1170
  %v1595 = vpack.c.b16 %v1175, %v1171
  %v1596 = vpack.c.b16 %v1180, %v1176
  %v1597 = vpack.c.b16 %v1181, %v1177
  %v1598 = vpack.c.b16 %v1182, %v1178
  %v1599 = vpack.c.b16 %v1183, %v1179
  %v1600 = vpack.c.b16 %v1188, %v1184
  %v1601 = vpack.c.b16 %v1189, %v1185
  %v1602 = vpack.c.b16 %v1190, %v1186
  %v1603 = vpack.c.b16 %v1191, %v1187
  %v1604 = vpack.c.b16 %v1196, %v1192
  %v1605 = vpack.c.b16 %v1197, %v1193
  %v1606 = vpack.c.b16 %v1198, %v1194
  %v1607 = vpack.c.b16 %v1199, %v1195
  %v1608 = vpack.c.b16 %v1204, %v1200
  %v1609 = vpack.c.b16 %v1205, %v1201
  %v1610 = vpack.c.b16 %v1206, %v1202
  %v1611 = vpack.c.b16 %v1207, %v1203
  %v1612 = vpack.c.b16 %v1212, %v1208
  %v1613 = vpack.c.b16 %v1213, %v1209
  %v1614 = vpack.c.b16 %v1214, %v1210
  %v1615 = vpack.c.b16 %v1215, %v1211
  %v1616 = vpack.c.b16 %v1220, %v1216
  %v1617 = vpack.c.b16 %v1221, %v1217
  %v1618 = vpack.c.b16 %v1222, %v1218
  %v1619 = vpack.c.b16 %v1223, %v1219
  %v1620 = vpack.c.b16 %v1228, %v1224
  %v1621 = vpack.c.b16 %v1229, %v1225
  %v1622 = vpack.c.b16 %v1230, %v1226
  %v1623 = vpack.c.b16 %v1231, %v1227
  %v1624 = vpack.c.b16 %v1236, %v1232
  %v1625 = vpack.c.b16 %v1237, %v1233
  %v1626 = vpack.c.b16 %v1238, %v1234
  %v1627 = vpack.c.b16 %v1239, %v1235
  %v1628 = vpack.c.b16 %v1244, %v1240
  %v1629 = vpack.c.b16 %v1245, %v1241
  %v1630 = vpack.c.b16 %v1246, %v1242
  %v1631 = vpack.c.b16 %v1247, %v1243
  %v1632 = vpack.c.b16 %v1252, %v1248
  %v1633 = vpack.c.b16 %v1253, %v1249
  %v1634 = vpack.c.b16 %v1254, %v1250
  %v1635 = vpack.c.b16 %v1255, %v1251
  %v1636 = vpack.c.b16 %v1260, %v1256
  %v1637 = vpack.c.b16 %v1261, %v1257
  %v1638 = vpack.c.b16 %v1262, %v1258
  %v1639 = vpack.c.b16 %v1263, %v1259
  %v1640 = vpack.c.b16 %v1268, %v1264
  %v1641 = vpack.c.b16 %v1269, %v1265
  %v1642 = vpack.c.b16 %v1270, %v1266
  %v1643 = vpack.c.b16 %v1271, %v1267
  %v1644 = vpack.c.b16 %v1276, %v1272
  %v1645 = vpack.c.b16 %v1277, %v1273
  %v1646 = vpack.c.b16 %v1278, %v1274
  %v1647 = vpack.c.b16 %v1279, %v1275
  %v1648 = vpack.c.b16 %v1284, %v1280
  %v1649 = vpack.c.b16 %v1285, %v1281
  %v1650 = vpack.c.b16 %v1286, %v1282
  %v1651 = vpack.c.b16 %v1287, %v1283
  %v1652 = vpack.c.b16 %v1292, %v1288
  %v1653 = vpack.c.b16 %v1293, %v1289
  %v1654 = vpack.c.b16 %v1294, %v1290
  %v1655 = vpack.c.b16 %v1295, %v1291
  %v1656 = vpack.c.b16 %v1300, %v1296
  %v1657 = vpack.c.b16 %v1301, %v1297
  %v1658 = vpack.c.b16 %v1302, %v1298
  %v1659 = vpack.c.b16 %v1303, %v1299
  %v1660 = vpack.c.b16 %v1308, %v1304
  %v1661 = vpack.c.b16 %v1309, %v1305
  %v1662 = vpack.c.b16 %v1310, %v1306
  %v1663 = vpack.c.b16 %v1311, %v1307
  %v1664 = vpack.c.b16 %v1316, %v1312
  %v1665 = vpack.c.b16 %v1317, %v1313
  %v1666 = vpack.c.b16 %v1318, %v1314
  %v1667 = vpack.c.b16 %v1319, %v1315
  %v1668 = vpack.c.b16 %v1324, %v1320
  %v1669 = vpack.c.b16 %v1325, %v1321
  %v1670 = vpack.c.b16 %v1326, %v1322
  %v1671 = vpack.c.b16 %v1327, %v1323
  %v1672 = vpack.c.b16 %v1332, %v1328
  %v1673 = vpack.c.b16 %v1333, %v1329
  %v1674 = vpack.c.b16 %v1334, %v1330
  %v1675 = vpack.c.b16 %v1335, %v1331
  %v1676 = vpack.c.b16 %v1340, %v1336
  %v1677 = vpack.c.b16 %v1341, %v1337
  %v1678 = vpack.c.b16 %v1342, %v1338
  %v1679 = vpack.c.b16 %v1343, %v1339
  %v1680 = vpack.c.b16 %v1348, %v1344
  %v1681 = vpack.c.b16 %v1349, %v1345
  %v1682 = vpack.c.b16 %v1350, %v1346
  %v1683 = vpack.c.b16 %v1351, %v1347
  %v1684 = vpack.c.b16 %v1356, %v1352
  %v1685 = vpack.c.b16 %v1357, %v1353
  %v1686 = vpack.c.b16 %v1358, %v1354
  %v1687 = vpack.c.b16 %v1359, %v1355
  %v1688 = vpack.c.b16 %v1364, %v1360
  %v1689 = vpack.c.b16 %v1365, %v1361
  %v1690 = vpack.c.b16 %v1366, %v1362
  %v1691 = vpack.c.b16 %v1367, %v1363
  %v1692 = vpack.c.b16 %v1372, %v1368
  %v1693 = vpack.c.b16 %v1373, %v1369
  %v1694 = vpack.c.b16 %v1374, %v1370
  %v1695 = vpack.c.b16 %v1375, %v1371
  %2016 = vmatpush.bf16.msra.mxu0 %v1404
  %2017 = vmatpush.bf16.msra.mxu0 %v1400
  %2018 = vmatpush.bf16.msra.mxu0 %v1396
  %2019 = vmatpush.bf16.msra.mxu0 %v1392
  %2020 = vmatpush.bf16.msra.mxu0 %v1388
  %2021 = vmatpush.bf16.msra.mxu0 %v1384
  %2022 = vmatpush.bf16.msra.mxu0 %v1380
  %2023 = vmatpush.bf16.msra.mxu0 %v1376
  %2024 = vmatmul.bf16.gmra.mxu0 %v396
  %v2025 = vpop.f32.mrf.mxu0
  %v2026 = vadd.f32 %v358, %v2025
  %v2027 = vpop.f32.mrf.mxu0
  %v2028 = vadd.f32 %v358, %v2027
  %2029 = vdwg.mxu0
  %2030 = vmatpush.bf16.msra.mxu0 %v1436
  %2031 = vmatpush.bf16.msra.mxu0 %v1432
  %2032 = vmatpush.bf16.msra.mxu0 %v1428
  %2033 = vmatpush.bf16.msra.mxu0 %v1424
  %2034 = vmatpush.bf16.msra.mxu0 %v1420
  %2035 = vmatpush.bf16.msra.mxu0 %v1416
  %2036 = vmatpush.bf16.msra.mxu0 %v1412
  %2037 = vmatpush.bf16.msra.mxu0 %v1408
  %2038 = vmatmul.bf16.gmra.mxu0 %v397
  %v2039 = vpop.f32.mrf.mxu0
  %v2040 = vadd.f32 %v2026, %v2039
  %v2041 = vpop.f32.mrf.mxu0
  %v2042 = vadd.f32 %v2028, %v2041
  %2043 = vdwg.mxu0
  %2044 = vmatpush.bf16.msra.mxu0 %v1468
  %2045 = vmatpush.bf16.msra.mxu0 %v1464
  %2046 = vmatpush.bf16.msra.mxu0 %v1460
  %2047 = vmatpush.bf16.msra.mxu0 %v1456
  %2048 = vmatpush.bf16.msra.mxu0 %v1452
  %2049 = vmatpush.bf16.msra.mxu0 %v1448
  %2050 = vmatpush.bf16.msra.mxu0 %v1444
  %2051 = vmatpush.bf16.msra.mxu0 %v1440
  %2052 = vmatmul.bf16.gmra.mxu0 %v398
  %v2053 = vpop.f32.mrf.mxu0
  %v2054 = vadd.f32 %v2040, %v2053
  %v2055 = vpop.f32.mrf.mxu0
  %v2056 = vadd.f32 %v2042, %v2055
  %2057 = vdwg.mxu0
  %2058 = vmatpush.bf16.msra.mxu0 %v1500
  %2059 = vmatpush.bf16.msra.mxu0 %v1496
  %2060 = vmatpush.bf16.msra.mxu0 %v1492
  %2061 = vmatpush.bf16.msra.mxu0 %v1488
  %2062 = vmatpush.bf16.msra.mxu0 %v1484
  %2063 = vmatpush.bf16.msra.mxu0 %v1480
  %2064 = vmatpush.bf16.msra.mxu0 %v1476
  %2065 = vmatpush.bf16.msra.mxu0 %v1472
  %2066 = vmatmul.bf16.gmra.mxu0 %v399
  %v2067 = vpop.f32.mrf.mxu0
  %v2068 = vadd.f32 %v2054, %v2067
  %v2069 = vpop.f32.mrf.mxu0
  %v2070 = vadd.f32 %v2056, %v2069
  %2071 = vdwg.mxu0
  %2072 = vmatpush.bf16.msra.mxu0 %v1532
  %2073 = vmatpush.bf16.msra.mxu0 %v1528
  %2074 = vmatpush.bf16.msra.mxu0 %v1524
  %2075 = vmatpush.bf16.msra.mxu0 %v1520
  %2076 = vmatpush.bf16.msra.mxu0 %v1516
  %2077 = vmatpush.bf16.msra.mxu0 %v1512
  %2078 = vmatpush.bf16.msra.mxu0 %v1508
  %2079 = vmatpush.bf16.msra.mxu0 %v1504
  %2080 = vmatmul.bf16.gmra.mxu0 %v400
  %v2081 = vpop.f32.mrf.mxu0
  %v2082 = vadd.f32 %v2068, %v2081
  %v2083 = vpop.f32.mrf.mxu0
  %v2084 = vadd.f32 %v2070, %v2083
  %2085 = vdwg.mxu0
  %2086 = vmatpush.bf16.msra.mxu0 %v1564
  %2087 = vmatpush.bf16.msra.mxu0 %v1560
  %2088 = vmatpush.bf16.msra.mxu0 %v1556
  %2089 = vmatpush.bf16.msra.mxu0 %v1552
  %2090 = vmatpush.bf16.msra.mxu0 %v1548
  %2091 = vmatpush.bf16.msra.mxu0 %v1544
  %2092 = vmatpush.bf16.msra.mxu0 %v1540
  %2093 = vmatpush.bf16.msra.mxu0 %v1536
  %2094 = vmatmul.bf16.gmra.mxu0 %v401
  %v2095 = vpop.f32.mrf.mxu0
  %v2096 = vadd.f32 %v2082, %v2095
  %v2097 = vpop.f32.mrf.mxu0
  %v2098 = vadd.f32 %v2084, %v2097
  %2099 = vdwg.mxu0
  %2100 = vmatpush.bf16.msra.mxu0 %v1596
  %2101 = vmatpush.bf16.msra.mxu0 %v1592
  %2102 = vmatpush.bf16.msra.mxu0 %v1588
  %2103 = vmatpush.bf16.msra.mxu0 %v1584
  %2104 = vmatpush.bf16.msra.mxu0 %v1580
  %2105 = vmatpush.bf16.msra.mxu0 %v1576
  %2106 = vmatpush.bf16.msra.mxu0 %v1572
  %2107 = vmatpush.bf16.msra.mxu0 %v1568
  %2108 = vmatmul.bf16.gmra.mxu0 %v402
  %v2109 = vpop.f32.mrf.mxu0
  %v2110 = vadd.f32 %v2096, %v2109
  %v2111 = vpop.f32.mrf.mxu0
  %v2112 = vadd.f32 %v2098, %v2111
  %2113 = vdwg.mxu0
  %2114 = vmatpush.bf16.msra.mxu0 %v1628
  %2115 = vmatpush.bf16.msra.mxu0 %v1624
  %2116 = vmatpush.bf16.msra.mxu0 %v1620
  %2117 = vmatpush.bf16.msra.mxu0 %v1616
  %2118 = vmatpush.bf16.msra.mxu0 %v1612
  %2119 = vmatpush.bf16.msra.mxu0 %v1608
  %2120 = vmatpush.bf16.msra.mxu0 %v1604
  %2121 = vmatpush.bf16.msra.mxu0 %v1600
  %2122 = vmatmul.bf16.gmra.mxu0 %v403
  %v2123 = vpop.f32.mrf.mxu0
  %v2124 = vadd.f32 %v2110, %v2123
  %v2125 = vpop.f32.mrf.mxu0
  %v2126 = vadd.f32 %v2112, %v2125
  %2127 = vdwg.mxu0
  %2128 = vmatpush.bf16.msra.mxu0 %v1660
  %2129 = vmatpush.bf16.msra.mxu0 %v1656
  %2130 = vmatpush.bf16.msra.mxu0 %v1652
  %2131 = vmatpush.bf16.msra.mxu0 %v1648
  %2132 = vmatpush.bf16.msra.mxu0 %v1644
  %2133 = vmatpush.bf16.msra.mxu0 %v1640
  %2134 = vmatpush.bf16.msra.mxu0 %v1636
  %2135 = vmatpush.bf16.msra.mxu0 %v1632
  %2136 = vmatmul.bf16.gmra.mxu0 %v404
  %v2137 = vpop.f32.mrf.mxu0
  %v2138 = vadd.f32 %v2124, %v2137
  %v2139 = vpop.f32.mrf.mxu0
  %v2140 = vadd.f32 %v2126, %v2139
  %2141 = vdwg.mxu0
  %2142 = vmatpush.bf16.msra.mxu0 %v1692
  %2143 = vmatpush.bf16.msra.mxu0 %v1688
  %2144 = vmatpush.bf16.msra.mxu0 %v1684
  %2145 = vmatpush.bf16.msra.mxu0 %v1680
  %2146 = vmatpush.bf16.msra.mxu0 %v1676
  %2147 = vmatpush.bf16.msra.mxu0 %v1672
  %2148 = vmatpush.bf16.msra.mxu0 %v1668
  %2149 = vmatpush.bf16.msra.mxu0 %v1664
  %2150 = vmatmul.bf16.gmra.mxu0 %v405
  %v2151 = vpop.f32.mrf.mxu0
  %v2152 = vadd.f32 %v2138, %v2151
  %v2153 = vpop.f32.mrf.mxu0
  %v2154 = vadd.f32 %v2140, %v2153
  %2155 = vdwg.mxu0
  %2156 = vmatpush.bf16.msra.mxu0 %v1405
  %2157 = vmatpush.bf16.msra.mxu0 %v1401
  %2158 = vmatpush.bf16.msra.mxu0 %v1397
  %2159 = vmatpush.bf16.msra.mxu0 %v1393
  %2160 = vmatpush.bf16.msra.mxu0 %v1389
  %2161 = vmatpush.bf16.msra.mxu0 %v1385
  %2162 = vmatpush.bf16.msra.mxu0 %v1381
  %2163 = vmatpush.bf16.msra.mxu0 %v1377
  %2164 = vmatmul.bf16.gmra.mxu0 %v396
  %v2165 = vpop.f32.mrf.mxu0
  %v2166 = vadd.f32 %v359, %v2165
  %v2167 = vpop.f32.mrf.mxu0
  %v2168 = vadd.f32 %v359, %v2167
  %2169 = vdwg.mxu0
  %2170 = vmatpush.bf16.msra.mxu0 %v1437
  %2171 = vmatpush.bf16.msra.mxu0 %v1433
  %2172 = vmatpush.bf16.msra.mxu0 %v1429
  %2173 = vmatpush.bf16.msra.mxu0 %v1425
  %2174 = vmatpush.bf16.msra.mxu0 %v1421
  %2175 = vmatpush.bf16.msra.mxu0 %v1417
  %2176 = vmatpush.bf16.msra.mxu0 %v1413
  %2177 = vmatpush.bf16.msra.mxu0 %v1409
  %2178 = vmatmul.bf16.gmra.mxu0 %v397
  %v2179 = vpop.f32.mrf.mxu0
  %v2180 = vadd.f32 %v2166, %v2179
  %v2181 = vpop.f32.mrf.mxu0
  %v2182 = vadd.f32 %v2168, %v2181
  %2183 = vdwg.mxu0
  %2184 = vmatpush.bf16.msra.mxu0 %v1469
  %2185 = vmatpush.bf16.msra.mxu0 %v1465
  %2186 = vmatpush.bf16.msra.mxu0 %v1461
  %2187 = vmatpush.bf16.msra.mxu0 %v1457
  %2188 = vmatpush.bf16.msra.mxu0 %v1453
  %2189 = vmatpush.bf16.msra.mxu0 %v1449
  %2190 = vmatpush.bf16.msra.mxu0 %v1445
  %2191 = vmatpush.bf16.msra.mxu0 %v1441
  %2192 = vmatmul.bf16.gmra.mxu0 %v398
  %v2193 = vpop.f32.mrf.mxu0
  %v2194 = vadd.f32 %v2180, %v2193
  %v2195 = vpop.f32.mrf.mxu0
  %v2196 = vadd.f32 %v2182, %v2195
  %2197 = vdwg.mxu0
  %2198 = vmatpush.bf16.msra.mxu0 %v1501
  %2199 = vmatpush.bf16.msra.mxu0 %v1497
  %2200 = vmatpush.bf16.msra.mxu0 %v1493
  %2201 = vmatpush.bf16.msra.mxu0 %v1489
  %2202 = vmatpush.bf16.msra.mxu0 %v1485
  %2203 = vmatpush.bf16.msra.mxu0 %v1481
  %2204 = vmatpush.bf16.msra.mxu0 %v1477
  %2205 = vmatpush.bf16.msra.mxu0 %v1473
  %2206 = vmatmul.bf16.gmra.mxu0 %v399
  %v2207 = vpop.f32.mrf.mxu0
  %v2208 = vadd.f32 %v2194, %v2207
  %v2209 = vpop.f32.mrf.mxu0
  %v2210 = vadd.f32 %v2196, %v2209
  %2211 = vdwg.mxu0
  %2212 = vmatpush.bf16.msra.mxu0 %v1533
  %2213 = vmatpush.bf16.msra.mxu0 %v1529
  %2214 = vmatpush.bf16.msra.mxu0 %v1525
  %2215 = vmatpush.bf16.msra.mxu0 %v1521
  %2216 = vmatpush.bf16.msra.mxu0 %v1517
  %2217 = vmatpush.bf16.msra.mxu0 %v1513
  %2218 = vmatpush.bf16.msra.mxu0 %v1509
  %2219 = vmatpush.bf16.msra.mxu0 %v1505
  %2220 = vmatmul.bf16.gmra.mxu0 %v400
  %v2221 = vpop.f32.mrf.mxu0
  %v2222 = vadd.f32 %v2208, %v2221
  %v2223 = vpop.f32.mrf.mxu0
  %v2224 = vadd.f32 %v2210, %v2223
  %2225 = vdwg.mxu0
  %2226 = vmatpush.bf16.msra.mxu0 %v1565
  %2227 = vmatpush.bf16.msra.mxu0 %v1561
  %2228 = vmatpush.bf16.msra.mxu0 %v1557
  %2229 = vmatpush.bf16.msra.mxu0 %v1553
  %2230 = vmatpush.bf16.msra.mxu0 %v1549
  %2231 = vmatpush.bf16.msra.mxu0 %v1545
  %2232 = vmatpush.bf16.msra.mxu0 %v1541
  %2233 = vmatpush.bf16.msra.mxu0 %v1537
  %2234 = vmatmul.bf16.gmra.mxu0 %v401
  %v2235 = vpop.f32.mrf.mxu0
  %v2236 = vadd.f32 %v2222, %v2235
  %v2237 = vpop.f32.mrf.mxu0
  %v2238 = vadd.f32 %v2224, %v2237
  %2239 = vdwg.mxu0
  %2240 = vmatpush.bf16.msra.mxu0 %v1597
  %2241 = vmatpush.bf16.msra.mxu0 %v1593
  %2242 = vmatpush.bf16.msra.mxu0 %v1589
  %2243 = vmatpush.bf16.msra.mxu0 %v1585
  %2244 = vmatpush.bf16.msra.mxu0 %v1581
  %2245 = vmatpush.bf16.msra.mxu0 %v1577
  %2246 = vmatpush.bf16.msra.mxu0 %v1573
  %2247 = vmatpush.bf16.msra.mxu0 %v1569
  %2248 = vmatmul.bf16.gmra.mxu0 %v402
  %v2249 = vpop.f32.mrf.mxu0
  %v2250 = vadd.f32 %v2236, %v2249
  %v2251 = vpop.f32.mrf.mxu0
  %v2252 = vadd.f32 %v2238, %v2251
  %2253 = vdwg.mxu0
  %2254 = vmatpush.bf16.msra.mxu0 %v1629
  %2255 = vmatpush.bf16.msra.mxu0 %v1625
  %2256 = vmatpush.bf16.msra.mxu0 %v1621
  %2257 = vmatpush.bf16.msra.mxu0 %v1617
  %2258 = vmatpush.bf16.msra.mxu0 %v1613
  %2259 = vmatpush.bf16.msra.mxu0 %v1609
  %2260 = vmatpush.bf16.msra.mxu0 %v1605
  %2261 = vmatpush.bf16.msra.mxu0 %v1601
  %2262 = vmatmul.bf16.gmra.mxu0 %v403
  %v2263 = vpop.f32.mrf.mxu0
  %v2264 = vadd.f32 %v2250, %v2263
  %v2265 = vpop.f32.mrf.mxu0
  %v2266 = vadd.f32 %v2252, %v2265
  %2267 = vdwg.mxu0
  %2268 = vmatpush.bf16.msra.mxu0 %v1661
  %2269 = vmatpush.bf16.msra.mxu0 %v1657
  %2270 = vmatpush.bf16.msra.mxu0 %v1653
  %2271 = vmatpush.bf16.msra.mxu0 %v1649
  %2272 = vmatpush.bf16.msra.mxu0 %v1645
  %2273 = vmatpush.bf16.msra.mxu0 %v1641
  %2274 = vmatpush.bf16.msra.mxu0 %v1637
  %2275 = vmatpush.bf16.msra.mxu0 %v1633
  %2276 = vmatmul.bf16.gmra.mxu0 %v404
  %v2277 = vpop.f32.mrf.mxu0
  %v2278 = vadd.f32 %v2264, %v2277
  %v2279 = vpop.f32.mrf.mxu0
  %v2280 = vadd.f32 %v2266, %v2279
  %2281 = vdwg.mxu0
  %2282 = vmatpush.bf16.msra.mxu0 %v1693
  %2283 = vmatpush.bf16.msra.mxu0 %v1689
  %2284 = vmatpush.bf16.msra.mxu0 %v1685
  %2285 = vmatpush.bf16.msra.mxu0 %v1681
  %2286 = vmatpush.bf16.msra.mxu0 %v1677
  %2287 = vmatpush.bf16.msra.mxu0 %v1673
  %2288 = vmatpush.bf16.msra.mxu0 %v1669
  %2289 = vmatpush.bf16.msra.mxu0 %v1665
  %2290 = vmatmul.bf16.gmra.mxu0 %v405
  %v2291 = vpop.f32.mrf.mxu0
  %v2292 = vadd.f32 %v2278, %v2291
  %v2293 = vpop.f32.mrf.mxu0
  %v2294 = vadd.f32 %v2280, %v2293
  %2295 = vdwg.mxu0
  %2296 = vmatpush.bf16.msra.mxu0 %v1406
  %2297 = vmatpush.bf16.msra.mxu0 %v1402
  %2298 = vmatpush.bf16.msra.mxu0 %v1398
  %2299 = vmatpush.bf16.msra.mxu0 %v1394
  %2300 = vmatpush.bf16.msra.mxu0 %v1390
  %2301 = vmatpush.bf16.msra.mxu0 %v1386
  %2302 = vmatpush.bf16.msra.mxu0 %v1382
  %2303 = vmatpush.bf16.msra.mxu0 %v1378
  %2304 = vmatmul.bf16.gmra.mxu0 %v396
  %v2305 = vpop.f32.mrf.mxu0
  %v2306 = vadd.f32 %v360, %v2305
  %v2307 = vpop.f32.mrf.mxu0
  %v2308 = vadd.f32 %v360, %v2307
  %2309 = vdwg.mxu0
  %2310 = vmatpush.bf16.msra.mxu0 %v1438
  %2311 = vmatpush.bf16.msra.mxu0 %v1434
  %2312 = vmatpush.bf16.msra.mxu0 %v1430
  %2313 = vmatpush.bf16.msra.mxu0 %v1426
  %2314 = vmatpush.bf16.msra.mxu0 %v1422
  %2315 = vmatpush.bf16.msra.mxu0 %v1418
  %2316 = vmatpush.bf16.msra.mxu0 %v1414
  %2317 = vmatpush.bf16.msra.mxu0 %v1410
  %2318 = vmatmul.bf16.gmra.mxu0 %v397
  %v2319 = vpop.f32.mrf.mxu0
  %v2320 = vadd.f32 %v2306, %v2319
  %v2321 = vpop.f32.mrf.mxu0
  %v2322 = vadd.f32 %v2308, %v2321
  %2323 = vdwg.mxu0
  %2324 = vmatpush.bf16.msra.mxu0 %v1470
  %2325 = vmatpush.bf16.msra.mxu0 %v1466
  %2326 = vmatpush.bf16.msra.mxu0 %v1462
  %2327 = vmatpush.bf16.msra.mxu0 %v1458
  %2328 = vmatpush.bf16.msra.mxu0 %v1454
  %2329 = vmatpush.bf16.msra.mxu0 %v1450
  %2330 = vmatpush.bf16.msra.mxu0 %v1446
  %2331 = vmatpush.bf16.msra.mxu0 %v1442
  %2332 = vmatmul.bf16.gmra.mxu0 %v398
  %v2333 = vpop.f32.mrf.mxu0
  %v2334 = vadd.f32 %v2320, %v2333
  %v2335 = vpop.f32.mrf.mxu0
  %v2336 = vadd.f32 %v2322, %v2335
  %2337 = vdwg.mxu0
  %2338 = vmatpush.bf16.msra.mxu0 %v1502
  %2339 = vmatpush.bf16.msra.mxu0 %v1498
  %2340 = vmatpush.bf16.msra.mxu0 %v1494
  %2341 = vmatpush.bf16.msra.mxu0 %v1490
  %2342 = vmatpush.bf16.msra.mxu0 %v1486
  %2343 = vmatpush.bf16.msra.mxu0 %v1482
  %2344 = vmatpush.bf16.msra.mxu0 %v1478
  %2345 = vmatpush.bf16.msra.mxu0 %v1474
  %2346 = vmatmul.bf16.gmra.mxu0 %v399
  %v2347 = vpop.f32.mrf.mxu0
  %v2348 = vadd.f32 %v2334, %v2347
  %v2349 = vpop.f32.mrf.mxu0
  %v2350 = vadd.f32 %v2336, %v2349
  %2351 = vdwg.mxu0
  %2352 = vmatpush.bf16.msra.mxu0 %v1534
  %2353 = vmatpush.bf16.msra.mxu0 %v1530
  %2354 = vmatpush.bf16.msra.mxu0 %v1526
  %2355 = vmatpush.bf16.msra.mxu0 %v1522
  %2356 = vmatpush.bf16.msra.mxu0 %v1518
  %2357 = vmatpush.bf16.msra.mxu0 %v1514
  %2358 = vmatpush.bf16.msra.mxu0 %v1510
  %2359 = vmatpush.bf16.msra.mxu0 %v1506
  %2360 = vmatmul.bf16.gmra.mxu0 %v400
  %v2361 = vpop.f32.mrf.mxu0
  %v2362 = vadd.f32 %v2348, %v2361
  %v2363 = vpop.f32.mrf.mxu0
  %v2364 = vadd.f32 %v2350, %v2363
  %2365 = vdwg.mxu0
  %2366 = vmatpush.bf16.msra.mxu0 %v1566
  %2367 = vmatpush.bf16.msra.mxu0 %v1562
  %2368 = vmatpush.bf16.msra.mxu0 %v1558
  %2369 = vmatpush.bf16.msra.mxu0 %v1554
  %2370 = vmatpush.bf16.msra.mxu0 %v1550
  %2371 = vmatpush.bf16.msra.mxu0 %v1546
  %2372 = vmatpush.bf16.msra.mxu0 %v1542
  %2373 = vmatpush.bf16.msra.mxu0 %v1538
  %2374 = vmatmul.bf16.gmra.mxu0 %v401
  %v2375 = vpop.f32.mrf.mxu0
  %v2376 = vadd.f32 %v2362, %v2375
  %v2377 = vpop.f32.mrf.mxu0
  %v2378 = vadd.f32 %v2364, %v2377
  %2379 = vdwg.mxu0
  %2380 = vmatpush.bf16.msra.mxu0 %v1598
  %2381 = vmatpush.bf16.msra.mxu0 %v1594
  %2382 = vmatpush.bf16.msra.mxu0 %v1590
  %2383 = vmatpush.bf16.msra.mxu0 %v1586
  %2384 = vmatpush.bf16.msra.mxu0 %v1582
  %2385 = vmatpush.bf16.msra.mxu0 %v1578
  %2386 = vmatpush.bf16.msra.mxu0 %v1574
  %2387 = vmatpush.bf16.msra.mxu0 %v1570
  %2388 = vmatmul.bf16.gmra.mxu0 %v402
  %v2389 = vpop.f32.mrf.mxu0
  %v2390 = vadd.f32 %v2376, %v2389
  %v2391 = vpop.f32.mrf.mxu0
  %v2392 = vadd.f32 %v2378, %v2391
  %2393 = vdwg.mxu0
  %2394 = vmatpush.bf16.msra.mxu0 %v1630
  %2395 = vmatpush.bf16.msra.mxu0 %v1626
  %2396 = vmatpush.bf16.msra.mxu0 %v1622
  %2397 = vmatpush.bf16.msra.mxu0 %v1618
  %2398 = vmatpush.bf16.msra.mxu0 %v1614
  %2399 = vmatpush.bf16.msra.mxu0 %v1610
  %2400 = vmatpush.bf16.msra.mxu0 %v1606
  %2401 = vmatpush.bf16.msra.mxu0 %v1602
  %2402 = vmatmul.bf16.gmra.mxu0 %v403
  %v2403 = vpop.f32.mrf.mxu0
  %v2404 = vadd.f32 %v2390, %v2403
  %v2405 = vpop.f32.mrf.mxu0
  %v2406 = vadd.f32 %v2392, %v2405
  %2407 = vdwg.mxu0
  %2408 = vmatpush.bf16.msra.mxu0 %v1662
  %2409 = vmatpush.bf16.msra.mxu0 %v1658
  %2410 = vmatpush.bf16.msra.mxu0 %v1654
  %2411 = vmatpush.bf16.msra.mxu0 %v1650
  %2412 = vmatpush.bf16.msra.mxu0 %v1646
  %2413 = vmatpush.bf16.msra.mxu0 %v1642
  %2414 = vmatpush.bf16.msra.mxu0 %v1638
  %2415 = vmatpush.bf16.msra.mxu0 %v1634
  %2416 = vmatmul.bf16.gmra.mxu0 %v404
  %v2417 = vpop.f32.mrf.mxu0
  %v2418 = vadd.f32 %v2404, %v2417
  %v2419 = vpop.f32.mrf.mxu0
  %v2420 = vadd.f32 %v2406, %v2419
  %2421 = vdwg.mxu0
  %2422 = vmatpush.bf16.msra.mxu0 %v1694
  %2423 = vmatpush.bf16.msra.mxu0 %v1690
  %2424 = vmatpush.bf16.msra.mxu0 %v1686
  %2425 = vmatpush.bf16.msra.mxu0 %v1682
  %2426 = vmatpush.bf16.msra.mxu0 %v1678
  %2427 = vmatpush.bf16.msra.mxu0 %v1674
  %2428 = vmatpush.bf16.msra.mxu0 %v1670
  %2429 = vmatpush.bf16.msra.mxu0 %v1666
  %2430 = vmatmul.bf16.gmra.mxu0 %v405
  %v2431 = vpop.f32.mrf.mxu0
  %v2432 = vadd.f32 %v2418, %v2431
  %v2433 = vpop.f32.mrf.mxu0
  %v2434 = vadd.f32 %v2420, %v2433
  %2435 = vdwg.mxu0
  %2436 = vmatpush.bf16.msra.mxu0 %v1407
  %2437 = vmatpush.bf16.msra.mxu0 %v1403
  %2438 = vmatpush.bf16.msra.mxu0 %v1399
  %2439 = vmatpush.bf16.msra.mxu0 %v1395
  %2440 = vmatpush.bf16.msra.mxu0 %v1391
  %2441 = vmatpush.bf16.msra.mxu0 %v1387
  %2442 = vmatpush.bf16.msra.mxu0 %v1383
  %2443 = vmatpush.bf16.msra.mxu0 %v1379
  %2444 = vmatmul.bf16.gmra.mxu0 %v396
  %v2445 = vpop.f32.mrf.mxu0
  %v2446 = vadd.f32 %v361, %v2445
  %v2447 = vpop.f32.mrf.mxu0
  %v2448 = vadd.f32 %v361, %v2447
  %2449 = vdwg.mxu0
  %2450 = vmatpush.bf16.msra.mxu0 %v1439
  %2451 = vmatpush.bf16.msra.mxu0 %v1435
  %2452 = vmatpush.bf16.msra.mxu0 %v1431
  %2453 = vmatpush.bf16.msra.mxu0 %v1427
  %2454 = vmatpush.bf16.msra.mxu0 %v1423
  %2455 = vmatpush.bf16.msra.mxu0 %v1419
  %2456 = vmatpush.bf16.msra.mxu0 %v1415
  %2457 = vmatpush.bf16.msra.mxu0 %v1411
  %2458 = vmatmul.bf16.gmra.mxu0 %v397
  %v2459 = vpop.f32.mrf.mxu0
  %v2460 = vadd.f32 %v2446, %v2459
  %v2461 = vpop.f32.mrf.mxu0
  %v2462 = vadd.f32 %v2448, %v2461
  %2463 = vdwg.mxu0
  %2464 = vmatpush.bf16.msra.mxu0 %v1471
  %2465 = vmatpush.bf16.msra.mxu0 %v1467
  %2466 = vmatpush.bf16.msra.mxu0 %v1463
  %2467 = vmatpush.bf16.msra.mxu0 %v1459
  %2468 = vmatpush.bf16.msra.mxu0 %v1455
  %2469 = vmatpush.bf16.msra.mxu0 %v1451
  %2470 = vmatpush.bf16.msra.mxu0 %v1447
  %2471 = vmatpush.bf16.msra.mxu0 %v1443
  %2472 = vmatmul.bf16.gmra.mxu0 %v398
  %v2473 = vpop.f32.mrf.mxu0
  %v2474 = vadd.f32 %v2460, %v2473
  %v2475 = vpop.f32.mrf.mxu0
  %v2476 = vadd.f32 %v2462, %v2475
  %2477 = vdwg.mxu0
  %2478 = vmatpush.bf16.msra.mxu0 %v1503
  %2479 = vmatpush.bf16.msra.mxu0 %v1499
  %2480 = vmatpush.bf16.msra.mxu0 %v1495
  %2481 = vmatpush.bf16.msra.mxu0 %v1491
  %2482 = vmatpush.bf16.msra.mxu0 %v1487
  %2483 = vmatpush.bf16.msra.mxu0 %v1483
  %2484 = vmatpush.bf16.msra.mxu0 %v1479
  %2485 = vmatpush.bf16.msra.mxu0 %v1475
  %2486 = vmatmul.bf16.gmra.mxu0 %v399
  %v2487 = vpop.f32.mrf.mxu0
  %v2488 = vadd.f32 %v2474, %v2487
  %v2489 = vpop.f32.mrf.mxu0
  %v2490 = vadd.f32 %v2476, %v2489
  %2491 = vdwg.mxu0
  %2492 = vmatpush.bf16.msra.mxu0 %v1535
  %2493 = vmatpush.bf16.msra.mxu0 %v1531
  %2494 = vmatpush.bf16.msra.mxu0 %v1527
  %2495 = vmatpush.bf16.msra.mxu0 %v1523
  %2496 = vmatpush.bf16.msra.mxu0 %v1519
  %2497 = vmatpush.bf16.msra.mxu0 %v1515
  %2498 = vmatpush.bf16.msra.mxu0 %v1511
  %2499 = vmatpush.bf16.msra.mxu0 %v1507
  %2500 = vmatmul.bf16.gmra.mxu0 %v400
  %v2501 = vpop.f32.mrf.mxu0
  %v2502 = vadd.f32 %v2488, %v2501
  %v2503 = vpop.f32.mrf.mxu0
  %v2504 = vadd.f32 %v2490, %v2503
  %2505 = vdwg.mxu0
  %2506 = vmatpush.bf16.msra.mxu0 %v1567
  %2507 = vmatpush.bf16.msra.mxu0 %v1563
  %2508 = vmatpush.bf16.msra.mxu0 %v1559
  %2509 = vmatpush.bf16.msra.mxu0 %v1555
  %2510 = vmatpush.bf16.msra.mxu0 %v1551
  %2511 = vmatpush.bf16.msra.mxu0 %v1547
  %2512 = vmatpush.bf16.msra.mxu0 %v1543
  %2513 = vmatpush.bf16.msra.mxu0 %v1539
  %2514 = vmatmul.bf16.gmra.mxu0 %v401
  %v2515 = vpop.f32.mrf.mxu0
  %v2516 = vadd.f32 %v2502, %v2515
  %v2517 = vpop.f32.mrf.mxu0
  %v2518 = vadd.f32 %v2504, %v2517
  %2519 = vdwg.mxu0
  %2520 = vmatpush.bf16.msra.mxu0 %v1599
  %2521 = vmatpush.bf16.msra.mxu0 %v1595
  %2522 = vmatpush.bf16.msra.mxu0 %v1591
  %2523 = vmatpush.bf16.msra.mxu0 %v1587
  %2524 = vmatpush.bf16.msra.mxu0 %v1583
  %2525 = vmatpush.bf16.msra.mxu0 %v1579
  %2526 = vmatpush.bf16.msra.mxu0 %v1575
  %2527 = vmatpush.bf16.msra.mxu0 %v1571
  %2528 = vmatmul.bf16.gmra.mxu0 %v402
  %v2529 = vpop.f32.mrf.mxu0
  %v2530 = vadd.f32 %v2516, %v2529
  %v2531 = vpop.f32.mrf.mxu0
  %v2532 = vadd.f32 %v2518, %v2531
  %2533 = vdwg.mxu0
  %2534 = vmatpush.bf16.msra.mxu0 %v1631
  %2535 = vmatpush.bf16.msra.mxu0 %v1627
  %2536 = vmatpush.bf16.msra.mxu0 %v1623
  %2537 = vmatpush.bf16.msra.mxu0 %v1619
  %2538 = vmatpush.bf16.msra.mxu0 %v1615
  %2539 = vmatpush.bf16.msra.mxu0 %v1611
  %2540 = vmatpush.bf16.msra.mxu0 %v1607
  %2541 = vmatpush.bf16.msra.mxu0 %v1603
  %2542 = vmatmul.bf16.gmra.mxu0 %v403
  %v2543 = vpop.f32.mrf.mxu0
  %v2544 = vadd.f32 %v2530, %v2543
  %v2545 = vpop.f32.mrf.mxu0
  %v2546 = vadd.f32 %v2532, %v2545
  %2547 = vdwg.mxu0
  %2548 = vmatpush.bf16.msra.mxu0 %v1663
  %2549 = vmatpush.bf16.msra.mxu0 %v1659
  %2550 = vmatpush.bf16.msra.mxu0 %v1655
  %2551 = vmatpush.bf16.msra.mxu0 %v1651
  %2552 = vmatpush.bf16.msra.mxu0 %v1647
  %2553 = vmatpush.bf16.msra.mxu0 %v1643
  %2554 = vmatpush.bf16.msra.mxu0 %v1639
  %2555 = vmatpush.bf16.msra.mxu0 %v1635
  %2556 = vmatmul.bf16.gmra.mxu0 %v404
  %v2557 = vpop.f32.mrf.mxu0
  %v2558 = vadd.f32 %v2544, %v2557
  %v2559 = vpop.f32.mrf.mxu0
  %v2560 = vadd.f32 %v2546, %v2559
  %2561 = vdwg.mxu0
  %2562 = vmatpush.bf16.msra.mxu0 %v1695
  %2563 = vmatpush.bf16.msra.mxu0 %v1691
  %2564 = vmatpush.bf16.msra.mxu0 %v1687
  %2565 = vmatpush.bf16.msra.mxu0 %v1683
  %2566 = vmatpush.bf16.msra.mxu0 %v1679
  %2567 = vmatpush.bf16.msra.mxu0 %v1675
  %2568 = vmatpush.bf16.msra.mxu0 %v1671
  %2569 = vmatpush.bf16.msra.mxu0 %v1667
  %2570 = vmatmul.bf16.gmra.mxu0 %v405
  %v2571 = vpop.f32.mrf.mxu0
  %v2572 = vadd.f32 %v2558, %v2571
  %v2573 = vpop.f32.mrf.mxu0
  %v2574 = vadd.f32 %v2560, %v2573
  %2575 = vdwg.mxu0
  %v2576 = vtanh.pop %v2152
  %v2577 = vtanh.pop %v2292
  %v2578 = vtanh.pop %v2432
  %v2579 = vtanh.pop %v2572
  %v2580 = vtanh.pop %v2154
  %v2581 = vtanh.pop %v2294
  %v2582 = vtanh.pop %v2434
  %v2583 = vtanh.pop %v2574
  %v2584 = vpack.c.bf16 %v2580, %v2576
  %v2585 = vpack.c.bf16 %v2581, %v2577
  %v2586 = vpack.c.bf16 %v2582, %v2578
  %v2587 = vpack.c.bf16 %v2583, %v2579
  %v2588 = vld [vmem:[%s3] sm:$0xff]
  %v2589 = vld [vmem:[%s3 + $0x8] sm:$0xff]
  %v2590 = vld [vmem:[%s3 + $0x10] sm:$0xff]
  %v2591 = vld [vmem:[%s3 + $0x18] sm:$0xff]
  %v2592 = vld [vmem:[%s3 + $0x20] sm:$0xff]
  %v2593 = vld [vmem:[%s3 + $0x28] sm:$0xff]
  %v2594 = vld [vmem:[%s3 + $0x30] sm:$0xff]
  %v2595 = vld [vmem:[%s3 + $0x38] sm:$0xff]
  %v2596 = vld [vmem:[%s3 + $0x40] sm:$0xff]
  %v2597 = vld [vmem:[%s3 + $0x48] sm:$0xff]
  %v2598 = vld [vmem:[%s3 + $0x50] sm:$0xff]
  %v2599 = vld [vmem:[%s3 + $0x58] sm:$0xff]
  %v2600 = vld [vmem:[%s3 + $0x60] sm:$0xff]
  %v2601 = vld [vmem:[%s3 + $0x68] sm:$0xff]
  %v2602 = vld [vmem:[%s3 + $0x70] sm:$0xff]
  %v2603 = vld [vmem:[%s3 + $0x78] sm:$0xff]
  %v2604 = vld [vmem:[%s3 + $0x80] sm:$0xff]
  %v2605 = vld [vmem:[%s3 + $0x88] sm:$0xff]
  %v2606 = vld [vmem:[%s3 + $0x90] sm:$0xff]
  %v2607 = vld [vmem:[%s3 + $0x98] sm:$0xff]
  %v2608 = vld [vmem:[%s3 + $0xa0] sm:$0xff]
  %v2609 = vld [vmem:[%s3 + $0xa8] sm:$0xff]
  %v2610 = vld [vmem:[%s3 + $0xb0] sm:$0xff]
  %v2611 = vld [vmem:[%s3 + $0xb8] sm:$0xff]
  %v2612 = vld [vmem:[%s3 + $0xc0] sm:$0xff]
  %v2613 = vld [vmem:[%s3 + $0xc8] sm:$0xff]
  %v2614 = vld [vmem:[%s3 + $0xd0] sm:$0xff]
  %v2615 = vld [vmem:[%s3 + $0xd8] sm:$0xff]
  %v2616 = vld [vmem:[%s3 + $0xe0] sm:$0xff]
  %v2617 = vld [vmem:[%s3 + $0xe8] sm:$0xff]
  %v2618 = vld [vmem:[%s3 + $0xf0] sm:$0xff]
  %v2619 = vld [vmem:[%s3 + $0xf8] sm:$0xff]
  %v2620 = vld [vmem:[%s3 + $0x100] sm:$0xff]
  %v2621 = vld [vmem:[%s3 + $0x108] sm:$0xff]
  %v2622 = vld [vmem:[%s3 + $0x110] sm:$0xff]
  %v2623 = vld [vmem:[%s3 + $0x118] sm:$0xff]
  %v2624 = vld [vmem:[%s3 + $0x120] sm:$0xff]
  %v2625 = vld [vmem:[%s3 + $0x128] sm:$0xff]
  %v2626 = vld [vmem:[%s3 + $0x130] sm:$0xff]
  %v2627 = vld [vmem:[%s3 + $0x138] sm:$0xff]
  %v2628 = vld [vmem:[%s3 + $0x140] sm:$0xff]
  %v2629 = vld [vmem:[%s3 + $0x148] sm:$0xff]
  %v2630 = vld [vmem:[%s3 + $0x150] sm:$0xff]
  %v2631 = vld [vmem:[%s3 + $0x158] sm:$0xff]
  %v2632 = vld [vmem:[%s3 + $0x160] sm:$0xff]
  %v2633 = vld [vmem:[%s3 + $0x168] sm:$0xff]
  %v2634 = vld [vmem:[%s3 + $0x170] sm:$0xff]
  %v2635 = vld [vmem:[%s3 + $0x178] sm:$0xff]
  %v2636 = vld [vmem:[%s3 + $0x180] sm:$0xff]
  %v2637 = vld [vmem:[%s3 + $0x188] sm:$0xff]
  %v2638 = vld [vmem:[%s3 + $0x190] sm:$0xff]
  %v2639 = vld [vmem:[%s3 + $0x198] sm:$0xff]
  %v2640 = vld [vmem:[%s3 + $0x1a0] sm:$0xff]
  %v2641 = vld [vmem:[%s3 + $0x1a8] sm:$0xff]
  %v2642 = vld [vmem:[%s3 + $0x1b0] sm:$0xff]
  %v2643 = vld [vmem:[%s3 + $0x1b8] sm:$0xff]
  %v2644 = vld [vmem:[%s3 + $0x1c0] sm:$0xff]
  %v2645 = vld [vmem:[%s3 + $0x1c8] sm:$0xff]
  %v2646 = vld [vmem:[%s3 + $0x1d0] sm:$0xff]
  %v2647 = vld [vmem:[%s3 + $0x1d8] sm:$0xff]
  %v2648 = vld [vmem:[%s3 + $0x1e0] sm:$0xff]
  %v2649 = vld [vmem:[%s3 + $0x1e8] sm:$0xff]
  %v2650 = vld [vmem:[%s3 + $0x1f0] sm:$0xff]
  %v2651 = vld [vmem:[%s3 + $0x1f8] sm:$0xff]
  %v2652 = vld [vmem:[%s3 + $0x200] sm:$0xff]
  %v2653 = vld [vmem:[%s3 + $0x208] sm:$0xff]
  %v2654 = vld [vmem:[%s3 + $0x210] sm:$0xff]
  %v2655 = vld [vmem:[%s3 + $0x218] sm:$0xff]
  %v2656 = vld [vmem:[%s3 + $0x220] sm:$0xff]
  %v2657 = vld [vmem:[%s3 + $0x228] sm:$0xff]
  %v2658 = vld [vmem:[%s3 + $0x230] sm:$0xff]
  %v2659 = vld [vmem:[%s3 + $0x238] sm:$0xff]
  %v2660 = vld [vmem:[%s3 + $0x240] sm:$0xff]
  %v2661 = vld [vmem:[%s3 + $0x248] sm:$0xff]
  %v2662 = vld [vmem:[%s3 + $0x250] sm:$0xff]
  %v2663 = vld [vmem:[%s3 + $0x258] sm:$0xff]
  %v2664 = vld [vmem:[%s3 + $0x260] sm:$0xff]
  %v2665 = vld [vmem:[%s3 + $0x268] sm:$0xff]
  %v2666 = vld [vmem:[%s3 + $0x270] sm:$0xff]
  %v2667 = vld [vmem:[%s3 + $0x278] sm:$0xff]
  %v2668 = vld [vmem:[%s3 + $0x280] sm:$0xff]
  %v2669 = vld [vmem:[%s3 + $0x288] sm:$0xff]
  %v2670 = vld [vmem:[%s3 + $0x290] sm:$0xff]
  %v2671 = vld [vmem:[%s3 + $0x298] sm:$0xff]
  %v2672 = vld [vmem:[%s3 + $0x2a0] sm:$0xff]
  %v2673 = vld [vmem:[%s3 + $0x2a8] sm:$0xff]
  %v2674 = vld [vmem:[%s3 + $0x2b0] sm:$0xff]
  %v2675 = vld [vmem:[%s3 + $0x2b8] sm:$0xff]
  %v2676 = vld [vmem:[%s3 + $0x2c0] sm:$0xff]
  %v2677 = vld [vmem:[%s3 + $0x2c8] sm:$0xff]
  %v2678 = vld [vmem:[%s3 + $0x2d0] sm:$0xff]
  %v2679 = vld [vmem:[%s3 + $0x2d8] sm:$0xff]
  %v2680 = vld [vmem:[%s3 + $0x2e0] sm:$0xff]
  %v2681 = vld [vmem:[%s3 + $0x2e8] sm:$0xff]
  %v2682 = vld [vmem:[%s3 + $0x2f0] sm:$0xff]
  %v2683 = vld [vmem:[%s3 + $0x2f8] sm:$0xff]
  %v2684 = vld [vmem:[%s3 + $0x300] sm:$0xff]
  %v2685 = vld [vmem:[%s3 + $0x308] sm:$0xff]
  %v2686 = vld [vmem:[%s3 + $0x310] sm:$0xff]
  %v2687 = vld [vmem:[%s3 + $0x318] sm:$0xff]
  %v2688 = vld [vmem:[%s3 + $0x320] sm:$0xff]
  %v2689 = vld [vmem:[%s3 + $0x328] sm:$0xff]
  %v2690 = vld [vmem:[%s3 + $0x330] sm:$0xff]
  %v2691 = vld [vmem:[%s3 + $0x338] sm:$0xff]
  %v2692 = vld [vmem:[%s3 + $0x340] sm:$0xff]
  %v2693 = vld [vmem:[%s3 + $0x348] sm:$0xff]
  %v2694 = vld [vmem:[%s3 + $0x350] sm:$0xff]
  %v2695 = vld [vmem:[%s3 + $0x358] sm:$0xff]
  %v2696 = vld [vmem:[%s3 + $0x360] sm:$0xff]
  %v2697 = vld [vmem:[%s3 + $0x368] sm:$0xff]
  %v2698 = vld [vmem:[%s3 + $0x370] sm:$0xff]
  %v2699 = vld [vmem:[%s3 + $0x378] sm:$0xff]
  %v2700 = vld [vmem:[%s3 + $0x380] sm:$0xff]
  %v2701 = vld [vmem:[%s3 + $0x388] sm:$0xff]
  %v2702 = vld [vmem:[%s3 + $0x390] sm:$0xff]
  %v2703 = vld [vmem:[%s3 + $0x398] sm:$0xff]
  %v2704 = vld [vmem:[%s3 + $0x3a0] sm:$0xff]
  %v2705 = vld [vmem:[%s3 + $0x3a8] sm:$0xff]
  %v2706 = vld [vmem:[%s3 + $0x3b0] sm:$0xff]
  %v2707 = vld [vmem:[%s3 + $0x3b8] sm:$0xff]
  %v2708 = vld [vmem:[%s3 + $0x3c0] sm:$0xff]
  %v2709 = vld [vmem:[%s3 + $0x3c8] sm:$0xff]
  %v2710 = vld [vmem:[%s3 + $0x3d0] sm:$0xff]
  %v2711 = vld [vmem:[%s3 + $0x3d8] sm:$0xff]
  %v2712 = vld [vmem:[%s3 + $0x3e0] sm:$0xff]
  %v2713 = vld [vmem:[%s3 + $0x3e8] sm:$0xff]
  %v2714 = vld [vmem:[%s3 + $0x3f0] sm:$0xff]
  %v2715 = vld [vmem:[%s3 + $0x3f8] sm:$0xff]
  %v2716 = vld [vmem:[%s4] sm:$0xf]
  %v2718 = vperm.slane %v2716, 0
  %v2719 = vperm.slane %v2716, 1
  %v2720 = vperm.slane %v2716, 2
  %v2721 = vperm.slane %v2716, 3
  %v2854 = vunpack.c.l.b16 %v2588
  %v2855 = vunpack.c.h.b16 %v2588
  %v2856 = vunpack.c.l.b16 %v2589
  %v2857 = vunpack.c.h.b16 %v2589
  %v2858 = vunpack.c.l.b16 %v2590
  %v2859 = vunpack.c.h.b16 %v2590
  %v2860 = vunpack.c.l.b16 %v2591
  %v2861 = vunpack.c.h.b16 %v2591
  %v2862 = vunpack.c.l.b16 %v2592
  %v2863 = vunpack.c.h.b16 %v2592
  %v2864 = vunpack.c.l.b16 %v2593
  %v2865 = vunpack.c.h.b16 %v2593
  %v2866 = vunpack.c.l.b16 %v2594
  %v2867 = vunpack.c.h.b16 %v2594
  %v2868 = vunpack.c.l.b16 %v2595
  %v2869 = vunpack.c.h.b16 %v2595
  %v2870 = vunpack.c.l.b16 %v2596
  %v2871 = vunpack.c.h.b16 %v2596
  %v2872 = vunpack.c.l.b16 %v2597
  %v2873 = vunpack.c.h.b16 %v2597
  %v2874 = vunpack.c.l.b16 %v2598
  %v2875 = vunpack.c.h.b16 %v2598
  %v2876 = vunpack.c.l.b16 %v2599
  %v2877 = vunpack.c.h.b16 %v2599
  %v2878 = vunpack.c.l.b16 %v2600
  %v2879 = vunpack.c.h.b16 %v2600
  %v2880 = vunpack.c.l.b16 %v2601
  %v2881 = vunpack.c.h.b16 %v2601
  %v2882 = vunpack.c.l.b16 %v2602
  %v2883 = vunpack.c.h.b16 %v2602
  %v2884 = vunpack.c.l.b16 %v2603
  %v2885 = vunpack.c.h.b16 %v2603
  %v2886 = vunpack.c.l.b16 %v2604
  %v2887 = vunpack.c.h.b16 %v2604
  %v2888 = vunpack.c.l.b16 %v2605
  %v2889 = vunpack.c.h.b16 %v2605
  %v2890 = vunpack.c.l.b16 %v2606
  %v2891 = vunpack.c.h.b16 %v2606
  %v2892 = vunpack.c.l.b16 %v2607
  %v2893 = vunpack.c.h.b16 %v2607
  %v2894 = vunpack.c.l.b16 %v2608
  %v2895 = vunpack.c.h.b16 %v2608
  %v2896 = vunpack.c.l.b16 %v2609
  %v2897 = vunpack.c.h.b16 %v2609
  %v2898 = vunpack.c.l.b16 %v2610
  %v2899 = vunpack.c.h.b16 %v2610
  %v2900 = vunpack.c.l.b16 %v2611
  %v2901 = vunpack.c.h.b16 %v2611
  %v2902 = vunpack.c.l.b16 %v2612
  %v2903 = vunpack.c.h.b16 %v2612
  %v2904 = vunpack.c.l.b16 %v2613
  %v2905 = vunpack.c.h.b16 %v2613
  %v2906 = vunpack.c.l.b16 %v2614
  %v2907 = vunpack.c.h.b16 %v2614
  %v2908 = vunpack.c.l.b16 %v2615
  %v2909 = vunpack.c.h.b16 %v2615
  %v2910 = vunpack.c.l.b16 %v2616
  %v2911 = vunpack.c.h.b16 %v2616
  %v2912 = vunpack.c.l.b16 %v2617
  %v2913 = vunpack.c.h.b16 %v2617
  %v2914 = vunpack.c.l.b16 %v2618
  %v2915 = vunpack.c.h.b16 %v2618
  %v2916 = vunpack.c.l.b16 %v2619
  %v2917 = vunpack.c.h.b16 %v2619
  %v2918 = vunpack.c.l.b16 %v2620
  %v2919 = vunpack.c.h.b16 %v2620
  %v2920 = vunpack.c.l.b16 %v2621
  %v2921 = vunpack.c.h.b16 %v2621
  %v2922 = vunpack.c.l.b16 %v2622
  %v2923 = vunpack.c.h.b16 %v2622
  %v2924 = vunpack.c.l.b16 %v2623
  %v2925 = vunpack.c.h.b16 %v2623
  %v2926 = vunpack.c.l.b16 %v2624
  %v2927 = vunpack.c.h.b16 %v2624
  %v2928 = vunpack.c.l.b16 %v2625
  %v2929 = vunpack.c.h.b16 %v2625
  %v2930 = vunpack.c.l.b16 %v2626
  %v2931 = vunpack.c.h.b16 %v2626
  %v2932 = vunpack.c.l.b16 %v2627
  %v2933 = vunpack.c.h.b16 %v2627
  %v2934 = vunpack.c.l.b16 %v2628
  %v2935 = vunpack.c.h.b16 %v2628
  %v2936 = vunpack.c.l.b16 %v2629
  %v2937 = vunpack.c.h.b16 %v2629
  %v2938 = vunpack.c.l.b16 %v2630
  %v2939 = vunpack.c.h.b16 %v2630
  %v2940 = vunpack.c.l.b16 %v2631
  %v2941 = vunpack.c.h.b16 %v2631
  %v2942 = vunpack.c.l.b16 %v2632
  %v2943 = vunpack.c.h.b16 %v2632
  %v2944 = vunpack.c.l.b16 %v2633
  %v2945 = vunpack.c.h.b16 %v2633
  %v2946 = vunpack.c.l.b16 %v2634
  %v2947 = vunpack.c.h.b16 %v2634
  %v2948 = vunpack.c.l.b16 %v2635
  %v2949 = vunpack.c.h.b16 %v2635
  %v2950 = vunpack.c.l.b16 %v2636
  %v2951 = vunpack.c.h.b16 %v2636
  %v2952 = vunpack.c.l.b16 %v2637
  %v2953 = vunpack.c.h.b16 %v2637
  %v2954 = vunpack.c.l.b16 %v2638
  %v2955 = vunpack.c.h.b16 %v2638
  %v2956 = vunpack.c.l.b16 %v2639
  %v2957 = vunpack.c.h.b16 %v2639
  %v2958 = vunpack.c.l.b16 %v2640
  %v2959 = vunpack.c.h.b16 %v2640
  %v2960 = vunpack.c.l.b16 %v2641
  %v2961 = vunpack.c.h.b16 %v2641
  %v2962 = vunpack.c.l.b16 %v2642
  %v2963 = vunpack.c.h.b16 %v2642
  %v2964 = vunpack.c.l.b16 %v2643
  %v2965 = vunpack.c.h.b16 %v2643
  %v2966 = vunpack.c.l.b16 %v2644
  %v2967 = vunpack.c.h.b16 %v2644
  %v2968 = vunpack.c.l.b16 %v2645
  %v2969 = vunpack.c.h.b16 %v2645
  %v2970 = vunpack.c.l.b16 %v2646
  %v2971 = vunpack.c.h.b16 %v2646
  %v2972 = vunpack.c.l.b16 %v2647
  %v2973 = vunpack.c.h.b16 %v2647
  %v2974 = vunpack.c.l.b16 %v2648
  %v2975 = vunpack.c.h.b16 %v2648
  %v2976 = vunpack.c.l.b16 %v2649
  %v2977 = vunpack.c.h.b16 %v2649
  %v2978 = vunpack.c.l.b16 %v2650
  %v2979 = vunpack.c.h.b16 %v2650
  %v2980 = vunpack.c.l.b16 %v2651
  %v2981 = vunpack.c.h.b16 %v2651
  %v2982 = vunpack.c.l.b16 %v2652
  %v2983 = vunpack.c.h.b16 %v2652
  %v2984 = vunpack.c.l.b16 %v2653
  %v2985 = vunpack.c.h.b16 %v2653
  %v2986 = vunpack.c.l.b16 %v2654
  %v2987 = vunpack.c.h.b16 %v2654
  %v2988 = vunpack.c.l.b16 %v2655
  %v2989 = vunpack.c.h.b16 %v2655
  %v2990 = vunpack.c.l.b16 %v2656
  %v2991 = vunpack.c.h.b16 %v2656
  %v2992 = vunpack.c.l.b16 %v2657
  %v2993 = vunpack.c.h.b16 %v2657
  %v2994 = vunpack.c.l.b16 %v2658
  %v2995 = vunpack.c.h.b16 %v2658
  %v2996 = vunpack.c.l.b16 %v2659
  %v2997 = vunpack.c.h.b16 %v2659
  %v2998 = vunpack.c.l.b16 %v2660
  %v2999 = vunpack.c.h.b16 %v2660
  %v3000 = vunpack.c.l.b16 %v2661
  %v3001 = vunpack.c.h.b16 %v2661
  %v3002 = vunpack.c.l.b16 %v2662
  %v3003 = vunpack.c.h.b16 %v2662
  %v3004 = vunpack.c.l.b16 %v2663
  %v3005 = vunpack.c.h.b16 %v2663
  %v3006 = vunpack.c.l.b16 %v2664
  %v3007 = vunpack.c.h.b16 %v2664
  %v3008 = vunpack.c.l.b16 %v2665
  %v3009 = vunpack.c.h.b16 %v2665
  %v3010 = vunpack.c.l.b16 %v2666
  %v3011 = vunpack.c.h.b16 %v2666
  %v3012 = vunpack.c.l.b16 %v2667
  %v3013 = vunpack.c.h.b16 %v2667
  %v3014 = vunpack.c.l.b16 %v2668
  %v3015 = vunpack.c.h.b16 %v2668
  %v3016 = vunpack.c.l.b16 %v2669
  %v3017 = vunpack.c.h.b16 %v2669
  %v3018 = vunpack.c.l.b16 %v2670
  %v3019 = vunpack.c.h.b16 %v2670
  %v3020 = vunpack.c.l.b16 %v2671
  %v3021 = vunpack.c.h.b16 %v2671
  %v3022 = vunpack.c.l.b16 %v2672
  %v3023 = vunpack.c.h.b16 %v2672
  %v3024 = vunpack.c.l.b16 %v2673
  %v3025 = vunpack.c.h.b16 %v2673
  %v3026 = vunpack.c.l.b16 %v2674
  %v3027 = vunpack.c.h.b16 %v2674
  %v3028 = vunpack.c.l.b16 %v2675
  %v3029 = vunpack.c.h.b16 %v2675
  %v3030 = vunpack.c.l.b16 %v2676
  %v3031 = vunpack.c.h.b16 %v2676
  %v3032 = vunpack.c.l.b16 %v2677
  %v3033 = vunpack.c.h.b16 %v2677
  %v3034 = vunpack.c.l.b16 %v2678
  %v3035 = vunpack.c.h.b16 %v2678
  %v3036 = vunpack.c.l.b16 %v2679
  %v3037 = vunpack.c.h.b16 %v2679
  %v3038 = vunpack.c.l.b16 %v2680
  %v3039 = vunpack.c.h.b16 %v2680
  %v3040 = vunpack.c.l.b16 %v2681
  %v3041 = vunpack.c.h.b16 %v2681
  %v3042 = vunpack.c.l.b16 %v2682
  %v3043 = vunpack.c.h.b16 %v2682
  %v3044 = vunpack.c.l.b16 %v2683
  %v3045 = vunpack.c.h.b16 %v2683
  %v3046 = vunpack.c.l.b16 %v2684
  %v3047 = vunpack.c.h.b16 %v2684
  %v3048 = vunpack.c.l.b16 %v2685
  %v3049 = vunpack.c.h.b16 %v2685
  %v3050 = vunpack.c.l.b16 %v2686
  %v3051 = vunpack.c.h.b16 %v2686
  %v3052 = vunpack.c.l.b16 %v2687
  %v3053 = vunpack.c.h.b16 %v2687
  %v3054 = vunpack.c.l.b16 %v2688
  %v3055 = vunpack.c.h.b16 %v2688
  %v3056 = vunpack.c.l.b16 %v2689
  %v3057 = vunpack.c.h.b16 %v2689
  %v3058 = vunpack.c.l.b16 %v2690
  %v3059 = vunpack.c.h.b16 %v2690
  %v3060 = vunpack.c.l.b16 %v2691
  %v3061 = vunpack.c.h.b16 %v2691
  %v3062 = vunpack.c.l.b16 %v2692
  %v3063 = vunpack.c.h.b16 %v2692
  %v3064 = vunpack.c.l.b16 %v2693
  %v3065 = vunpack.c.h.b16 %v2693
  %v3066 = vunpack.c.l.b16 %v2694
  %v3067 = vunpack.c.h.b16 %v2694
  %v3068 = vunpack.c.l.b16 %v2695
  %v3069 = vunpack.c.h.b16 %v2695
  %v3070 = vunpack.c.l.b16 %v2696
  %v3071 = vunpack.c.h.b16 %v2696
  %v3072 = vunpack.c.l.b16 %v2697
  %v3073 = vunpack.c.h.b16 %v2697
  %v3074 = vunpack.c.l.b16 %v2698
  %v3075 = vunpack.c.h.b16 %v2698
  %v3076 = vunpack.c.l.b16 %v2699
  %v3077 = vunpack.c.h.b16 %v2699
  %v3078 = vunpack.c.l.b16 %v2700
  %v3079 = vunpack.c.h.b16 %v2700
  %v3080 = vunpack.c.l.b16 %v2701
  %v3081 = vunpack.c.h.b16 %v2701
  %v3082 = vunpack.c.l.b16 %v2702
  %v3083 = vunpack.c.h.b16 %v2702
  %v3084 = vunpack.c.l.b16 %v2703
  %v3085 = vunpack.c.h.b16 %v2703
  %v3086 = vunpack.c.l.b16 %v2704
  %v3087 = vunpack.c.h.b16 %v2704
  %v3088 = vunpack.c.l.b16 %v2705
  %v3089 = vunpack.c.h.b16 %v2705
  %v3090 = vunpack.c.l.b16 %v2706
  %v3091 = vunpack.c.h.b16 %v2706
  %v3092 = vunpack.c.l.b16 %v2707
  %v3093 = vunpack.c.h.b16 %v2707
  %v3094 = vunpack.c.l.b16 %v2708
  %v3095 = vunpack.c.h.b16 %v2708
  %v3096 = vunpack.c.l.b16 %v2709
  %v3097 = vunpack.c.h.b16 %v2709
  %v3098 = vunpack.c.l.b16 %v2710
  %v3099 = vunpack.c.h.b16 %v2710
  %v3100 = vunpack.c.l.b16 %v2711
  %v3101 = vunpack.c.h.b16 %v2711
  %v3102 = vunpack.c.l.b16 %v2712
  %v3103 = vunpack.c.h.b16 %v2712
  %v3104 = vunpack.c.l.b16 %v2713
  %v3105 = vunpack.c.h.b16 %v2713
  %v3106 = vunpack.c.l.b16 %v2714
  %v3107 = vunpack.c.h.b16 %v2714
  %v3108 = vunpack.c.l.b16 %v2715
  %v3109 = vunpack.c.h.b16 %v2715
  %v3110 = vpack.c.b16 %v2858, %v2854
  %v3111 = vpack.c.b16 %v2859, %v2855
  %v3112 = vpack.c.b16 %v2860, %v2856
  %v3113 = vpack.c.b16 %v2861, %v2857
  %v3114 = vpack.c.b16 %v2866, %v2862
  %v3115 = vpack.c.b16 %v2867, %v2863
  %v3116 = vpack.c.b16 %v2868, %v2864
  %v3117 = vpack.c.b16 %v2869, %v2865
  %v3118 = vpack.c.b16 %v2874, %v2870
  %v3119 = vpack.c.b16 %v2875, %v2871
  %v3120 = vpack.c.b16 %v2876, %v2872
  %v3121 = vpack.c.b16 %v2877, %v2873
  %v3122 = vpack.c.b16 %v2882, %v2878
  %v3123 = vpack.c.b16 %v2883, %v2879
  %v3124 = vpack.c.b16 %v2884, %v2880
  %v3125 = vpack.c.b16 %v2885, %v2881
  %v3126 = vpack.c.b16 %v2890, %v2886
  %v3127 = vpack.c.b16 %v2891, %v2887
  %v3128 = vpack.c.b16 %v2892, %v2888
  %v3129 = vpack.c.b16 %v2893, %v2889
  %v3130 = vpack.c.b16 %v2898, %v2894
  %v3131 = vpack.c.b16 %v2899, %v2895
  %v3132 = vpack.c.b16 %v2900, %v2896
  %v3133 = vpack.c.b16 %v2901, %v2897
  %v3134 = vpack.c.b16 %v2906, %v2902
  %v3135 = vpack.c.b16 %v2907, %v2903
  %v3136 = vpack.c.b16 %v2908, %v2904
  %v3137 = vpack.c.b16 %v2909, %v2905
  %v3138 = vpack.c.b16 %v2914, %v2910
  %v3139 = vpack.c.b16 %v2915, %v2911
  %v3140 = vpack.c.b16 %v2916, %v2912
  %v3141 = vpack.c.b16 %v2917, %v2913
  %v3142 = vpack.c.b16 %v2922, %v2918
  %v3143 = vpack.c.b16 %v2923, %v2919
  %v3144 = vpack.c.b16 %v2924, %v2920
  %v3145 = vpack.c.b16 %v2925, %v2921
  %v3146 = vpack.c.b16 %v2930, %v2926
  %v3147 = vpack.c.b16 %v2931, %v2927
  %v3148 = vpack.c.b16 %v2932, %v2928
  %v3149 = vpack.c.b16 %v2933, %v2929
  %v3150 = vpack.c.b16 %v2938, %v2934
  %v3151 = vpack.c.b16 %v2939, %v2935
  %v3152 = vpack.c.b16 %v2940, %v2936
  %v3153 = vpack.c.b16 %v2941, %v2937
  %v3154 = vpack.c.b16 %v2946, %v2942
  %v3155 = vpack.c.b16 %v2947, %v2943
  %v3156 = vpack.c.b16 %v2948, %v2944
  %v3157 = vpack.c.b16 %v2949, %v2945
  %v3158 = vpack.c.b16 %v2954, %v2950
  %v3159 = vpack.c.b16 %v2955, %v2951
  %v3160 = vpack.c.b16 %v2956, %v2952
  %v3161 = vpack.c.b16 %v2957, %v2953
  %v3162 = vpack.c.b16 %v2962, %v2958
  %v3163 = vpack.c.b16 %v2963, %v2959
  %v3164 = vpack.c.b16 %v2964, %v2960
  %v3165 = vpack.c.b16 %v2965, %v2961
  %v3166 = vpack.c.b16 %v2970, %v2966
  %v3167 = vpack.c.b16 %v2971, %v2967
  %v3168 = vpack.c.b16 %v2972, %v2968
  %v3169 = vpack.c.b16 %v2973, %v2969
  %v3170 = vpack.c.b16 %v2978, %v2974
  %v3171 = vpack.c.b16 %v2979, %v2975
  %v3172 = vpack.c.b16 %v2980, %v2976
  %v3173 = vpack.c.b16 %v2981, %v2977
  %v3174 = vpack.c.b16 %v2986, %v2982
  %v3175 = vpack.c.b16 %v2987, %v2983
  %v3176 = vpack.c.b16 %v2988, %v2984
  %v3177 = vpack.c.b16 %v2989, %v2985
  %v3178 = vpack.c.b16 %v2994, %v2990
  %v3179 = vpack.c.b16 %v2995, %v2991
  %v3180 = vpack.c.b16 %v2996, %v2992
  %v3181 = vpack.c.b16 %v2997, %v2993
  %v3182 = vpack.c.b16 %v3002, %v2998
  %v3183 = vpack.c.b16 %v3003, %v2999
  %v3184 = vpack.c.b16 %v3004, %v3000
  %v3185 = vpack.c.b16 %v3005, %v3001
  %v3186 = vpack.c.b16 %v3010, %v3006
  %v3187 = vpack.c.b16 %v3011, %v3007
  %v3188 = vpack.c.b16 %v3012, %v3008
  %v3189 = vpack.c.b16 %v3013, %v3009
  %v3190 = vpack.c.b16 %v3018, %v3014
  %v3191 = vpack.c.b16 %v3019, %v3015
  %v3192 = vpack.c.b16 %v3020, %v3016
  %v3193 = vpack.c.b16 %v3021, %v3017
  %v3194 = vpack.c.b16 %v3026, %v3022
  %v3195 = vpack.c.b16 %v3027, %v3023
  %v3196 = vpack.c.b16 %v3028, %v3024
  %v3197 = vpack.c.b16 %v3029, %v3025
  %v3198 = vpack.c.b16 %v3034, %v3030
  %v3199 = vpack.c.b16 %v3035, %v3031
  %v3200 = vpack.c.b16 %v3036, %v3032
  %v3201 = vpack.c.b16 %v3037, %v3033
  %v3202 = vpack.c.b16 %v3042, %v3038
  %v3203 = vpack.c.b16 %v3043, %v3039
  %v3204 = vpack.c.b16 %v3044, %v3040
  %v3205 = vpack.c.b16 %v3045, %v3041
  %v3206 = vpack.c.b16 %v3050, %v3046
  %v3207 = vpack.c.b16 %v3051, %v3047
  %v3208 = vpack.c.b16 %v3052, %v3048
  %v3209 = vpack.c.b16 %v3053, %v3049
  %v3210 = vpack.c.b16 %v3058, %v3054
  %v3211 = vpack.c.b16 %v3059, %v3055
  %v3212 = vpack.c.b16 %v3060, %v3056
  %v3213 = vpack.c.b16 %v3061, %v3057
  %v3214 = vpack.c.b16 %v3066, %v3062
  %v3215 = vpack.c.b16 %v3067, %v3063
  %v3216 = vpack.c.b16 %v3068, %v3064
  %v3217 = vpack.c.b16 %v3069, %v3065
  %v3218 = vpack.c.b16 %v3074, %v3070
  %v3219 = vpack.c.b16 %v3075, %v3071
  %v3220 = vpack.c.b16 %v3076, %v3072
  %v3221 = vpack.c.b16 %v3077, %v3073
  %v3222 = vpack.c.b16 %v3082, %v3078
  %v3223 = vpack.c.b16 %v3083, %v3079
  %v3224 = vpack.c.b16 %v3084, %v3080
  %v3225 = vpack.c.b16 %v3085, %v3081
  %v3226 = vpack.c.b16 %v3090, %v3086
  %v3227 = vpack.c.b16 %v3091, %v3087
  %v3228 = vpack.c.b16 %v3092, %v3088
  %v3229 = vpack.c.b16 %v3093, %v3089
  %v3230 = vpack.c.b16 %v3098, %v3094
  %v3231 = vpack.c.b16 %v3099, %v3095
  %v3232 = vpack.c.b16 %v3100, %v3096
  %v3233 = vpack.c.b16 %v3101, %v3097
  %v3234 = vpack.c.b16 %v3106, %v3102
  %v3235 = vpack.c.b16 %v3107, %v3103
  %v3236 = vpack.c.b16 %v3108, %v3104
  %v3237 = vpack.c.b16 %v3109, %v3105
  %3366 = vmatpush.bf16.msra.mxu0 %v3138
  %3367 = vmatpush.bf16.msra.mxu0 %v3134
  %3368 = vmatpush.bf16.msra.mxu0 %v3130
  %3369 = vmatpush.bf16.msra.mxu0 %v3126
  %3370 = vmatpush.bf16.msra.mxu0 %v3122
  %3371 = vmatpush.bf16.msra.mxu0 %v3118
  %3372 = vmatpush.bf16.msra.mxu0 %v3114
  %3373 = vmatpush.bf16.msra.mxu0 %v3110
  %3374 = vmatmul.bf16.gmra.mxu0 %v2584
  %v3375 = vpop.f32.mrf.mxu0
  %v3376 = vadd.f32 %v2718, %v3375
  %v3377 = vpop.f32.mrf.mxu0
  %v3378 = vadd.f32 %v2718, %v3377
  %3379 = vdwg.mxu0
  %3380 = vmatpush.bf16.msra.mxu0 %v3170
  %3381 = vmatpush.bf16.msra.mxu0 %v3166
  %3382 = vmatpush.bf16.msra.mxu0 %v3162
  %3383 = vmatpush.bf16.msra.mxu0 %v3158
  %3384 = vmatpush.bf16.msra.mxu0 %v3154
  %3385 = vmatpush.bf16.msra.mxu0 %v3150
  %3386 = vmatpush.bf16.msra.mxu0 %v3146
  %3387 = vmatpush.bf16.msra.mxu0 %v3142
  %3388 = vmatmul.bf16.gmra.mxu0 %v2585
  %v3389 = vpop.f32.mrf.mxu0
  %v3390 = vadd.f32 %v3376, %v3389
  %v3391 = vpop.f32.mrf.mxu0
  %v3392 = vadd.f32 %v3378, %v3391
  %3393 = vdwg.mxu0
  %3394 = vmatpush.bf16.msra.mxu0 %v3202
  %3395 = vmatpush.bf16.msra.mxu0 %v3198
  %3396 = vmatpush.bf16.msra.mxu0 %v3194
  %3397 = vmatpush.bf16.msra.mxu0 %v3190
  %3398 = vmatpush.bf16.msra.mxu0 %v3186
  %3399 = vmatpush.bf16.msra.mxu0 %v3182
  %3400 = vmatpush.bf16.msra.mxu0 %v3178
  %3401 = vmatpush.bf16.msra.mxu0 %v3174
  %3402 = vmatmul.bf16.gmra.mxu0 %v2586
  %v3403 = vpop.f32.mrf.mxu0
  %v3404 = vadd.f32 %v3390, %v3403
  %v3405 = vpop.f32.mrf.mxu0
  %v3406 = vadd.f32 %v3392, %v3405
  %3407 = vdwg.mxu0
  %3408 = vmatpush.bf16.msra.mxu0 %v3234
  %3409 = vmatpush.bf16.msra.mxu0 %v3230
  %3410 = vmatpush.bf16.msra.mxu0 %v3226
  %3411 = vmatpush.bf16.msra.mxu0 %v3222
  %3412 = vmatpush.bf16.msra.mxu0 %v3218
  %3413 = vmatpush.bf16.msra.mxu0 %v3214
  %3414 = vmatpush.bf16.msra.mxu0 %v3210
  %3415 = vmatpush.bf16.msra.mxu0 %v3206
  %3416 = vmatmul.bf16.gmra.mxu0 %v2587
  %v3417 = vpop.f32.mrf.mxu0
  %v3418 = vadd.f32 %v3404, %v3417
  %v3419 = vpop.f32.mrf.mxu0
  %v3420 = vadd.f32 %v3406, %v3419
  %3421 = vdwg.mxu0
  %3422 = vmatpush.bf16.msra.mxu0 %v3139
  %3423 = vmatpush.bf16.msra.mxu0 %v3135
  %3424 = vmatpush.bf16.msra.mxu0 %v3131
  %3425 = vmatpush.bf16.msra.mxu0 %v3127
  %3426 = vmatpush.bf16.msra.mxu0 %v3123
  %3427 = vmatpush.bf16.msra.mxu0 %v3119
  %3428 = vmatpush.bf16.msra.mxu0 %v3115
  %3429 = vmatpush.bf16.msra.mxu0 %v3111
  %3430 = vmatmul.bf16.gmra.mxu0 %v2584
  %v3431 = vpop.f32.mrf.mxu0
  %v3432 = vadd.f32 %v2719, %v3431
  %v3433 = vpop.f32.mrf.mxu0
  %v3434 = vadd.f32 %v2719, %v3433
  %3435 = vdwg.mxu0
  %3436 = vmatpush.bf16.msra.mxu0 %v3171
  %3437 = vmatpush.bf16.msra.mxu0 %v3167
  %3438 = vmatpush.bf16.msra.mxu0 %v3163
  %3439 = vmatpush.bf16.msra.mxu0 %v3159
  %3440 = vmatpush.bf16.msra.mxu0 %v3155
  %3441 = vmatpush.bf16.msra.mxu0 %v3151
  %3442 = vmatpush.bf16.msra.mxu0 %v3147
  %3443 = vmatpush.bf16.msra.mxu0 %v3143
  %3444 = vmatmul.bf16.gmra.mxu0 %v2585
  %v3445 = vpop.f32.mrf.mxu0
  %v3446 = vadd.f32 %v3432, %v3445
  %v3447 = vpop.f32.mrf.mxu0
  %v3448 = vadd.f32 %v3434, %v3447
  %3449 = vdwg.mxu0
  %3450 = vmatpush.bf16.msra.mxu0 %v3203
  %3451 = vmatpush.bf16.msra.mxu0 %v3199
  %3452 = vmatpush.bf16.msra.mxu0 %v3195
  %3453 = vmatpush.bf16.msra.mxu0 %v3191
  %3454 = vmatpush.bf16.msra.mxu0 %v3187
  %3455 = vmatpush.bf16.msra.mxu0 %v3183
  %3456 = vmatpush.bf16.msra.mxu0 %v3179
  %3457 = vmatpush.bf16.msra.mxu0 %v3175
  %3458 = vmatmul.bf16.gmra.mxu0 %v2586
  %v3459 = vpop.f32.mrf.mxu0
  %v3460 = vadd.f32 %v3446, %v3459
  %v3461 = vpop.f32.mrf.mxu0
  %v3462 = vadd.f32 %v3448, %v3461
  %3463 = vdwg.mxu0
  %3464 = vmatpush.bf16.msra.mxu0 %v3235
  %3465 = vmatpush.bf16.msra.mxu0 %v3231
  %3466 = vmatpush.bf16.msra.mxu0 %v3227
  %3467 = vmatpush.bf16.msra.mxu0 %v3223
  %3468 = vmatpush.bf16.msra.mxu0 %v3219
  %3469 = vmatpush.bf16.msra.mxu0 %v3215
  %3470 = vmatpush.bf16.msra.mxu0 %v3211
  %3471 = vmatpush.bf16.msra.mxu0 %v3207
  %3472 = vmatmul.bf16.gmra.mxu0 %v2587
  %v3473 = vpop.f32.mrf.mxu0
  %v3474 = vadd.f32 %v3460, %v3473
  %v3475 = vpop.f32.mrf.mxu0
  %v3476 = vadd.f32 %v3462, %v3475
  %3477 = vdwg.mxu0
  %3478 = vmatpush.bf16.msra.mxu0 %v3140
  %3479 = vmatpush.bf16.msra.mxu0 %v3136
  %3480 = vmatpush.bf16.msra.mxu0 %v3132
  %3481 = vmatpush.bf16.msra.mxu0 %v3128
  %3482 = vmatpush.bf16.msra.mxu0 %v3124
  %3483 = vmatpush.bf16.msra.mxu0 %v3120
  %3484 = vmatpush.bf16.msra.mxu0 %v3116
  %3485 = vmatpush.bf16.msra.mxu0 %v3112
  %3486 = vmatmul.bf16.gmra.mxu0 %v2584
  %v3487 = vpop.f32.mrf.mxu0
  %v3488 = vadd.f32 %v2720, %v3487
  %v3489 = vpop.f32.mrf.mxu0
  %v3490 = vadd.f32 %v2720, %v3489
  %3491 = vdwg.mxu0
  %3492 = vmatpush.bf16.msra.mxu0 %v3172
  %3493 = vmatpush.bf16.msra.mxu0 %v3168
  %3494 = vmatpush.bf16.msra.mxu0 %v3164
  %3495 = vmatpush.bf16.msra.mxu0 %v3160
  %3496 = vmatpush.bf16.msra.mxu0 %v3156
  %3497 = vmatpush.bf16.msra.mxu0 %v3152
  %3498 = vmatpush.bf16.msra.mxu0 %v3148
  %3499 = vmatpush.bf16.msra.mxu0 %v3144
  %3500 = vmatmul.bf16.gmra.mxu0 %v2585
  %v3501 = vpop.f32.mrf.mxu0
  %v3502 = vadd.f32 %v3488, %v3501
  %v3503 = vpop.f32.mrf.mxu0
  %v3504 = vadd.f32 %v3490, %v3503
  %3505 = vdwg.mxu0
  %3506 = vmatpush.bf16.msra.mxu0 %v3204
  %3507 = vmatpush.bf16.msra.mxu0 %v3200
  %3508 = vmatpush.bf16.msra.mxu0 %v3196
  %3509 = vmatpush.bf16.msra.mxu0 %v3192
  %3510 = vmatpush.bf16.msra.mxu0 %v3188
  %3511 = vmatpush.bf16.msra.mxu0 %v3184
  %3512 = vmatpush.bf16.msra.mxu0 %v3180
  %3513 = vmatpush.bf16.msra.mxu0 %v3176
  %3514 = vmatmul.bf16.gmra.mxu0 %v2586
  %v3515 = vpop.f32.mrf.mxu0
  %v3516 = vadd.f32 %v3502, %v3515
  %v3517 = vpop.f32.mrf.mxu0
  %v3518 = vadd.f32 %v3504, %v3517
  %3519 = vdwg.mxu0
  %3520 = vmatpush.bf16.msra.mxu0 %v3236
  %3521 = vmatpush.bf16.msra.mxu0 %v3232
  %3522 = vmatpush.bf16.msra.mxu0 %v3228
  %3523 = vmatpush.bf16.msra.mxu0 %v3224
  %3524 = vmatpush.bf16.msra.mxu0 %v3220
  %3525 = vmatpush.bf16.msra.mxu0 %v3216
  %3526 = vmatpush.bf16.msra.mxu0 %v3212
  %3527 = vmatpush.bf16.msra.mxu0 %v3208
  %3528 = vmatmul.bf16.gmra.mxu0 %v2587
  %v3529 = vpop.f32.mrf.mxu0
  %v3530 = vadd.f32 %v3516, %v3529
  %v3531 = vpop.f32.mrf.mxu0
  %v3532 = vadd.f32 %v3518, %v3531
  %3533 = vdwg.mxu0
  %3534 = vmatpush.bf16.msra.mxu0 %v3141
  %3535 = vmatpush.bf16.msra.mxu0 %v3137
  %3536 = vmatpush.bf16.msra.mxu0 %v3133
  %3537 = vmatpush.bf16.msra.mxu0 %v3129
  %3538 = vmatpush.bf16.msra.mxu0 %v3125
  %3539 = vmatpush.bf16.msra.mxu0 %v3121
  %3540 = vmatpush.bf16.msra.mxu0 %v3117
  %3541 = vmatpush.bf16.msra.mxu0 %v3113
  %3542 = vmatmul.bf16.gmra.mxu0 %v2584
  %v3543 = vpop.f32.mrf.mxu0
  %v3544 = vadd.f32 %v2721, %v3543
  %v3545 = vpop.f32.mrf.mxu0
  %v3546 = vadd.f32 %v2721, %v3545
  %3547 = vdwg.mxu0
  %3548 = vmatpush.bf16.msra.mxu0 %v3173
  %3549 = vmatpush.bf16.msra.mxu0 %v3169
  %3550 = vmatpush.bf16.msra.mxu0 %v3165
  %3551 = vmatpush.bf16.msra.mxu0 %v3161
  %3552 = vmatpush.bf16.msra.mxu0 %v3157
  %3553 = vmatpush.bf16.msra.mxu0 %v3153
  %3554 = vmatpush.bf16.msra.mxu0 %v3149
  %3555 = vmatpush.bf16.msra.mxu0 %v3145
  %3556 = vmatmul.bf16.gmra.mxu0 %v2585
  %v3557 = vpop.f32.mrf.mxu0
  %v3558 = vadd.f32 %v3544, %v3557
  %v3559 = vpop.f32.mrf.mxu0
  %v3560 = vadd.f32 %v3546, %v3559
  %3561 = vdwg.mxu0
  %3562 = vmatpush.bf16.msra.mxu0 %v3205
  %3563 = vmatpush.bf16.msra.mxu0 %v3201
  %3564 = vmatpush.bf16.msra.mxu0 %v3197
  %3565 = vmatpush.bf16.msra.mxu0 %v3193
  %3566 = vmatpush.bf16.msra.mxu0 %v3189
  %3567 = vmatpush.bf16.msra.mxu0 %v3185
  %3568 = vmatpush.bf16.msra.mxu0 %v3181
  %3569 = vmatpush.bf16.msra.mxu0 %v3177
  %3570 = vmatmul.bf16.gmra.mxu0 %v2586
  %v3571 = vpop.f32.mrf.mxu0
  %v3572 = vadd.f32 %v3558, %v3571
  %v3573 = vpop.f32.mrf.mxu0
  %v3574 = vadd.f32 %v3560, %v3573
  %3575 = vdwg.mxu0
  %3576 = vmatpush.bf16.msra.mxu0 %v3237
  %3577 = vmatpush.bf16.msra.mxu0 %v3233
  %3578 = vmatpush.bf16.msra.mxu0 %v3229
  %3579 = vmatpush.bf16.msra.mxu0 %v3225
  %3580 = vmatpush.bf16.msra.mxu0 %v3221
  %3581 = vmatpush.bf16.msra.mxu0 %v3217
  %3582 = vmatpush.bf16.msra.mxu0 %v3213
  %3583 = vmatpush.bf16.msra.mxu0 %v3209
  %3584 = vmatmul.bf16.gmra.mxu0 %v2587
  %v3585 = vpop.f32.mrf.mxu0
  %v3586 = vadd.f32 %v3572, %v3585
  %v3587 = vpop.f32.mrf.mxu0
  %v3588 = vadd.f32 %v3574, %v3587
  %3589 = vdwg.mxu0
  %v3590 = vtanh.pop %v3418
  %v3591 = vtanh.pop %v3474
  %v3592 = vtanh.pop %v3530
  %v3593 = vtanh.pop %v3586
  %v3594 = vtanh.pop %v3420
  %v3595 = vtanh.pop %v3476
  %v3596 = vtanh.pop %v3532
  %v3597 = vtanh.pop %v3588
  %v3598 = vpack.c.bf16 %v3594, %v3590
  %v3599 = vpack.c.bf16 %v3595, %v3591
  %v3600 = vpack.c.bf16 %v3596, %v3592
  %v3601 = vpack.c.bf16 %v3597, %v3593
  %v3602 = vld [vmem:[%s5] sm:$0xf]
  %v3603 = vld [vmem:[%s5 + $0x4] sm:$0xf]
  %v3604 = vld [vmem:[%s5 + $0x8] sm:$0xf]
  %v3605 = vld [vmem:[%s5 + $0xc] sm:$0xf]
  %v3606 = vld [vmem:[%s5 + $0x10] sm:$0xf]
  %v3607 = vld [vmem:[%s5 + $0x14] sm:$0xf]
  %v3608 = vld [vmem:[%s5 + $0x18] sm:$0xf]
  %v3609 = vld [vmem:[%s5 + $0x1c] sm:$0xf]
  %v3610 = vld [vmem:[%s5 + $0x20] sm:$0xf]
  %v3611 = vld [vmem:[%s5 + $0x24] sm:$0xf]
  %v3612 = vld [vmem:[%s5 + $0x28] sm:$0xf]
  %v3613 = vld [vmem:[%s5 + $0x2c] sm:$0xf]
  %v3614 = vld [vmem:[%s5 + $0x30] sm:$0xf]
  %v3615 = vld [vmem:[%s5 + $0x34] sm:$0xf]
  %v3616 = vld [vmem:[%s5 + $0x38] sm:$0xf]
  %v3617 = vld [vmem:[%s5 + $0x3c] sm:$0xf]
  %v3618 = vld [vmem:[%s5 + $0x40] sm:$0xf]
  %v3619 = vld [vmem:[%s5 + $0x44] sm:$0xf]
  %v3620 = vld [vmem:[%s5 + $0x48] sm:$0xf]
  %v3621 = vld [vmem:[%s5 + $0x4c] sm:$0xf]
  %v3622 = vld [vmem:[%s5 + $0x50] sm:$0xf]
  %v3623 = vld [vmem:[%s5 + $0x54] sm:$0xf]
  %v3624 = vld [vmem:[%s5 + $0x58] sm:$0xf]
  %v3625 = vld [vmem:[%s5 + $0x5c] sm:$0xf]
  %v3626 = vld [vmem:[%s5 + $0x60] sm:$0xf]
  %v3627 = vld [vmem:[%s5 + $0x64] sm:$0xf]
  %v3628 = vld [vmem:[%s5 + $0x68] sm:$0xf]
  %v3629 = vld [vmem:[%s5 + $0x6c] sm:$0xf]
  %v3630 = vld [vmem:[%s5 + $0x70] sm:$0xf]
  %v3631 = vld [vmem:[%s5 + $0x74] sm:$0xf]
  %v3632 = vld [vmem:[%s5 + $0x78] sm:$0xf]
  %v3633 = vld [vmem:[%s5 + $0x7c] sm:$0xf]
  %v3634 = vld [vmem:[%s5 + $0x80] sm:$0xf]
  %v3635 = vld [vmem:[%s5 + $0x84] sm:$0xf]
  %v3636 = vld [vmem:[%s5 + $0x88] sm:$0xf]
  %v3637 = vld [vmem:[%s5 + $0x8c] sm:$0xf]
  %v3638 = vld [vmem:[%s5 + $0x90] sm:$0xf]
  %v3639 = vld [vmem:[%s5 + $0x94] sm:$0xf]
  %v3640 = vld [vmem:[%s5 + $0x98] sm:$0xf]
  %v3641 = vld [vmem:[%s5 + $0x9c] sm:$0xf]
  %v3642 = vld [vmem:[%s5 + $0xa0] sm:$0xf]
  %v3643 = vld [vmem:[%s5 + $0xa4] sm:$0xf]
  %v3644 = vld [vmem:[%s5 + $0xa8] sm:$0xf]
  %v3645 = vld [vmem:[%s5 + $0xac] sm:$0xf]
  %v3646 = vld [vmem:[%s5 + $0xb0] sm:$0xf]
  %v3647 = vld [vmem:[%s5 + $0xb4] sm:$0xf]
  %v3648 = vld [vmem:[%s5 + $0xb8] sm:$0xf]
  %v3649 = vld [vmem:[%s5 + $0xbc] sm:$0xf]
  %v3650 = vld [vmem:[%s5 + $0xc0] sm:$0xf]
  %v3651 = vld [vmem:[%s5 + $0xc4] sm:$0xf]
  %v3652 = vld [vmem:[%s5 + $0xc8] sm:$0xf]
  %v3653 = vld [vmem:[%s5 + $0xcc] sm:$0xf]
  %v3654 = vld [vmem:[%s5 + $0xd0] sm:$0xf]
  %v3655 = vld [vmem:[%s5 + $0xd4] sm:$0xf]
  %v3656 = vld [vmem:[%s5 + $0xd8] sm:$0xf]
  %v3657 = vld [vmem:[%s5 + $0xdc] sm:$0xf]
  %v3658 = vld [vmem:[%s5 + $0xe0] sm:$0xf]
  %v3659 = vld [vmem:[%s5 + $0xe4] sm:$0xf]
  %v3660 = vld [vmem:[%s5 + $0xe8] sm:$0xf]
  %v3661 = vld [vmem:[%s5 + $0xec] sm:$0xf]
  %v3662 = vld [vmem:[%s5 + $0xf0] sm:$0xf]
  %v3663 = vld [vmem:[%s5 + $0xf4] sm:$0xf]
  %v3664 = vld [vmem:[%s5 + $0xf8] sm:$0xf]
  %v3665 = vld [vmem:[%s5 + $0xfc] sm:$0xf]
  %v3666 = vld [vmem:[%s6] sm:$0x1]
  %v3668 = vperm.slane %v3666, 0
  %v3734 = vunpack.c.l.b16 %v3602
  %v3735 = vunpack.c.l.b16 %v3603
  %v3736 = vunpack.c.l.b16 %v3604
  %v3737 = vunpack.c.l.b16 %v3605
  %v3738 = vunpack.c.l.b16 %v3606
  %v3739 = vunpack.c.l.b16 %v3607
  %v3740 = vunpack.c.l.b16 %v3608
  %v3741 = vunpack.c.l.b16 %v3609
  %v3742 = vunpack.c.l.b16 %v3610
  %v3743 = vunpack.c.l.b16 %v3611
  %v3744 = vunpack.c.l.b16 %v3612
  %v3745 = vunpack.c.l.b16 %v3613
  %v3746 = vunpack.c.l.b16 %v3614
  %v3747 = vunpack.c.l.b16 %v3615
  %v3748 = vunpack.c.l.b16 %v3616
  %v3749 = vunpack.c.l.b16 %v3617
  %v3750 = vunpack.c.l.b16 %v3618
  %v3751 = vunpack.c.l.b16 %v3619
  %v3752 = vunpack.c.l.b16 %v3620
  %v3753 = vunpack.c.l.b16 %v3621
  %v3754 = vunpack.c.l.b16 %v3622
  %v3755 = vunpack.c.l.b16 %v3623
  %v3756 = vunpack.c.l.b16 %v3624
  %v3757 = vunpack.c.l.b16 %v3625
  %v3758 = vunpack.c.l.b16 %v3626
  %v3759 = vunpack.c.l.b16 %v3627
  %v3760 = vunpack.c.l.b16 %v3628
  %v3761 = vunpack.c.l.b16 %v3629
  %v3762 = vunpack.c.l.b16 %v3630
  %v3763 = vunpack.c.l.b16 %v3631
  %v3764 = vunpack.c.l.b16 %v3632
  %v3765 = vunpack.c.l.b16 %v3633
  %v3766 = vunpack.c.l.b16 %v3634
  %v3767 = vunpack.c.l.b16 %v3635
  %v3768 = vunpack.c.l.b16 %v3636
  %v3769 = vunpack.c.l.b16 %v3637
  %v3770 = vunpack.c.l.b16 %v3638
  %v3771 = vunpack.c.l.b16 %v3639
  %v3772 = vunpack.c.l.b16 %v3640
  %v3773 = vunpack.c.l.b16 %v3641
  %v3774 = vunpack.c.l.b16 %v3642
  %v3775 = vunpack.c.l.b16 %v3643
  %v3776 = vunpack.c.l.b16 %v3644
  %v3777 = vunpack.c.l.b16 %v3645
  %v3778 = vunpack.c.l.b16 %v3646
  %v3779 = vunpack.c.l.b16 %v3647
  %v3780 = vunpack.c.l.b16 %v3648
  %v3781 = vunpack.c.l.b16 %v3649
  %v3782 = vunpack.c.l.b16 %v3650
  %v3783 = vunpack.c.l.b16 %v3651
  %v3784 = vunpack.c.l.b16 %v3652
  %v3785 = vunpack.c.l.b16 %v3653
  %v3786 = vunpack.c.l.b16 %v3654
  %v3787 = vunpack.c.l.b16 %v3655
  %v3788 = vunpack.c.l.b16 %v3656
  %v3789 = vunpack.c.l.b16 %v3657
  %v3790 = vunpack.c.l.b16 %v3658
  %v3791 = vunpack.c.l.b16 %v3659
  %v3792 = vunpack.c.l.b16 %v3660
  %v3793 = vunpack.c.l.b16 %v3661
  %v3794 = vunpack.c.l.b16 %v3662
  %v3795 = vunpack.c.l.b16 %v3663
  %v3796 = vunpack.c.l.b16 %v3664
  %v3797 = vunpack.c.l.b16 %v3665
  %v3798 = vpack.c.b16 %v3735, %v3734
  %v3799 = vpack.c.b16 %v3737, %v3736
  %v3800 = vpack.c.b16 %v3739, %v3738
  %v3801 = vpack.c.b16 %v3741, %v3740
  %v3802 = vpack.c.b16 %v3743, %v3742
  %v3803 = vpack.c.b16 %v3745, %v3744
  %v3804 = vpack.c.b16 %v3747, %v3746
  %v3805 = vpack.c.b16 %v3749, %v3748
  %v3806 = vpack.c.b16 %v3751, %v3750
  %v3807 = vpack.c.b16 %v3753, %v3752
  %v3808 = vpack.c.b16 %v3755, %v3754
  %v3809 = vpack.c.b16 %v3757, %v3756
  %v3810 = vpack.c.b16 %v3759, %v3758
  %v3811 = vpack.c.b16 %v3761, %v3760
  %v3812 = vpack.c.b16 %v3763, %v3762
  %v3813 = vpack.c.b16 %v3765, %v3764
  %v3814 = vpack.c.b16 %v3767, %v3766
  %v3815 = vpack.c.b16 %v3769, %v3768
  %v3816 = vpack.c.b16 %v3771, %v3770
  %v3817 = vpack.c.b16 %v3773, %v3772
  %v3818 = vpack.c.b16 %v3775, %v3774
  %v3819 = vpack.c.b16 %v3777, %v3776
  %v3820 = vpack.c.b16 %v3779, %v3778
  %v3821 = vpack.c.b16 %v3781, %v3780
  %v3822 = vpack.c.b16 %v3783, %v3782
  %v3823 = vpack.c.b16 %v3785, %v3784
  %v3824 = vpack.c.b16 %v3787, %v3786
  %v3825 = vpack.c.b16 %v3789, %v3788
  %v3826 = vpack.c.b16 %v3791, %v3790
  %v3827 = vpack.c.b16 %v3793, %v3792
  %v3828 = vpack.c.b16 %v3795, %v3794
  %v3829 = vpack.c.b16 %v3797, %v3796
  %3862 = vmatpush.bf16.msra.mxu0 %v3805
  %3863 = vmatpush.bf16.msra.mxu0 %v3804
  %3864 = vmatpush.bf16.msra.mxu0 %v3803
  %3865 = vmatpush.bf16.msra.mxu0 %v3802
  %3866 = vmatpush.bf16.msra.mxu0 %v3801
  %3867 = vmatpush.bf16.msra.mxu0 %v3800
  %3868 = vmatpush.bf16.msra.mxu0 %v3799
  %3869 = vmatpush.bf16.msra.mxu0 %v3798
  %3870 = vmatmul.bf16.gmra.mxu0 %v3598
  %v3871 = vpop.f32.mrf.mxu0
  %v3872 = vadd.f32 %v3668, %v3871
  %v3873 = vpop.f32.mrf.mxu0
  %v3874 = vadd.f32 %v3668, %v3873
  %3875 = vdwg.mxu0
  %3876 = vmatpush.bf16.msra.mxu0 %v3813
  %3877 = vmatpush.bf16.msra.mxu0 %v3812
  %3878 = vmatpush.bf16.msra.mxu0 %v3811
  %3879 = vmatpush.bf16.msra.mxu0 %v3810
  %3880 = vmatpush.bf16.msra.mxu0 %v3809
  %3881 = vmatpush.bf16.msra.mxu0 %v3808
  %3882 = vmatpush.bf16.msra.mxu0 %v3807
  %3883 = vmatpush.bf16.msra.mxu0 %v3806
  %3884 = vmatmul.bf16.gmra.mxu0 %v3599
  %v3885 = vpop.f32.mrf.mxu0
  %v3886 = vadd.f32 %v3872, %v3885
  %v3887 = vpop.f32.mrf.mxu0
  %v3888 = vadd.f32 %v3874, %v3887
  %3889 = vdwg.mxu0
  %3890 = vmatpush.bf16.msra.mxu0 %v3821
  %3891 = vmatpush.bf16.msra.mxu0 %v3820
  %3892 = vmatpush.bf16.msra.mxu0 %v3819
  %3893 = vmatpush.bf16.msra.mxu0 %v3818
  %3894 = vmatpush.bf16.msra.mxu0 %v3817
  %3895 = vmatpush.bf16.msra.mxu0 %v3816
  %3896 = vmatpush.bf16.msra.mxu0 %v3815
  %3897 = vmatpush.bf16.msra.mxu0 %v3814
  %3898 = vmatmul.bf16.gmra.mxu0 %v3600
  %v3899 = vpop.f32.mrf.mxu0
  %v3900 = vadd.f32 %v3886, %v3899
  %v3901 = vpop.f32.mrf.mxu0
  %v3902 = vadd.f32 %v3888, %v3901
  %3903 = vdwg.mxu0
  %3904 = vmatpush.bf16.msra.mxu0 %v3829
  %3905 = vmatpush.bf16.msra.mxu0 %v3828
  %3906 = vmatpush.bf16.msra.mxu0 %v3827
  %3907 = vmatpush.bf16.msra.mxu0 %v3826
  %3908 = vmatpush.bf16.msra.mxu0 %v3825
  %3909 = vmatpush.bf16.msra.mxu0 %v3824
  %3910 = vmatpush.bf16.msra.mxu0 %v3823
  %3911 = vmatpush.bf16.msra.mxu0 %v3822
  %3912 = vmatmul.bf16.gmra.mxu0 %v3601
  %v3913 = vpop.f32.mrf.mxu0
  %v3914 = vadd.f32 %v3900, %v3913
  %v3915 = vpop.f32.mrf.mxu0
  %v3916 = vadd.f32 %v3902, %v3915
  %3917 = vdwg.mxu0
  %3918 = vst [vmem:[%s7] sm:$0xff] %v3914
  %3919 = vst [vmem:[%s7 + $0x8] sm:$0xff] %v3916
  // Predicated region
  $region30: #{nlinet_forward.1} parent=0 // pred_check
    _
  $region31: #{nlinet_forward.1} parent=0 // pred_check_branch
    %3921 = sbr.rel (0) target = $region33
  $region32: #{nlinet_forward.1} parent=0 // pred_region
    _
  $region33: #{nlinet_forward.1} parent=0 // pred_fallthru
    _
  // Predicated region
  $region34: #{nlinet_forward.1} parent=0 // pred_check
    _
  $region35: #{nlinet_forward.1} parent=0 // pred_check_branch
    %3923 = sbr.rel (0) target = $region37
  $region36: #{nlinet_forward.1} parent=0 // pred_region
    _
  $region37: #{nlinet_forward.1} parent=0 // pred_fallthru
    _

</llo_original>
